<compile_context>
chip_gen: v7x
topology: tpu7x:2x2x1
jax: 0.10.0
libtpu: 0.0.40
codegen_flags: <defaults>
</compile_context>

<pallas_src>
import functools

import jax
import jax.numpy as jnp
from jax.experimental import pallas as pl
from jax.experimental.pallas import tpu as pltpu


# ----------------------------------------------------------------------------
# Pallas kernel: batched tiled GEMM (bf16 x bf16 -> f32 acc) + bias + activation
# grid = (G, M, N, K); K is the reduction ("arbitrary") axis.
# ----------------------------------------------------------------------------
def _gemm_bias_act_kernel(a_ref, b_ref, bias_ref, o_ref, acc_ref, *, act):
    k = pl.program_id(3)
    prod = jnp.dot(a_ref[...], b_ref[...], preferred_element_type=jnp.float32)

    @pl.when(k == 0)
    def _first():
        acc_ref[...] = prod

    @pl.when(k > 0)
    def _accum():
        acc_ref[...] += prod

    @pl.when(k == pl.num_programs(3) - 1)
    def _finalize():
        y = acc_ref[...] + bias_ref[...]
        if act == "leaky_relu":
            y = jnp.where(y >= 0.0, y, 0.2 * y)
        elif act == "relu":
            y = jnp.maximum(y, 0.0)
        elif act == "tanh":
            y = jnp.tanh(y)
        # act == "none": identity
        o_ref[...] = y.astype(o_ref.dtype)


def _round_up(x, m):
    return ((x + m - 1) // m) * m


@functools.lru_cache(maxsize=1)
def _vmem_capacity_bytes():
    try:
        return int(pltpu.get_tpu_info().vmem_capacity_bytes)
    except Exception:
        return 64 * 1024 * 1024  # conservative (v7x) fallback


def _largest_tile(dim_padded, cap):
    """Largest multiple of 128 that divides dim_padded and is <= cap."""
    best = 128
    t = 128
    limit = min(cap, dim_padded)
    while t <= limit:
        if dim_padded % t == 0:
            best = t
        t += 128
    return best


def _choose_tiles(G, M, K, N):
    cap = _vmem_capacity_bytes()
    budget = max(24 * (1 << 20), int(0.40 * cap))

    Np = _round_up(N, 128)
    tn = _largest_tile(Np, 512)
    Kp = _round_up(K, 128)
    tk = _largest_tile(Kp, 2048)   # divisor of Kp -> no wasted K padding
    Mp16 = _round_up(M, 16)

    def footprint(tm, tn_):
        a_b = 2 * tm * tk * 2          # double-buffered bf16 A tile
        b_b = 2 * tk * tn_ * 2         # double-buffered bf16 B tile
        o_b = 2 * tm * tn_ * 2         # double-buffered bf16 out tile
        acc = tm * tn_ * 4             # f32 accumulator scratch
        return a_b + b_b + o_b + acc + (2 << 20)

    if Mp16 <= 2048 and footprint(Mp16, tn) <= budget:
        tm, Mp = Mp16, Mp16
    else:
        tm = 2048
        while tm > 256 and footprint(tm, tn) > budget:
            tm //= 2
        Mp = _round_up(M, tm)

    # If the whole layer collapses to a single (parallel) grid point, split N so
    # v7x's two TensorCores both get work (harmless on single-TC generations).
    if G * (Mp // tm) * (Np // tn) == 1 and tn % 256 == 0:
        tn //= 2

    vmem_limit = min(max(32 * (1 << 20), footprint(tm, tn) + 8 * (1 << 20)),
                     int(0.75 * cap))
    return Mp, Kp, Np, tm, tk, tn, vmem_limit


def gemm_bias_act(a, b, bias, *, act):
    """y[g] = act(a[g] @ b[g] + bias).  a: (G,M,K), b: (G,K,N), bias: (N,).

    Returns bf16 (G, M, N)."""
    G, M, K = a.shape
    G2, K2, N = b.shape
    assert (G, K) == (G2, K2), ((G, K), (G2, K2))

    Mp, Kp, Np, tm, tk, tn, vmem_limit = _choose_tiles(G, M, K, N)

    a = a.astype(jnp.bfloat16)
    b = b.astype(jnp.bfloat16)
    if (Mp, Kp) != (M, K):
        a = jnp.pad(a, ((0, 0), (0, Mp - M), (0, Kp - K)))
    if (Kp, Np) != (K, N):
        b = jnp.pad(b, ((0, 0), (0, Kp - K), (0, Np - N)))
    bias = bias.astype(jnp.float32)
    if Np != N:
        bias = jnp.pad(bias, (0, Np - N))
    bias = bias.reshape(1, Np)

    grid = (G, Mp // tm, Np // tn, Kp // tk)
    out = pl.pallas_call(
        functools.partial(_gemm_bias_act_kernel, act=act),
        out_shape=jax.ShapeDtypeStruct((G, Mp, Np), jnp.bfloat16),
        grid_spec=pltpu.PrefetchScalarGridSpec(
            num_scalar_prefetch=0,
            grid=grid,
            in_specs=[
                pl.BlockSpec((None, tm, tk), lambda g, i, j, k: (g, i, k)),
                pl.BlockSpec((None, tk, tn), lambda g, i, j, k: (g, k, j)),
                pl.BlockSpec((1, tn), lambda g, i, j, k: (0, j)),
            ],
            out_specs=pl.BlockSpec((None, tm, tn), lambda g, i, j, k: (g, i, j)),
            scratch_shapes=[pltpu.VMEM((tm, tn), jnp.float32)],
        ),
        compiler_params=pltpu.CompilerParams(
            dimension_semantics=("parallel", "parallel", "parallel", "arbitrary"),
            vmem_limit_bytes=vmem_limit,
        ),
    )(a, b, bias)
    return out[:, :M, :N]


# ----------------------------------------------------------------------------
# Conv2d lowered to the GEMM kernel (im2col is cheap JAX glue, NHWC layout)
# ----------------------------------------------------------------------------
def _im2col_nhwc(x, k, stride, pad):
    N, H, W, C = x.shape
    Ho = (H + 2 * pad - k) // stride + 1
    Wo = (W + 2 * pad - k) // stride + 1
    xp = jnp.pad(x, ((0, 0), (pad, pad), (pad, pad), (0, 0)))
    cols = []
    for kh in range(k):
        for kw in range(k):
            cols.append(xp[:, kh:kh + stride * Ho:stride, kw:kw + stride * Wo:stride, :])
    a = jnp.stack(cols, axis=3)                                    # (N, Ho, Wo, k*k, C)
    return a.reshape(N * Ho * Wo, k * k * C), Ho, Wo


@functools.partial(jax.jit, static_argnames=("stride", "pad", "act"))
def conv2d_nhwc(x, w, scale, bias, *, stride, pad, act):
    """x: (N,H,W,Cin) NHWC; w: (Cout,Cin,k,k) (PyTorch Conv2d layout)."""
    Cout, Cin, k, _ = w.shape
    N = x.shape[0]
    a, Ho, Wo = _im2col_nhwc(x, k, stride, pad)
    b = jnp.transpose(w, (2, 3, 1, 0)).reshape(k * k * Cin, Cout)  # K order = (kh, kw, ci)
    b = b * scale[None, :]                                         # fold BN scale into weights
    y = gemm_bias_act(a[None], b[None], bias, act=act)[0]          # (N*Ho*Wo, Cout) bf16
    return y.reshape(N, Ho, Wo, Cout)


# ----------------------------------------------------------------------------
# ConvTranspose2d (k=4, s=2, p=1) as 4 stride-1 sub-kernel GEMMs + pixel shuffle.
# Output row (2a + p) reads padded input rows (a + p + d), d in {0,1}, with
# kernel taps _TAPS[p][d]; same decomposition along columns.
# ----------------------------------------------------------------------------
_TAPS = ((3, 1), (2, 0))


@functools.partial(jax.jit, static_argnames=("act",))
def conv_transpose2d_nhwc(x, w, scale, bias, *, act):
    """All 4 output parities batched into one pallas_call (leading parallel axis).

    x: (N,H,W,Cin) NHWC; w: (Cin,Cout,4,4) (PyTorch ConvTranspose2d layout)."""
    N, H, W, Cin = x.shape
    _, Cout, k, _ = w.shape
    assert k == 4
    xp = jnp.pad(x, ((0, 0), (1, 1), (1, 1), (0, 0)))
    wf = w.astype(jnp.float32) * scale[None, :, None, None]        # fold BN scale

    a_list, b_list = [], []
    for py in (0, 1):
        for px in (0, 1):
            cols, taps = [], []
            for dy in (0, 1):
                for dx in (0, 1):
                    cols.append(xp[:, py + dy:py + dy + H, px + dx:px + dx + W, :])
                    taps.append((_TAPS[py][dy], _TAPS[px][dx]))
            a_list.append(jnp.stack(cols, axis=3).reshape(N * H * W, 4 * Cin))
            b_list.append(jnp.stack([wf[:, :, ky, kx] for ky, kx in taps],
                                    axis=0).reshape(4 * Cin, Cout))
    a = jnp.stack(a_list, axis=0)                                  # (4, M, 4*Cin)
    b = jnp.stack(b_list, axis=0)                                  # (4, 4*Cin, Cout)
    y = gemm_bias_act(a, b, bias, act=act)                         # (4, M, Cout)
    y = y.reshape(2, 2, N, H, W, Cout)                             # (py, px, N, H, W, C)
    return jnp.transpose(y, (2, 3, 0, 4, 1, 5)).reshape(N, 2 * H, 2 * W, Cout)


@functools.partial(jax.jit, static_argnames=("act",))
def conv_transpose2d_fused_n_nhwc(x, w, scale, bias, *, act):
    """Final layer (tiny Cout): fuse the 4 parities along N with a shared 9-tap A.

    One GEMM: A (M, 9*Cin), block-structured B (9*Cin, 4*Cout), then pixel-shuffle
    the 4*Cout output columns. Avoids padding Cout=3 up to 128 four times."""
    N, H, W, Cin = x.shape
    _, Cout, k, _ = w.shape
    assert k == 4
    xp = jnp.pad(x, ((0, 0), (1, 1), (1, 1), (0, 0)))
    wf = w.astype(jnp.float32) * scale[None, :, None, None]

    cols = [xp[:, ry:ry + H, rx:rx + W, :] for ry in range(3) for rx in range(3)]
    a = jnp.stack(cols, axis=3).reshape(N * H * W, 9 * Cin)        # K order = (ry, rx, ci)

    b = jnp.zeros((3, 3, Cin, 2, 2, Cout), jnp.float32)
    for py in (0, 1):
        for dy in (0, 1):
            ry, ky = py + dy, _TAPS[py][dy]
            for px in (0, 1):
                for dx in (0, 1):
                    rx, kx = px + dx, _TAPS[px][dx]
                    b = b.at[ry, rx, :, py, px, :].set(wf[:, :, ky, kx])
    b = b.reshape(9 * Cin, 4 * Cout)
    bias4 = jnp.tile(bias.astype(jnp.float32), 4)                  # column order = (py, px, co)

    y = gemm_bias_act(a[None], b[None], bias4, act=act)[0]         # (M, 4*Cout)
    y = y.reshape(N, H, W, 2, 2, Cout)
    return jnp.transpose(y, (0, 1, 3, 2, 4, 5)).reshape(N, 2 * H, 2 * W, Cout)


# ----------------------------------------------------------------------------
# Bilinear resize (F.interpolate, mode='bilinear', align_corners=False) — bf16 glue
# ----------------------------------------------------------------------------
@functools.partial(jax.jit, static_argnames=("out_h", "out_w"))
def resize_bilinear_nhwc(x, *, out_h, out_w):
    N, H, W, C = x.shape
    if (H, W) == (out_h, out_w):
        return x

    def idx(out, inp):
        o = jnp.arange(out, dtype=jnp.float32)
        src = jnp.maximum((o + 0.5) * (inp / out) - 0.5, 0.0)
        lo = jnp.minimum(jnp.floor(src).astype(jnp.int32), inp - 1)
        hi = jnp.minimum(lo + 1, inp - 1)
        return lo, hi, (src - lo.astype(jnp.float32)).astype(x.dtype)

    lh, hh, fh = idx(out_h, H)
    lw, hw, fw = idx(out_w, W)
    one = jnp.ones((), x.dtype)
    top, bot = jnp.take(x, lh, axis=1), jnp.take(x, hh, axis=1)
    tl, tr = jnp.take(top, lw, axis=2), jnp.take(top, hw, axis=2)
    bl, br = jnp.take(bot, lw, axis=2), jnp.take(bot, hw, axis=2)
    fw_ = fw.reshape(1, 1, out_w, 1)
    fh_ = fh.reshape(1, out_h, 1, 1)
    t = tl * (one - fw_) + tr * fw_
    bm = bl * (one - fw_) + br * fw_
    return t * (one - fh_) + bm * fh_


# ----------------------------------------------------------------------------
# Deterministic parameter construction (matches UNetGenerator.__init__ shapes)
# ----------------------------------------------------------------------------
_BN_EPS = 1e-5


def _bn_affine(key, c):
    kg, kb = jax.random.split(key)
    gamma = 1.0 + 0.02 * jax.random.normal(kg, (c,), jnp.float32)
    beta = 0.02 * jax.random.normal(kb, (c,), jnp.float32)
    # eval-mode BN with fresh running stats: mean=0, var=1
    scale = gamma / jnp.sqrt(1.0 + _BN_EPS)
    return scale, beta


def _down_params(key, cin, cout, k=4, batch_norm=True):
    kw, kbn = jax.random.split(key)
    w = 0.02 * jax.random.normal(kw, (cout, cin, k, k), jnp.float32)
    if batch_norm:
        scale, bias = _bn_affine(kbn, cout)
    else:
        scale, bias = jnp.ones((cout,), jnp.float32), jnp.zeros((cout,), jnp.float32)
    return {"w": w, "scale": scale, "bias": bias}


def _up_params(key, cin, cout, k=4):
    kw, kbn = jax.random.split(key)
    w = 0.02 * jax.random.normal(kw, (cin, cout, k, k), jnp.float32)
    scale, bias = _bn_affine(kbn, cout)
    return {"w": w, "scale": scale, "bias": bias}


def init_unet_params(key):
    keys = jax.random.split(key, 17)
    p = {}
    p["enc1"] = _down_params(keys[0], 1, 64, batch_norm=False)
    p["enc2"] = _down_params(keys[1], 64, 128)
    p["enc3"] = _down_params(keys[2], 128, 256)
    p["enc4"] = _down_params(keys[3], 256, 512)
    p["enc5"] = _down_params(keys[4], 512, 512)
    p["enc6"] = _down_params(keys[5], 512, 512)
    p["enc7"] = _down_params(keys[6], 512, 512)
    p["bottleneck"] = _down_params(keys[7], 512, 512, k=3, batch_norm=False)
    p["dec1"] = _up_params(keys[8], 512, 512)
    p["dec2"] = _up_params(keys[9], 1024, 512)
    p["dec3"] = _up_params(keys[10], 1024, 512)
    p["dec4"] = _up_params(keys[11], 1024, 512)
    p["dec5"] = _up_params(keys[12], 1024, 256)
    p["dec6"] = _up_params(keys[13], 512, 128)
    p["dec7"] = _up_params(keys[14], 256, 64)
    wf = 0.02 * jax.random.normal(keys[15], (128, 3, 4, 4), jnp.float32)
    bf = 0.02 * jax.random.normal(keys[16], (3,), jnp.float32)  # final has bias=True
    p["final"] = {"w": wf, "scale": jnp.ones((3,), jnp.float32), "bias": bf}
    return p


# ----------------------------------------------------------------------------
# Forward pass (mirrors UNetGenerator.forward)
# ----------------------------------------------------------------------------
def unet_forward(p, x_nchw):
    x = jnp.transpose(x_nchw, (0, 2, 3, 1)).astype(jnp.bfloat16)   # NHWC

    def down(inp, lp, act="leaky_relu", stride=2, pad=1):
        return conv2d_nhwc(inp, lp["w"], lp["scale"], lp["bias"],
                           stride=stride, pad=pad, act=act)

    def up(inp, lp, act="relu"):
        # Dropout is identity in eval mode.
        return conv_transpose2d_nhwc(inp, lp["w"], lp["scale"], lp["bias"], act=act)

    def skip(enc, dec):
        return resize_bilinear_nhwc(enc, out_h=dec.shape[1], out_w=dec.shape[2])

    e1 = down(x, p["enc1"])
    e2 = down(e1, p["enc2"])
    e3 = down(e2, p["enc3"])
    e4 = down(e3, p["enc4"])
    e5 = down(e4, p["enc5"])
    e6 = down(e5, p["enc6"])
    e7 = down(e6, p["enc7"])
    b = down(e7, p["bottleneck"], act="relu")
    d1 = up(b, p["dec1"])
    d2 = up(jnp.concatenate([d1, skip(e7, d1)], axis=-1), p["dec2"])
    d3 = up(jnp.concatenate([d2, skip(e6, d2)], axis=-1), p["dec3"])
    d4 = up(jnp.concatenate([d3, skip(e5, d3)], axis=-1), p["dec4"])
    d5 = up(jnp.concatenate([d4, skip(e4, d4)], axis=-1), p["dec5"])
    d6 = up(jnp.concatenate([d5, skip(e3, d5)], axis=-1), p["dec6"])
    d7 = up(jnp.concatenate([d6, skip(e2, d6)], axis=-1), p["dec7"])
    out = conv_transpose2d_fused_n_nhwc(
        jnp.concatenate([d7, skip(e1, d7)], axis=-1),
        p["final"]["w"], p["final"]["scale"], p["final"]["bias"], act="tanh")
    return jnp.transpose(out, (0, 3, 1, 2)).astype(jnp.float32)    # back to NCHW


# ----------------------------------------------------------------------------
if __name__ == "__main__":
    key = jax.random.PRNGKey(0)
    kp, kx = jax.random.split(key)
    params = init_unet_params(kp)
    # The 7 stride-2 encoders + stride-2 bottleneck require spatial >= 128.
    x = jax.random.normal(kx, (1, 1, 128, 128), jnp.float32)

    y = unet_forward(params, x)
    y = jax.block_until_ready(y)

    assert y.shape == (1, 3, 256, 256), y.shape
    assert bool(jnp.all(jnp.isfinite(y)))
    print("KERNEL_OK")
</pallas_src>

<mosaic_0001>
module attributes {stable_mosaic.version = 11 : i64} {
  func.func @_gemm_bias_act_kernel(%arg0: i32, %arg1: i32, %arg2: i32, %arg3: i32, %arg4: memref<1x2048x128xbf16, #tpu.memory_space<vmem>>, %arg5: memref<1x128x128xbf16, #tpu.memory_space<vmem>>, %arg6: memref<1x128xf32, #tpu.memory_space<vmem>>, %arg7: memref<1x2048x128xbf16, #tpu.memory_space<vmem>>, %arg8: memref<2048x128xf32, #tpu.memory_space<vmem>>) attributes {dimension_semantics = [#tpu.dimension_semantics<parallel>, #tpu.dimension_semantics<parallel>, #tpu.dimension_semantics<parallel>, #tpu.dimension_semantics<arbitrary>], iteration_bounds = array<i64: 1, 2, 1, 1>, scalar_prefetch = 0 : i64, scratch_operands = 1 : i64, tpu.core_type = #tpu.core_type<tc>, window_params = [{transform_indices = @transform_0, window_bounds = array<i64: 1, 2048, 128>}, {transform_indices = @transform_1, window_bounds = array<i64: 1, 128, 128>}, {transform_indices = @transform_2, window_bounds = array<i64: 1, 128>}, {transform_indices = @transform_3, window_bounds = array<i64: 1, 2048, 128>}]} {
    %c0 = arith.constant 0 : index
    %c0_0 = arith.constant 0 : index
    %c0_1 = arith.constant 0 : index
    %0 = vector.load %arg4[%c0, %c0_0, %c0_1] : memref<1x2048x128xbf16, #tpu.memory_space<vmem>>, vector<1x2048x128xbf16>
    %1 = vector.shape_cast %0 : vector<1x2048x128xbf16> to vector<2048x128xbf16>
    %c0_2 = arith.constant 0 : index
    %c0_3 = arith.constant 0 : index
    %c0_4 = arith.constant 0 : index
    %2 = vector.load %arg5[%c0_2, %c0_3, %c0_4] : memref<1x128x128xbf16, #tpu.memory_space<vmem>>, vector<1x128x128xbf16>
    %3 = vector.shape_cast %2 : vector<1x128x128xbf16> to vector<128x128xbf16>
    %cst = arith.constant dense<0.000000e+00> : vector<2048x128xf32>
    %4 = tpu.matmul %1, %3, %cst {dimension_numbers = #tpu.dot_dimension_numbers<[1], [0], [0], [1], [0, 0, 1, 1], [], []>} : vector<2048x128xbf16>, vector<128x128xbf16>, vector<2048x128xf32> -> vector<2048x128xf32>
    %c0_i32 = arith.constant 0 : i32
    %5 = arith.cmpi eq, %arg3, %c0_i32 : i32
    %6 = arith.extui %5 : i1 to i32
    %c0_i32_5 = arith.constant 0 : i32
    %7 = arith.cmpi ne, %6, %c0_i32_5 : i32
    scf.if %7 {
      %c0_10 = arith.constant 0 : index
      %c0_11 = arith.constant 0 : index
      %14 = vector.load %arg8[%c0_10, %c0_11] : memref<2048x128xf32, #tpu.memory_space<vmem>>, vector<2048x128xf32>
      tpu.vector_store %arg8[%c0_10, %c0_11], %4 {strides = array<i32>} : memref<2048x128xf32, #tpu.memory_space<vmem>>, vector<2048x128xf32>,
    } else {
    }
    %c0_i32_6 = arith.constant 0 : i32
    %8 = arith.cmpi sgt, %arg3, %c0_i32_6 : i32
    %9 = arith.extui %8 : i1 to i32
    %c0_i32_7 = arith.constant 0 : i32
    %10 = arith.cmpi ne, %9, %c0_i32_7 : i32
    scf.if %10 {
      %c0_10 = arith.constant 0 : index
      %c0_11 = arith.constant 0 : index
      %14 = vector.load %arg8[%c0_10, %c0_11] : memref<2048x128xf32, #tpu.memory_space<vmem>>, vector<2048x128xf32>
      %15 = arith.addf %14, %4 : vector<2048x128xf32>
      %c0_12 = arith.constant 0 : index
      %c0_13 = arith.constant 0 : index
      %16 = vector.load %arg8[%c0_12, %c0_13] : memref<2048x128xf32, #tpu.memory_space<vmem>>, vector<2048x128xf32>
      tpu.vector_store %arg8[%c0_12, %c0_13], %15 {strides = array<i32>} : memref<2048x128xf32, #tpu.memory_space<vmem>>, vector<2048x128xf32>,
    } else {
    }
    %c0_i32_8 = arith.constant 0 : i32
    %11 = arith.cmpi eq, %arg3, %c0_i32_8 : i32
    %12 = arith.extui %11 : i1 to i32
    %c0_i32_9 = arith.constant 0 : i32
    %13 = arith.cmpi ne, %12, %c0_i32_9 : i32
    scf.if %13 {
      %c0_10 = arith.constant 0 : index
      %c0_11 = arith.constant 0 : index
      %14 = vector.load %arg8[%c0_10, %c0_11] : memref<2048x128xf32, #tpu.memory_space<vmem>>, vector<2048x128xf32>
      %c0_12 = arith.constant 0 : index
      %c0_13 = arith.constant 0 : index
      %15 = vector.load %arg6[%c0_12, %c0_13] : memref<1x128xf32, #tpu.memory_space<vmem>>, vector<1x128xf32>
      %16 = vector.broadcast %15 : vector<1x128xf32> to vector<2048x128xf32>
      %17 = arith.addf %14, %16 : vector<2048x128xf32>
      %cst_14 = arith.constant 0.000000e+00 : f32
      %18 = vector.broadcast %cst_14 : f32 to vector<2048x128xf32>
      %19 = arith.cmpf oge, %17, %18 : vector<2048x128xf32>
      %cst_15 = arith.constant 2.000000e-01 : f32
      %20 = vector.broadcast %cst_15 : f32 to vector<2048x128xf32>
      %21 = arith.mulf %20, %17 : vector<2048x128xf32>
      %22 = arith.select %19, %17, %21 : vector<2048x128xi1>, vector<2048x128xf32>
      %23 = arith.truncf %22 : vector<2048x128xf32> to vector<2048x128xbf16>
      %c0_16 = arith.constant 0 : index
      %c0_17 = arith.constant 0 : index
      %c0_18 = arith.constant 0 : index
      %24 = vector.load %arg7[%c0_16, %c0_17, %c0_18] : memref<1x2048x128xbf16, #tpu.memory_space<vmem>>, vector<1x2048x128xbf16>
      %25 = vector.shape_cast %24 : vector<1x2048x128xbf16> to vector<2048x128xbf16>
      %26 = vector.shape_cast %23 : vector<2048x128xbf16> to vector<1x2048x128xbf16>
      tpu.vector_store %arg7[%c0_16, %c0_17, %c0_18], %26 {strides = array<i32>} : memref<1x2048x128xbf16, #tpu.memory_space<vmem>>, vector<1x2048x128xbf16>,
    } else {
    }
    return
  }
  func.func @transform_0(%arg0: i32, %arg1: i32, %arg2: i32, %arg3: i32) -> (i32, i32, i32) {
    %c0_i32 = arith.constant 0 : i32
    return %arg0, %arg1, %arg3 : i32, i32, i32
  }
  func.func @transform_1(%arg0: i32, %arg1: i32, %arg2: i32, %arg3: i32) -> (i32, i32, i32) {
    %c0_i32 = arith.constant 0 : i32
    return %arg0, %arg3, %arg2 : i32, i32, i32
  }
  func.func @transform_2(%arg0: i32, %arg1: i32, %arg2: i32, %arg3: i32) -> (i32, i32) {
    %c0_i32 = arith.constant 0 : i32
    %c0_i32_0 = arith.constant 0 : i32
    return %c0_i32, %arg2 : i32, i32
  }
  func.func @transform_3(%arg0: i32, %arg1: i32, %arg2: i32, %arg3: i32) -> (i32, i32, i32) {
    %c0_i32 = arith.constant 0 : i32
    return %arg0, %arg1, %arg2 : i32, i32, i32
  }
}

</mosaic_0001>

<llo_original>
// kernel: conv2d_nhwc.1
$region0: #{conv2d_nhwc.1}
  #allocation0 [shape = 'u32[]', space=smem, size = 0x4, offset = 0x4, fixed_abs, tag = 'smem constant byte address 0x4 - core index']
  #allocation1 [shape = 'u32[144,128]{1,0:T(1,128)}', space=vmem, size = 0x12000, scoped, tag = 'internal scratch']
  #allocation2 [shape = 'f32[2048,128]{1,0:T(8,128)}', space=vmem, size = 0x100000, scoped, tag = 'scratch operand']
  %s0 = inlined_call_operand.vmem [shape: bf16[1,4096,128], index: 0, kind: input, shape index: {}]
  %s1 = inlined_call_operand.vmem [shape: bf16[1,128,128], index: 1, kind: input, shape index: {}]
  %s2 = inlined_call_operand.vmem [shape: f32[1,128], index: 2, kind: input, shape index: {}]
  %s3 = inlined_call_operand.hbm [shape: bf16[1,4096,128], index: 3, kind: output, shape index: {}]
  %s4 = sld [smem:[#allocation0]]
  $region57: #{conv2d_nhwc.1} parent=0
    _
  %s6 = ssub.s32 1, %s4
  %s7 = scalar_select 0, %s6, %s4
  $region1: #{conv2d_nhwc.1} parent=0
    #allocation3 [shape = 'u8[1048576]{0}', space=vmem, size = 0x100000, scoped, tag = 'output window, operand 0']
    #allocation4 [shape = 's32[2]{0}', space=sflag, size = 0x8, scoped, tag = 'scoped memory for conv2d_nhwc.1']
    %8 = vsyncpa [#allocation4], 0
    %s9 = scalar_lea.sflag [#allocation4], 1
    %10 = vsyncpa %s9, 0
    loop: start=0, step=1, limit=4
    $region2: #{conv2d_nhwc.1} parent=1 // loop_pre_header
      _
    $region3: #{conv2d_nhwc.1} parent=1 // loop_header
      %s12 = sphi 0, %s16
      %p13 = scmp.ge.s32.totalorder %s12, 4
      %s19 = sphi 0, %s45
      %s20 = sphi 0, %s41
      %s21 = sphi 0, %s37
      %s22 = sphi 0, %s33
      %s23 = sphi 0, %s19
      %s24 = sphi 0, %s20
      %s25 = sphi 0, %s21
      %s26 = sphi 0, %s22
      %s27 = sphi 0, %s23
      %s28 = sphi 0, %s24
      %s29 = sphi 0, %s25
      %s30 = sphi 0, %s26
      %s52 = sphi 0, %s54
      %s55 = sphi 0, %s52
      %s56 = sphi 0, %s55
      %s72 = sphi 0, %s56
      %s82 = sphi 0, %s84
      %s85 = sphi 0, %s82
      %s86 = sphi 0, %s85
      %s102 = sphi 0, %s86
      %s108 = sphi 0, %s110
      %s111 = sphi 0, %s108
      %s112 = sphi 0, %s111
      %s128 = sphi 0, %s112
      %s138 = sphi 0, %s140
      %s141 = sphi 0, %s138
      %s142 = sphi 0, %s141
      %s158 = sphi 0, %s142
    $region4: #{conv2d_nhwc.1} parent=1 // loop_header_branch
      %15 = sbr.rel (%p13) target = $region8
    $region5: #{conv2d_nhwc.1} parent=1 // loop_body
      %s17 = ssub.s32 %s12, 1
      %s18 = ssub.s32 %s12, 2
      %s31 = sadd.s32 1, %s22
      %p32 = scmp.ge.s32.totalorder %s31, 1
      %s33 = scalar_select %p32, 0, %s31
      %s34 = sadd.s32 1, %s21
      %s35 = scalar_select %p32, %s34, %s21
      %p36 = scmp.ge.s32.totalorder %s35, 1
      %s37 = scalar_select %p36, 0, %s35
      %s38 = sadd.s32 1, %s20
      %s39 = scalar_select %p36, %s38, %s20
      %p40 = scmp.ge.s32.totalorder %s39, 2
      %s41 = scalar_select %p40, 0, %s39
      %s42 = sadd.s32 1, %s19
      %s43 = scalar_select %p40, %s42, %s19
      %p44 = scmp.ge.s32.totalorder %s43, 1
      %s45 = scalar_select %p44, 0, %s43
      %s46 = ssub.s32 %s19, %s45
      %s47 = ssub.s32 %s20, %s41
      %s48 = sor.u32 %s46, %s47
      %s49 = ssub.s32 %s22, %s33
      %s50 = sor.u32 %s48, %s49
      %p51 = scmp.eq.s32.totalorder %s50, 0
      %s53 = sadd.s32 %s52, 1
      %s54 = scalar_select %p51, %s52, %s53
      %p57 = pneg %p51
      %p58 = scmp.eq.s32.totalorder %s12, 1
      %p59 = por %p57, %p58
      %p60 = scmp.ne.s32.totalorder %s52, %s55
      %p61 = scmp.eq.s32.totalorder %s12, 0
      %p62 = por %p60, %p61
      %p63 = scmp.ne.s32.totalorder %s52, %s55
      %p64 = scmp.eq.s32.totalorder %s17, 1
      %p65 = por %p63, %p64
      %p66 = scmp.ne.s32.totalorder %s55, %s56
      %p67 = scmp.eq.s32.totalorder %s17, 0
      %p68 = por %p66, %p67
      %p69 = scmp.ne.s32.totalorder %s55, %s56
      %p70 = scmp.eq.s32.totalorder %s18, 1
      %p71 = por %p69, %p70
      %p73 = scmp.ne.s32.totalorder %s56, %s72
      %p74 = scmp.eq.s32.totalorder %s18, 0
      %p75 = por %p73, %p74
      %s76 = ssub.s32 %s19, %s45
      %s77 = ssub.s32 %s22, %s33
      %s78 = sor.u32 %s76, %s77
      %s79 = ssub.s32 %s21, %s37
      %s80 = sor.u32 %s78, %s79
      %p81 = scmp.eq.s32.totalorder %s80, 0
      %s83 = sadd.s32 %s82, 1
      %s84 = scalar_select %p81, %s82, %s83
      %p87 = pneg %p81
      %p88 = scmp.eq.s32.totalorder %s12, 1
      %p89 = por %p87, %p88
      %p90 = scmp.ne.s32.totalorder %s82, %s85
      %p91 = scmp.eq.s32.totalorder %s12, 0
      %p92 = por %p90, %p91
      %p93 = scmp.ne.s32.totalorder %s82, %s85
      %p94 = scmp.eq.s32.totalorder %s17, 1
      %p95 = por %p93, %p94
      %p96 = scmp.ne.s32.totalorder %s85, %s86
      %p97 = scmp.eq.s32.totalorder %s17, 0
      %p98 = por %p96, %p97
      %p99 = scmp.ne.s32.totalorder %s85, %s86
      %p100 = scmp.eq.s32.totalorder %s18, 1
      %p101 = por %p99, %p100
      %p103 = scmp.ne.s32.totalorder %s86, %s102
      %p104 = scmp.eq.s32.totalorder %s18, 0
      %p105 = por %p103, %p104
      %s106 = ssub.s32 %s21, %s37
      %p107 = scmp.eq.s32.totalorder %s106, 0
      %s109 = sadd.s32 %s108, 1
      %s110 = scalar_select %p107, %s108, %s109
      %p113 = pneg %p107
      %p114 = scmp.eq.s32.totalorder %s12, 1
      %p115 = por %p113, %p114
      %p116 = scmp.ne.s32.totalorder %s108, %s111
      %p117 = scmp.eq.s32.totalorder %s12, 0
      %p118 = por %p116, %p117
      %p119 = scmp.ne.s32.totalorder %s108, %s111
      %p120 = scmp.eq.s32.totalorder %s17, 1
      %p121 = por %p119, %p120
      %p122 = scmp.ne.s32.totalorder %s111, %s112
      %p123 = scmp.eq.s32.totalorder %s17, 0
      %p124 = por %p122, %p123
      %p125 = scmp.ne.s32.totalorder %s111, %s112
      %p126 = scmp.eq.s32.totalorder %s18, 1
      %p127 = por %p125, %p126
      %p129 = scmp.ne.s32.totalorder %s112, %s128
      %p130 = scmp.eq.s32.totalorder %s18, 0
      %p131 = por %p129, %p130
      %s132 = ssub.s32 %s19, %s45
      %s133 = ssub.s32 %s20, %s41
      %s134 = sor.u32 %s132, %s133
      %s135 = ssub.s32 %s21, %s37
      %s136 = sor.u32 %s134, %s135
      %p137 = scmp.eq.s32.totalorder %s136, 0
      %s139 = sadd.s32 %s138, 1
      %s140 = scalar_select %p137, %s138, %s139
      %p143 = pneg %p137
      %p144 = scmp.eq.s32.totalorder %s12, 1
      %p145 = por %p143, %p144
      %p146 = scmp.ne.s32.totalorder %s138, %s141
      %p147 = scmp.eq.s32.totalorder %s12, 0
      %p148 = por %p146, %p147
      %p149 = scmp.ne.s32.totalorder %s138, %s141
      %p150 = scmp.eq.s32.totalorder %s17, 1
      %p151 = por %p149, %p150
      %p152 = scmp.ne.s32.totalorder %s141, %s142
      %p153 = scmp.eq.s32.totalorder %s17, 0
      %p154 = por %p152, %p153
      %p155 = scmp.ne.s32.totalorder %s141, %s142
      %p156 = scmp.eq.s32.totalorder %s18, 1
      %p157 = por %p155, %p156
      %p159 = scmp.ne.s32.totalorder %s142, %s158
      %p160 = scmp.eq.s32.totalorder %s18, 0
      %p161 = por %p159, %p160
      %p162 = scmp.le.s32.totalorder 1, %s12
      %p163 = scmp.lt.s32.totalorder %s12, 3
      %p164 = pnand %p162, %p163
      %p165 = pneg %p164
      // Predicated region
      $region9: #{conv2d_nhwc.1} parent=5 // pred_check
        _
      $region10: #{conv2d_nhwc.1} parent=5 // pred_check_branch
        %167 = sbr.rel (%p164) target = $region12
      $region11: #{conv2d_nhwc.1} parent=5 // pred_region
        %s168 = ssub.s32 %s12, 1
        // Predicated region
        $region13: #{conv2d_nhwc.1} parent=11 // pred_check
          %p169 = pneg %p98
        $region14: #{conv2d_nhwc.1} parent=11 // pred_check_branch
          %171 = sbr.rel (%p169) target = $region16
        $region15: #{conv2d_nhwc.1} parent=11 // pred_region
          %s172 = smul.u32 16, %s26
          %p173 = scmp.lt.s32.totalorder %s23, 0
          %s174 = scalar_select %p173, %s23, 0
          %p175 = scmp.lt.s32.totalorder %s172, 15
          %s176 = scalar_select %p175, %s172, 15
          %p177 = scmp.lt.s32.totalorder %s25, 0
          %s178 = scalar_select %p177, %s25, 0
          %s179 = sadd.s32 %s178, %s176
          %s180 = smul.addr %s174, 16
          %s181 = sadd.s32 %s179, %s180
          %s182 = smul.addr %s181, 4
          %s183 = scalar_lea.vmem %s1, %s182
          %s184 = smul.u32 16, %s26
        $region16: #{conv2d_nhwc.1} parent=11 // pred_fallthru
          _
        // Predicated region
        $region17: #{conv2d_nhwc.1} parent=11 // pred_check
          %p185 = pneg %p124
        $region18: #{conv2d_nhwc.1} parent=11 // pred_check_branch
          %187 = sbr.rel (%p185) target = $region20
        $region19: #{conv2d_nhwc.1} parent=11 // pred_region
          %p188 = scmp.lt.s32.totalorder %s25, 0
          %s189 = scalar_select %p188, %s25, 0
          %s190 = scalar_lea.vmem %s2, %s189
        $region20: #{conv2d_nhwc.1} parent=11 // pred_fallthru
          _
      $region12: #{conv2d_nhwc.1} parent=5 // pred_fallthru
        _
      %p191 = scmp.lt.s32.totalorder %s12, 2
      // Predicated region
      $region21: #{conv2d_nhwc.1} parent=5 // pred_check
        %p192 = pneg %p191
      $region22: #{conv2d_nhwc.1} parent=5 // pred_check_branch
        %194 = sbr.rel (%p192) target = $region24
      $region23: #{conv2d_nhwc.1} parent=5 // pred_region
        // Predicated region
        $region25: #{conv2d_nhwc.1} parent=23 // pred_check
          %p195 = pneg %p62
        $region26: #{conv2d_nhwc.1} parent=23 // pred_check_branch
          %197 = sbr.rel (%p195) target = $region28
        $region27: #{conv2d_nhwc.1} parent=23 // pred_region
          %s198 = smul.u32 256, %s20
          %p199 = scmp.lt.s32.totalorder %s19, 0
          %s200 = scalar_select %p199, %s19, 0
          %p201 = scmp.lt.s32.totalorder %s198, 511
          %s202 = scalar_select %p201, %s198, 511
          %p203 = scmp.lt.s32.totalorder %s22, 0
          %s204 = scalar_select %p203, %s22, 0
          %s205 = sadd.s32 %s204, %s202
          %s206 = smul.addr %s200, 512
          %s207 = sadd.s32 %s205, %s206
          %s208 = smul.addr %s207, 4
          %s209 = scalar_lea.vmem %s0, %s208
          %s210 = smul.u32 256, %s20
        $region28: #{conv2d_nhwc.1} parent=23 // pred_fallthru
          _
      $region24: #{conv2d_nhwc.1} parent=5 // pred_fallthru
        _
      %p211 = scmp.le.s32.totalorder 1, %s12
      %p212 = scmp.lt.s32.totalorder %s12, 3
      %p213 = pnand %p211, %p212
      %p214 = pneg %p213
      // Predicated region
      $region29: #{conv2d_nhwc.1} parent=5 // pred_check
        _
      $region30: #{conv2d_nhwc.1} parent=5 // pred_check_branch
        %216 = sbr.rel (%p213) target = $region32
      $region31: #{conv2d_nhwc.1} parent=5 // pred_region
        %s217 = ssub.s32 %s12, 1
        %s218 = smul.u32 256, %s24
        %p219 = scmp.lt.s32.totalorder %s23, 0
        %s220 = scalar_select %p219, %s23, 0
        %p221 = scmp.lt.s32.totalorder %s218, 511
        %s222 = scalar_select %p221, %s218, 511
        %p223 = scmp.lt.s32.totalorder %s26, 0
        %s224 = scalar_select %p223, %s26, 0
        %s225 = sadd.s32 %s224, %s222
        %s226 = smul.addr %s220, 512
        %s227 = sadd.s32 %s225, %s226
        %s228 = smul.addr %s227, 4
        %s229 = scalar_lea.vmem %s0, %s228
        %p230 = pneg %p68
        %p231 = pneg %p65
        %s232 = smul.u32 16, %s26
        %p233 = scmp.lt.s32.totalorder %s23, 0
        %s234 = scalar_select %p233, %s23, 0
        %p235 = scmp.lt.s32.totalorder %s232, 15
        %s236 = scalar_select %p235, %s232, 15
        %p237 = scmp.lt.s32.totalorder %s25, 0
        %s238 = scalar_select %p237, %s25, 0
        %s239 = sadd.s32 %s238, %s236
        %s240 = smul.addr %s234, 16
        %s241 = sadd.s32 %s239, %s240
        %s242 = smul.addr %s241, 4
        %s243 = scalar_lea.vmem %s1, %s242
        %p244 = pneg %p98
        %p245 = pneg %p95
        %p246 = scmp.lt.s32.totalorder %s25, 0
        %s247 = scalar_select %p246, %s25, 0
        %s248 = scalar_lea.vmem %s2, %s247
        %p249 = pneg %p124
        %p250 = pneg %p121
        %p251 = pneg %p154
        %p252 = pneg %p151
        %s253 = sand.u32 %s141, 1
        %s254 = scalar_lea.sflag [#allocation4], %s253
        %s255 = sand.u32 %s141, 1
        %s256 = smul.addr %s255, 1024
        %s257 = scalar_lea.vmem [#allocation3], %s256
        %s258 = smul.u32 256, %s24
        %p259 = scmp.lt.s32.totalorder %s23, 0
        %s260 = scalar_select %p259, %s23, 0
        %p261 = scmp.lt.s32.totalorder %s258, 511
        %s262 = scalar_select %p261, %s258, 511
        %p263 = scmp.lt.s32.totalorder %s26, 0
        %s264 = scalar_select %p263, %s26, 0
        %s265 = sadd.s32 %s264, %s262
        %s266 = smul.addr %s260, 512
        %s267 = sadd.s32 %s265, %s266
        %s268 = smul.addr %s267, 4
        %s269 = scalar_lea.vmem %s0, %s268
        %s270 = smul.u32 256, %s24
        %s271 = smul.u32 16, %s26
        %p272 = scmp.lt.s32.totalorder %s23, 0
        %s273 = scalar_select %p272, %s23, 0
        %p274 = scmp.lt.s32.totalorder %s271, 15
        %s275 = scalar_select %p274, %s271, 15
        %p276 = scmp.lt.s32.totalorder %s25, 0
        %s277 = scalar_select %p276, %s25, 0
        %s278 = sadd.s32 %s277, %s275
        %s279 = smul.addr %s273, 16
        %s280 = sadd.s32 %s278, %s279
        %s281 = smul.addr %s280, 4
        %s282 = scalar_lea.vmem %s1, %s281
        %s283 = smul.u32 16, %s26
        %p284 = scmp.lt.s32.totalorder %s25, 0
        %s285 = scalar_select %p284, %s25, 0
        %s286 = scalar_lea.vmem %s2, %s285
        %s287 = smul.u32 256, %s24
        %v289 = vld [vmem:[%s269] sm:$0xf]
        %v290 = vld [vmem:[%s269 + $0x4] sm:$0xf]
        %v291 = vld [vmem:[%s269 + $0x8] sm:$0xf]
        %v292 = vld [vmem:[%s269 + $0xc] sm:$0xf]
        %v293 = vld [vmem:[%s269 + $0x10] sm:$0xf]
        %v294 = vld [vmem:[%s269 + $0x14] sm:$0xf]
        %v295 = vld [vmem:[%s269 + $0x18] sm:$0xf]
        %v296 = vld [vmem:[%s269 + $0x1c] sm:$0xf]
        %v297 = vld [vmem:[%s269 + $0x20] sm:$0xf]
        %v298 = vld [vmem:[%s269 + $0x24] sm:$0xf]
        %v299 = vld [vmem:[%s269 + $0x28] sm:$0xf]
        %v300 = vld [vmem:[%s269 + $0x2c] sm:$0xf]
        %v301 = vld [vmem:[%s269 + $0x30] sm:$0xf]
        %v302 = vld [vmem:[%s269 + $0x34] sm:$0xf]
        %v303 = vld [vmem:[%s269 + $0x38] sm:$0xf]
        %v304 = vld [vmem:[%s269 + $0x3c] sm:$0xf]
        %v305 = vld [vmem:[%s269 + $0x40] sm:$0xf]
        %v306 = vld [vmem:[%s269 + $0x44] sm:$0xf]
        %v307 = vld [vmem:[%s269 + $0x48] sm:$0xf]
        %v308 = vld [vmem:[%s269 + $0x4c] sm:$0xf]
        %v309 = vld [vmem:[%s269 + $0x50] sm:$0xf]
        %v310 = vld [vmem:[%s269 + $0x54] sm:$0xf]
        %v311 = vld [vmem:[%s269 + $0x58] sm:$0xf]
        %v312 = vld [vmem:[%s269 + $0x5c] sm:$0xf]
        %v313 = vld [vmem:[%s269 + $0x60] sm:$0xf]
        %v314 = vld [vmem:[%s269 + $0x64] sm:$0xf]
        %v315 = vld [vmem:[%s269 + $0x68] sm:$0xf]
        %v316 = vld [vmem:[%s269 + $0x6c] sm:$0xf]
        %v317 = vld [vmem:[%s269 + $0x70] sm:$0xf]
        %v318 = vld [vmem:[%s269 + $0x74] sm:$0xf]
        %v319 = vld [vmem:[%s269 + $0x78] sm:$0xf]
        %v320 = vld [vmem:[%s269 + $0x7c] sm:$0xf]
        %v321 = vld [vmem:[%s269 + $0x80] sm:$0xf]
        %v322 = vld [vmem:[%s269 + $0x84] sm:$0xf]
        %v323 = vld [vmem:[%s269 + $0x88] sm:$0xf]
        %v324 = vld [vmem:[%s269 + $0x8c] sm:$0xf]
        %v325 = vld [vmem:[%s269 + $0x90] sm:$0xf]
        %v326 = vld [vmem:[%s269 + $0x94] sm:$0xf]
        %v327 = vld [vmem:[%s269 + $0x98] sm:$0xf]
        %v328 = vld [vmem:[%s269 + $0x9c] sm:$0xf]
        %v329 = vld [vmem:[%s269 + $0xa0] sm:$0xf]
        %v330 = vld [vmem:[%s269 + $0xa4] sm:$0xf]
        %v331 = vld [vmem:[%s269 + $0xa8] sm:$0xf]
        %v332 = vld [vmem:[%s269 + $0xac] sm:$0xf]
        %v333 = vld [vmem:[%s269 + $0xb0] sm:$0xf]
        %v334 = vld [vmem:[%s269 + $0xb4] sm:$0xf]
        %v335 = vld [vmem:[%s269 + $0xb8] sm:$0xf]
        %v336 = vld [vmem:[%s269 + $0xbc] sm:$0xf]
        %v337 = vld [vmem:[%s269 + $0xc0] sm:$0xf]
        %v338 = vld [vmem:[%s269 + $0xc4] sm:$0xf]
        %v339 = vld [vmem:[%s269 + $0xc8] sm:$0xf]
        %v340 = vld [vmem:[%s269 + $0xcc] sm:$0xf]
        %v341 = vld [vmem:[%s269 + $0xd0] sm:$0xf]
        %v342 = vld [vmem:[%s269 + $0xd4] sm:$0xf]
        %v343 = vld [vmem:[%s269 + $0xd8] sm:$0xf]
        %v344 = vld [vmem:[%s269 + $0xdc] sm:$0xf]
        %v345 = vld [vmem:[%s269 + $0xe0] sm:$0xf]
        %v346 = vld [vmem:[%s269 + $0xe4] sm:$0xf]
        %v347 = vld [vmem:[%s269 + $0xe8] sm:$0xf]
        %v348 = vld [vmem:[%s269 + $0xec] sm:$0xf]
        %v349 = vld [vmem:[%s269 + $0xf0] sm:$0xf]
        %v350 = vld [vmem:[%s269 + $0xf4] sm:$0xf]
        %v351 = vld [vmem:[%s269 + $0xf8] sm:$0xf]
        %v352 = vld [vmem:[%s269 + $0xfc] sm:$0xf]
        %v353 = vld [vmem:[%s269 + $0x100] sm:$0xf]
        %v354 = vld [vmem:[%s269 + $0x104] sm:$0xf]
        %v355 = vld [vmem:[%s269 + $0x108] sm:$0xf]
        %v356 = vld [vmem:[%s269 + $0x10c] sm:$0xf]
        %v357 = vld [vmem:[%s269 + $0x110] sm:$0xf]
        %v358 = vld [vmem:[%s269 + $0x114] sm:$0xf]
        %v359 = vld [vmem:[%s269 + $0x118] sm:$0xf]
        %v360 = vld [vmem:[%s269 + $0x11c] sm:$0xf]
        %v361 = vld [vmem:[%s269 + $0x120] sm:$0xf]
        %v362 = vld [vmem:[%s269 + $0x124] sm:$0xf]
        %v363 = vld [vmem:[%s269 + $0x128] sm:$0xf]
        %v364 = vld [vmem:[%s269 + $0x12c] sm:$0xf]
        %v365 = vld [vmem:[%s269 + $0x130] sm:$0xf]
        %v366 = vld [vmem:[%s269 + $0x134] sm:$0xf]
        %v367 = vld [vmem:[%s269 + $0x138] sm:$0xf]
        %v368 = vld [vmem:[%s269 + $0x13c] sm:$0xf]
        %v369 = vld [vmem:[%s269 + $0x140] sm:$0xf]
        %v370 = vld [vmem:[%s269 + $0x144] sm:$0xf]
        %v371 = vld [vmem:[%s269 + $0x148] sm:$0xf]
        %v372 = vld [vmem:[%s269 + $0x14c] sm:$0xf]
        %v373 = vld [vmem:[%s269 + $0x150] sm:$0xf]
        %v374 = vld [vmem:[%s269 + $0x154] sm:$0xf]
        %v375 = vld [vmem:[%s269 + $0x158] sm:$0xf]
        %v376 = vld [vmem:[%s269 + $0x15c] sm:$0xf]
        %v377 = vld [vmem:[%s269 + $0x160] sm:$0xf]
        %v378 = vld [vmem:[%s269 + $0x164] sm:$0xf]
        %v379 = vld [vmem:[%s269 + $0x168] sm:$0xf]
        %v380 = vld [vmem:[%s269 + $0x16c] sm:$0xf]
        %v381 = vld [vmem:[%s269 + $0x170] sm:$0xf]
        %v382 = vld [vmem:[%s269 + $0x174] sm:$0xf]
        %v383 = vld [vmem:[%s269 + $0x178] sm:$0xf]
        %v384 = vld [vmem:[%s269 + $0x17c] sm:$0xf]
        %v385 = vld [vmem:[%s269 + $0x180] sm:$0xf]
        %v386 = vld [vmem:[%s269 + $0x184] sm:$0xf]
        %v387 = vld [vmem:[%s269 + $0x188] sm:$0xf]
        %v388 = vld [vmem:[%s269 + $0x18c] sm:$0xf]
        %v389 = vld [vmem:[%s269 + $0x190] sm:$0xf]
        %v390 = vld [vmem:[%s269 + $0x194] sm:$0xf]
        %v391 = vld [vmem:[%s269 + $0x198] sm:$0xf]
        %v392 = vld [vmem:[%s269 + $0x19c] sm:$0xf]
        %v393 = vld [vmem:[%s269 + $0x1a0] sm:$0xf]
        %v394 = vld [vmem:[%s269 + $0x1a4] sm:$0xf]
        %v395 = vld [vmem:[%s269 + $0x1a8] sm:$0xf]
        %v396 = vld [vmem:[%s269 + $0x1ac] sm:$0xf]
        %v397 = vld [vmem:[%s269 + $0x1b0] sm:$0xf]
        %v398 = vld [vmem:[%s269 + $0x1b4] sm:$0xf]
        %v399 = vld [vmem:[%s269 + $0x1b8] sm:$0xf]
        %v400 = vld [vmem:[%s269 + $0x1bc] sm:$0xf]
        %v401 = vld [vmem:[%s269 + $0x1c0] sm:$0xf]
        %v402 = vld [vmem:[%s269 + $0x1c4] sm:$0xf]
        %v403 = vld [vmem:[%s269 + $0x1c8] sm:$0xf]
        %v404 = vld [vmem:[%s269 + $0x1cc] sm:$0xf]
        %v405 = vld [vmem:[%s269 + $0x1d0] sm:$0xf]
        %v406 = vld [vmem:[%s269 + $0x1d4] sm:$0xf]
        %v407 = vld [vmem:[%s269 + $0x1d8] sm:$0xf]
        %v408 = vld [vmem:[%s269 + $0x1dc] sm:$0xf]
        %v409 = vld [vmem:[%s269 + $0x1e0] sm:$0xf]
        %v410 = vld [vmem:[%s269 + $0x1e4] sm:$0xf]
        %v411 = vld [vmem:[%s269 + $0x1e8] sm:$0xf]
        %v412 = vld [vmem:[%s269 + $0x1ec] sm:$0xf]
        %v413 = vld [vmem:[%s269 + $0x1f0] sm:$0xf]
        %v414 = vld [vmem:[%s269 + $0x1f4] sm:$0xf]
        %v415 = vld [vmem:[%s269 + $0x1f8] sm:$0xf]
        %v416 = vld [vmem:[%s269 + $0x1fc] sm:$0xf]
        %v417 = vld [vmem:[%s269 + $0x200] sm:$0xf]
        %v418 = vld [vmem:[%s269 + $0x204] sm:$0xf]
        %v419 = vld [vmem:[%s269 + $0x208] sm:$0xf]
        %v420 = vld [vmem:[%s269 + $0x20c] sm:$0xf]
        %v421 = vld [vmem:[%s269 + $0x210] sm:$0xf]
        %v422 = vld [vmem:[%s269 + $0x214] sm:$0xf]
        %v423 = vld [vmem:[%s269 + $0x218] sm:$0xf]
        %v424 = vld [vmem:[%s269 + $0x21c] sm:$0xf]
        %v425 = vld [vmem:[%s269 + $0x220] sm:$0xf]
        %v426 = vld [vmem:[%s269 + $0x224] sm:$0xf]
        %v427 = vld [vmem:[%s269 + $0x228] sm:$0xf]
        %v428 = vld [vmem:[%s269 + $0x22c] sm:$0xf]
        %v429 = vld [vmem:[%s269 + $0x230] sm:$0xf]
        %v430 = vld [vmem:[%s269 + $0x234] sm:$0xf]
        %v431 = vld [vmem:[%s269 + $0x238] sm:$0xf]
        %v432 = vld [vmem:[%s269 + $0x23c] sm:$0xf]
        %v433 = vld [vmem:[%s269 + $0x240] sm:$0xf]
        %v434 = vld [vmem:[%s269 + $0x244] sm:$0xf]
        %v435 = vld [vmem:[%s269 + $0x248] sm:$0xf]
        %v436 = vld [vmem:[%s269 + $0x24c] sm:$0xf]
        %v437 = vld [vmem:[%s269 + $0x250] sm:$0xf]
        %v438 = vld [vmem:[%s269 + $0x254] sm:$0xf]
        %v439 = vld [vmem:[%s269 + $0x258] sm:$0xf]
        %v440 = vld [vmem:[%s269 + $0x25c] sm:$0xf]
        %v441 = vld [vmem:[%s269 + $0x260] sm:$0xf]
        %v442 = vld [vmem:[%s269 + $0x264] sm:$0xf]
        %v443 = vld [vmem:[%s269 + $0x268] sm:$0xf]
        %v444 = vld [vmem:[%s269 + $0x26c] sm:$0xf]
        %v445 = vld [vmem:[%s269 + $0x270] sm:$0xf]
        %v446 = vld [vmem:[%s269 + $0x274] sm:$0xf]
        %v447 = vld [vmem:[%s269 + $0x278] sm:$0xf]
        %v448 = vld [vmem:[%s269 + $0x27c] sm:$0xf]
        %v449 = vld [vmem:[%s269 + $0x280] sm:$0xf]
        %v450 = vld [vmem:[%s269 + $0x284] sm:$0xf]
        %v451 = vld [vmem:[%s269 + $0x288] sm:$0xf]
        %v452 = vld [vmem:[%s269 + $0x28c] sm:$0xf]
        %v453 = vld [vmem:[%s269 + $0x290] sm:$0xf]
        %v454 = vld [vmem:[%s269 + $0x294] sm:$0xf]
        %v455 = vld [vmem:[%s269 + $0x298] sm:$0xf]
        %v456 = vld [vmem:[%s269 + $0x29c] sm:$0xf]
        %v457 = vld [vmem:[%s269 + $0x2a0] sm:$0xf]
        %v458 = vld [vmem:[%s269 + $0x2a4] sm:$0xf]
        %v459 = vld [vmem:[%s269 + $0x2a8] sm:$0xf]
        %v460 = vld [vmem:[%s269 + $0x2ac] sm:$0xf]
        %v461 = vld [vmem:[%s269 + $0x2b0] sm:$0xf]
        %v462 = vld [vmem:[%s269 + $0x2b4] sm:$0xf]
        %v463 = vld [vmem:[%s269 + $0x2b8] sm:$0xf]
        %v464 = vld [vmem:[%s269 + $0x2bc] sm:$0xf]
        %v465 = vld [vmem:[%s269 + $0x2c0] sm:$0xf]
        %v466 = vld [vmem:[%s269 + $0x2c4] sm:$0xf]
        %v467 = vld [vmem:[%s269 + $0x2c8] sm:$0xf]
        %v468 = vld [vmem:[%s269 + $0x2cc] sm:$0xf]
        %v469 = vld [vmem:[%s269 + $0x2d0] sm:$0xf]
        %v470 = vld [vmem:[%s269 + $0x2d4] sm:$0xf]
        %v471 = vld [vmem:[%s269 + $0x2d8] sm:$0xf]
        %v472 = vld [vmem:[%s269 + $0x2dc] sm:$0xf]
        %v473 = vld [vmem:[%s269 + $0x2e0] sm:$0xf]
        %v474 = vld [vmem:[%s269 + $0x2e4] sm:$0xf]
        %v475 = vld [vmem:[%s269 + $0x2e8] sm:$0xf]
        %v476 = vld [vmem:[%s269 + $0x2ec] sm:$0xf]
        %v477 = vld [vmem:[%s269 + $0x2f0] sm:$0xf]
        %v478 = vld [vmem:[%s269 + $0x2f4] sm:$0xf]
        %v479 = vld [vmem:[%s269 + $0x2f8] sm:$0xf]
        %v480 = vld [vmem:[%s269 + $0x2fc] sm:$0xf]
        %v481 = vld [vmem:[%s269 + $0x300] sm:$0xf]
        %v482 = vld [vmem:[%s269 + $0x304] sm:$0xf]
        %v483 = vld [vmem:[%s269 + $0x308] sm:$0xf]
        %v484 = vld [vmem:[%s269 + $0x30c] sm:$0xf]
        %v485 = vld [vmem:[%s269 + $0x310] sm:$0xf]
        %v486 = vld [vmem:[%s269 + $0x314] sm:$0xf]
        %v487 = vld [vmem:[%s269 + $0x318] sm:$0xf]
        %v488 = vld [vmem:[%s269 + $0x31c] sm:$0xf]
        %v489 = vld [vmem:[%s269 + $0x320] sm:$0xf]
        %v490 = vld [vmem:[%s269 + $0x324] sm:$0xf]
        %v491 = vld [vmem:[%s269 + $0x328] sm:$0xf]
        %v492 = vld [vmem:[%s269 + $0x32c] sm:$0xf]
        %v493 = vld [vmem:[%s269 + $0x330] sm:$0xf]
        %v494 = vld [vmem:[%s269 + $0x334] sm:$0xf]
        %v495 = vld [vmem:[%s269 + $0x338] sm:$0xf]
        %v496 = vld [vmem:[%s269 + $0x33c] sm:$0xf]
        %v497 = vld [vmem:[%s269 + $0x340] sm:$0xf]
        %v498 = vld [vmem:[%s269 + $0x344] sm:$0xf]
        %v499 = vld [vmem:[%s269 + $0x348] sm:$0xf]
        %v500 = vld [vmem:[%s269 + $0x34c] sm:$0xf]
        %v501 = vld [vmem:[%s269 + $0x350] sm:$0xf]
        %v502 = vld [vmem:[%s269 + $0x354] sm:$0xf]
        %v503 = vld [vmem:[%s269 + $0x358] sm:$0xf]
        %v504 = vld [vmem:[%s269 + $0x35c] sm:$0xf]
        %v505 = vld [vmem:[%s269 + $0x360] sm:$0xf]
        %v506 = vld [vmem:[%s269 + $0x364] sm:$0xf]
        %v507 = vld [vmem:[%s269 + $0x368] sm:$0xf]
        %v508 = vld [vmem:[%s269 + $0x36c] sm:$0xf]
        %v509 = vld [vmem:[%s269 + $0x370] sm:$0xf]
        %v510 = vld [vmem:[%s269 + $0x374] sm:$0xf]
        %v511 = vld [vmem:[%s269 + $0x378] sm:$0xf]
        %v512 = vld [vmem:[%s269 + $0x37c] sm:$0xf]
        %v513 = vld [vmem:[%s269 + $0x380] sm:$0xf]
        %v514 = vld [vmem:[%s269 + $0x384] sm:$0xf]
        %v515 = vld [vmem:[%s269 + $0x388] sm:$0xf]
        %v516 = vld [vmem:[%s269 + $0x38c] sm:$0xf]
        %v517 = vld [vmem:[%s269 + $0x390] sm:$0xf]
        %v518 = vld [vmem:[%s269 + $0x394] sm:$0xf]
        %v519 = vld [vmem:[%s269 + $0x398] sm:$0xf]
        %v520 = vld [vmem:[%s269 + $0x39c] sm:$0xf]
        %v521 = vld [vmem:[%s269 + $0x3a0] sm:$0xf]
        %v522 = vld [vmem:[%s269 + $0x3a4] sm:$0xf]
        %v523 = vld [vmem:[%s269 + $0x3a8] sm:$0xf]
        %v524 = vld [vmem:[%s269 + $0x3ac] sm:$0xf]
        %v525 = vld [vmem:[%s269 + $0x3b0] sm:$0xf]
        %v526 = vld [vmem:[%s269 + $0x3b4] sm:$0xf]
        %v527 = vld [vmem:[%s269 + $0x3b8] sm:$0xf]
        %v528 = vld [vmem:[%s269 + $0x3bc] sm:$0xf]
        %v529 = vld [vmem:[%s269 + $0x3c0] sm:$0xf]
        %v530 = vld [vmem:[%s269 + $0x3c4] sm:$0xf]
        %v531 = vld [vmem:[%s269 + $0x3c8] sm:$0xf]
        %v532 = vld [vmem:[%s269 + $0x3cc] sm:$0xf]
        %v533 = vld [vmem:[%s269 + $0x3d0] sm:$0xf]
        %v534 = vld [vmem:[%s269 + $0x3d4] sm:$0xf]
        %v535 = vld [vmem:[%s269 + $0x3d8] sm:$0xf]
        %v536 = vld [vmem:[%s269 + $0x3dc] sm:$0xf]
        %v537 = vld [vmem:[%s269 + $0x3e0] sm:$0xf]
        %v538 = vld [vmem:[%s269 + $0x3e4] sm:$0xf]
        %v539 = vld [vmem:[%s269 + $0x3e8] sm:$0xf]
        %v540 = vld [vmem:[%s269 + $0x3ec] sm:$0xf]
        %v541 = vld [vmem:[%s269 + $0x3f0] sm:$0xf]
        %v542 = vld [vmem:[%s269 + $0x3f4] sm:$0xf]
        %v543 = vld [vmem:[%s269 + $0x3f8] sm:$0xf]
        %v544 = vld [vmem:[%s269 + $0x3fc] sm:$0xf]
        %v545 = vld [vmem:[%s282] sm:$0xf]
        %v546 = vld [vmem:[%s282 + $0x4] sm:$0xf]
        %v547 = vld [vmem:[%s282 + $0x8] sm:$0xf]
        %v548 = vld [vmem:[%s282 + $0xc] sm:$0xf]
        %v549 = vld [vmem:[%s282 + $0x10] sm:$0xf]
        %v550 = vld [vmem:[%s282 + $0x14] sm:$0xf]
        %v551 = vld [vmem:[%s282 + $0x18] sm:$0xf]
        %v552 = vld [vmem:[%s282 + $0x1c] sm:$0xf]
        %v553 = vld [vmem:[%s282 + $0x20] sm:$0xf]
        %v554 = vld [vmem:[%s282 + $0x24] sm:$0xf]
        %v555 = vld [vmem:[%s282 + $0x28] sm:$0xf]
        %v556 = vld [vmem:[%s282 + $0x2c] sm:$0xf]
        %v557 = vld [vmem:[%s282 + $0x30] sm:$0xf]
        %v558 = vld [vmem:[%s282 + $0x34] sm:$0xf]
        %v559 = vld [vmem:[%s282 + $0x38] sm:$0xf]
        %v560 = vld [vmem:[%s282 + $0x3c] sm:$0xf]
        %v817 = vunpack.c.l.b16 %v289
        %v818 = vunpack.c.l.b16 %v290
        %v819 = vunpack.c.l.b16 %v291
        %v820 = vunpack.c.l.b16 %v292
        %v821 = vunpack.c.l.b16 %v293
        %v822 = vunpack.c.l.b16 %v294
        %v823 = vunpack.c.l.b16 %v295
        %v824 = vunpack.c.l.b16 %v296
        %v825 = vunpack.c.l.b16 %v297
        %v826 = vunpack.c.l.b16 %v298
        %v827 = vunpack.c.l.b16 %v299
        %v828 = vunpack.c.l.b16 %v300
        %v829 = vunpack.c.l.b16 %v301
        %v830 = vunpack.c.l.b16 %v302
        %v831 = vunpack.c.l.b16 %v303
        %v832 = vunpack.c.l.b16 %v304
        %v833 = vunpack.c.l.b16 %v305
        %v834 = vunpack.c.l.b16 %v306
        %v835 = vunpack.c.l.b16 %v307
        %v836 = vunpack.c.l.b16 %v308
        %v837 = vunpack.c.l.b16 %v309
        %v838 = vunpack.c.l.b16 %v310
        %v839 = vunpack.c.l.b16 %v311
        %v840 = vunpack.c.l.b16 %v312
        %v841 = vunpack.c.l.b16 %v313
        %v842 = vunpack.c.l.b16 %v314
        %v843 = vunpack.c.l.b16 %v315
        %v844 = vunpack.c.l.b16 %v316
        %v845 = vunpack.c.l.b16 %v317
        %v846 = vunpack.c.l.b16 %v318
        %v847 = vunpack.c.l.b16 %v319
        %v848 = vunpack.c.l.b16 %v320
        %v849 = vunpack.c.l.b16 %v321
        %v850 = vunpack.c.l.b16 %v322
        %v851 = vunpack.c.l.b16 %v323
        %v852 = vunpack.c.l.b16 %v324
        %v853 = vunpack.c.l.b16 %v325
        %v854 = vunpack.c.l.b16 %v326
        %v855 = vunpack.c.l.b16 %v327
        %v856 = vunpack.c.l.b16 %v328
        %v857 = vunpack.c.l.b16 %v329
        %v858 = vunpack.c.l.b16 %v330
        %v859 = vunpack.c.l.b16 %v331
        %v860 = vunpack.c.l.b16 %v332
        %v861 = vunpack.c.l.b16 %v333
        %v862 = vunpack.c.l.b16 %v334
        %v863 = vunpack.c.l.b16 %v335
        %v864 = vunpack.c.l.b16 %v336
        %v865 = vunpack.c.l.b16 %v337
        %v866 = vunpack.c.l.b16 %v338
        %v867 = vunpack.c.l.b16 %v339
        %v868 = vunpack.c.l.b16 %v340
        %v869 = vunpack.c.l.b16 %v341
        %v870 = vunpack.c.l.b16 %v342
        %v871 = vunpack.c.l.b16 %v343
        %v872 = vunpack.c.l.b16 %v344
        %v873 = vunpack.c.l.b16 %v345
        %v874 = vunpack.c.l.b16 %v346
        %v875 = vunpack.c.l.b16 %v347
        %v876 = vunpack.c.l.b16 %v348
        %v877 = vunpack.c.l.b16 %v349
        %v878 = vunpack.c.l.b16 %v350
        %v879 = vunpack.c.l.b16 %v351
        %v880 = vunpack.c.l.b16 %v352
        %v881 = vunpack.c.l.b16 %v353
        %v882 = vunpack.c.l.b16 %v354
        %v883 = vunpack.c.l.b16 %v355
        %v884 = vunpack.c.l.b16 %v356
        %v885 = vunpack.c.l.b16 %v357
        %v886 = vunpack.c.l.b16 %v358
        %v887 = vunpack.c.l.b16 %v359
        %v888 = vunpack.c.l.b16 %v360
        %v889 = vunpack.c.l.b16 %v361
        %v890 = vunpack.c.l.b16 %v362
        %v891 = vunpack.c.l.b16 %v363
        %v892 = vunpack.c.l.b16 %v364
        %v893 = vunpack.c.l.b16 %v365
        %v894 = vunpack.c.l.b16 %v366
        %v895 = vunpack.c.l.b16 %v367
        %v896 = vunpack.c.l.b16 %v368
        %v897 = vunpack.c.l.b16 %v369
        %v898 = vunpack.c.l.b16 %v370
        %v899 = vunpack.c.l.b16 %v371
        %v900 = vunpack.c.l.b16 %v372
        %v901 = vunpack.c.l.b16 %v373
        %v902 = vunpack.c.l.b16 %v374
        %v903 = vunpack.c.l.b16 %v375
        %v904 = vunpack.c.l.b16 %v376
        %v905 = vunpack.c.l.b16 %v377
        %v906 = vunpack.c.l.b16 %v378
        %v907 = vunpack.c.l.b16 %v379
        %v908 = vunpack.c.l.b16 %v380
        %v909 = vunpack.c.l.b16 %v381
        %v910 = vunpack.c.l.b16 %v382
        %v911 = vunpack.c.l.b16 %v383
        %v912 = vunpack.c.l.b16 %v384
        %v913 = vunpack.c.l.b16 %v385
        %v914 = vunpack.c.l.b16 %v386
        %v915 = vunpack.c.l.b16 %v387
        %v916 = vunpack.c.l.b16 %v388
        %v917 = vunpack.c.l.b16 %v389
        %v918 = vunpack.c.l.b16 %v390
        %v919 = vunpack.c.l.b16 %v391
        %v920 = vunpack.c.l.b16 %v392
        %v921 = vunpack.c.l.b16 %v393
        %v922 = vunpack.c.l.b16 %v394
        %v923 = vunpack.c.l.b16 %v395
        %v924 = vunpack.c.l.b16 %v396
        %v925 = vunpack.c.l.b16 %v397
        %v926 = vunpack.c.l.b16 %v398
        %v927 = vunpack.c.l.b16 %v399
        %v928 = vunpack.c.l.b16 %v400
        %v929 = vunpack.c.l.b16 %v401
        %v930 = vunpack.c.l.b16 %v402
        %v931 = vunpack.c.l.b16 %v403
        %v932 = vunpack.c.l.b16 %v404
        %v933 = vunpack.c.l.b16 %v405
        %v934 = vunpack.c.l.b16 %v406
        %v935 = vunpack.c.l.b16 %v407
        %v936 = vunpack.c.l.b16 %v408
        %v937 = vunpack.c.l.b16 %v409
        %v938 = vunpack.c.l.b16 %v410
        %v939 = vunpack.c.l.b16 %v411
        %v940 = vunpack.c.l.b16 %v412
        %v941 = vunpack.c.l.b16 %v413
        %v942 = vunpack.c.l.b16 %v414
        %v943 = vunpack.c.l.b16 %v415
        %v944 = vunpack.c.l.b16 %v416
        %v945 = vunpack.c.l.b16 %v417
        %v946 = vunpack.c.l.b16 %v418
        %v947 = vunpack.c.l.b16 %v419
        %v948 = vunpack.c.l.b16 %v420
        %v949 = vunpack.c.l.b16 %v421
        %v950 = vunpack.c.l.b16 %v422
        %v951 = vunpack.c.l.b16 %v423
        %v952 = vunpack.c.l.b16 %v424
        %v953 = vunpack.c.l.b16 %v425
        %v954 = vunpack.c.l.b16 %v426
        %v955 = vunpack.c.l.b16 %v427
        %v956 = vunpack.c.l.b16 %v428
        %v957 = vunpack.c.l.b16 %v429
        %v958 = vunpack.c.l.b16 %v430
        %v959 = vunpack.c.l.b16 %v431
        %v960 = vunpack.c.l.b16 %v432
        %v961 = vunpack.c.l.b16 %v433
        %v962 = vunpack.c.l.b16 %v434
        %v963 = vunpack.c.l.b16 %v435
        %v964 = vunpack.c.l.b16 %v436
        %v965 = vunpack.c.l.b16 %v437
        %v966 = vunpack.c.l.b16 %v438
        %v967 = vunpack.c.l.b16 %v439
        %v968 = vunpack.c.l.b16 %v440
        %v969 = vunpack.c.l.b16 %v441
        %v970 = vunpack.c.l.b16 %v442
        %v971 = vunpack.c.l.b16 %v443
        %v972 = vunpack.c.l.b16 %v444
        %v973 = vunpack.c.l.b16 %v445
        %v974 = vunpack.c.l.b16 %v446
        %v975 = vunpack.c.l.b16 %v447
        %v976 = vunpack.c.l.b16 %v448
        %v977 = vunpack.c.l.b16 %v449
        %v978 = vunpack.c.l.b16 %v450
        %v979 = vunpack.c.l.b16 %v451
        %v980 = vunpack.c.l.b16 %v452
        %v981 = vunpack.c.l.b16 %v453
        %v982 = vunpack.c.l.b16 %v454
        %v983 = vunpack.c.l.b16 %v455
        %v984 = vunpack.c.l.b16 %v456
        %v985 = vunpack.c.l.b16 %v457
        %v986 = vunpack.c.l.b16 %v458
        %v987 = vunpack.c.l.b16 %v459
        %v988 = vunpack.c.l.b16 %v460
        %v989 = vunpack.c.l.b16 %v461
        %v990 = vunpack.c.l.b16 %v462
        %v991 = vunpack.c.l.b16 %v463
        %v992 = vunpack.c.l.b16 %v464
        %v993 = vunpack.c.l.b16 %v465
        %v994 = vunpack.c.l.b16 %v466
        %v995 = vunpack.c.l.b16 %v467
        %v996 = vunpack.c.l.b16 %v468
        %v997 = vunpack.c.l.b16 %v469
        %v998 = vunpack.c.l.b16 %v470
        %v999 = vunpack.c.l.b16 %v471
        %v1000 = vunpack.c.l.b16 %v472
        %v1001 = vunpack.c.l.b16 %v473
        %v1002 = vunpack.c.l.b16 %v474
        %v1003 = vunpack.c.l.b16 %v475
        %v1004 = vunpack.c.l.b16 %v476
        %v1005 = vunpack.c.l.b16 %v477
        %v1006 = vunpack.c.l.b16 %v478
        %v1007 = vunpack.c.l.b16 %v479
        %v1008 = vunpack.c.l.b16 %v480
        %v1009 = vunpack.c.l.b16 %v481
        %v1010 = vunpack.c.l.b16 %v482
        %v1011 = vunpack.c.l.b16 %v483
        %v1012 = vunpack.c.l.b16 %v484
        %v1013 = vunpack.c.l.b16 %v485
        %v1014 = vunpack.c.l.b16 %v486
        %v1015 = vunpack.c.l.b16 %v487
        %v1016 = vunpack.c.l.b16 %v488
        %v1017 = vunpack.c.l.b16 %v489
        %v1018 = vunpack.c.l.b16 %v490
        %v1019 = vunpack.c.l.b16 %v491
        %v1020 = vunpack.c.l.b16 %v492
        %v1021 = vunpack.c.l.b16 %v493
        %v1022 = vunpack.c.l.b16 %v494
        %v1023 = vunpack.c.l.b16 %v495
        %v1024 = vunpack.c.l.b16 %v496
        %v1025 = vunpack.c.l.b16 %v497
        %v1026 = vunpack.c.l.b16 %v498
        %v1027 = vunpack.c.l.b16 %v499
        %v1028 = vunpack.c.l.b16 %v500
        %v1029 = vunpack.c.l.b16 %v501
        %v1030 = vunpack.c.l.b16 %v502
        %v1031 = vunpack.c.l.b16 %v503
        %v1032 = vunpack.c.l.b16 %v504
        %v1033 = vunpack.c.l.b16 %v505
        %v1034 = vunpack.c.l.b16 %v506
        %v1035 = vunpack.c.l.b16 %v507
        %v1036 = vunpack.c.l.b16 %v508
        %v1037 = vunpack.c.l.b16 %v509
        %v1038 = vunpack.c.l.b16 %v510
        %v1039 = vunpack.c.l.b16 %v511
        %v1040 = vunpack.c.l.b16 %v512
        %v1041 = vunpack.c.l.b16 %v513
        %v1042 = vunpack.c.l.b16 %v514
        %v1043 = vunpack.c.l.b16 %v515
        %v1044 = vunpack.c.l.b16 %v516
        %v1045 = vunpack.c.l.b16 %v517
        %v1046 = vunpack.c.l.b16 %v518
        %v1047 = vunpack.c.l.b16 %v519
        %v1048 = vunpack.c.l.b16 %v520
        %v1049 = vunpack.c.l.b16 %v521
        %v1050 = vunpack.c.l.b16 %v522
        %v1051 = vunpack.c.l.b16 %v523
        %v1052 = vunpack.c.l.b16 %v524
        %v1053 = vunpack.c.l.b16 %v525
        %v1054 = vunpack.c.l.b16 %v526
        %v1055 = vunpack.c.l.b16 %v527
        %v1056 = vunpack.c.l.b16 %v528
        %v1057 = vunpack.c.l.b16 %v529
        %v1058 = vunpack.c.l.b16 %v530
        %v1059 = vunpack.c.l.b16 %v531
        %v1060 = vunpack.c.l.b16 %v532
        %v1061 = vunpack.c.l.b16 %v533
        %v1062 = vunpack.c.l.b16 %v534
        %v1063 = vunpack.c.l.b16 %v535
        %v1064 = vunpack.c.l.b16 %v536
        %v1065 = vunpack.c.l.b16 %v537
        %v1066 = vunpack.c.l.b16 %v538
        %v1067 = vunpack.c.l.b16 %v539
        %v1068 = vunpack.c.l.b16 %v540
        %v1069 = vunpack.c.l.b16 %v541
        %v1070 = vunpack.c.l.b16 %v542
        %v1071 = vunpack.c.l.b16 %v543
        %v1072 = vunpack.c.l.b16 %v544
        %v1073 = vpack.c.b16 %v818, %v817
        %v1074 = vpack.c.b16 %v820, %v819
        %v1075 = vpack.c.b16 %v822, %v821
        %v1076 = vpack.c.b16 %v824, %v823
        %v1077 = vpack.c.b16 %v826, %v825
        %v1078 = vpack.c.b16 %v828, %v827
        %v1079 = vpack.c.b16 %v830, %v829
        %v1080 = vpack.c.b16 %v832, %v831
        %v1081 = vpack.c.b16 %v834, %v833
        %v1082 = vpack.c.b16 %v836, %v835
        %v1083 = vpack.c.b16 %v838, %v837
        %v1084 = vpack.c.b16 %v840, %v839
        %v1085 = vpack.c.b16 %v842, %v841
        %v1086 = vpack.c.b16 %v844, %v843
        %v1087 = vpack.c.b16 %v846, %v845
        %v1088 = vpack.c.b16 %v848, %v847
        %v1089 = vpack.c.b16 %v850, %v849
        %v1090 = vpack.c.b16 %v852, %v851
        %v1091 = vpack.c.b16 %v854, %v853
        %v1092 = vpack.c.b16 %v856, %v855
        %v1093 = vpack.c.b16 %v858, %v857
        %v1094 = vpack.c.b16 %v860, %v859
        %v1095 = vpack.c.b16 %v862, %v861
        %v1096 = vpack.c.b16 %v864, %v863
        %v1097 = vpack.c.b16 %v866, %v865
        %v1098 = vpack.c.b16 %v868, %v867
        %v1099 = vpack.c.b16 %v870, %v869
        %v1100 = vpack.c.b16 %v872, %v871
        %v1101 = vpack.c.b16 %v874, %v873
        %v1102 = vpack.c.b16 %v876, %v875
        %v1103 = vpack.c.b16 %v878, %v877
        %v1104 = vpack.c.b16 %v880, %v879
        %v1105 = vpack.c.b16 %v882, %v881
        %v1106 = vpack.c.b16 %v884, %v883
        %v1107 = vpack.c.b16 %v886, %v885
        %v1108 = vpack.c.b16 %v888, %v887
        %v1109 = vpack.c.b16 %v890, %v889
        %v1110 = vpack.c.b16 %v892, %v891
        %v1111 = vpack.c.b16 %v894, %v893
        %v1112 = vpack.c.b16 %v896, %v895
        %v1113 = vpack.c.b16 %v898, %v897
        %v1114 = vpack.c.b16 %v900, %v899
        %v1115 = vpack.c.b16 %v902, %v901
        %v1116 = vpack.c.b16 %v904, %v903
        %v1117 = vpack.c.b16 %v906, %v905
        %v1118 = vpack.c.b16 %v908, %v907
        %v1119 = vpack.c.b16 %v910, %v909
        %v1120 = vpack.c.b16 %v912, %v911
        %v1121 = vpack.c.b16 %v914, %v913
        %v1122 = vpack.c.b16 %v916, %v915
        %v1123 = vpack.c.b16 %v918, %v917
        %v1124 = vpack.c.b16 %v920, %v919
        %v1125 = vpack.c.b16 %v922, %v921
        %v1126 = vpack.c.b16 %v924, %v923
        %v1127 = vpack.c.b16 %v926, %v925
        %v1128 = vpack.c.b16 %v928, %v927
        %v1129 = vpack.c.b16 %v930, %v929
        %v1130 = vpack.c.b16 %v932, %v931
        %v1131 = vpack.c.b16 %v934, %v933
        %v1132 = vpack.c.b16 %v936, %v935
        %v1133 = vpack.c.b16 %v938, %v937
        %v1134 = vpack.c.b16 %v940, %v939
        %v1135 = vpack.c.b16 %v942, %v941
        %v1136 = vpack.c.b16 %v944, %v943
        %v1137 = vpack.c.b16 %v946, %v945
        %v1138 = vpack.c.b16 %v948, %v947
        %v1139 = vpack.c.b16 %v950, %v949
        %v1140 = vpack.c.b16 %v952, %v951
        %v1141 = vpack.c.b16 %v954, %v953
        %v1142 = vpack.c.b16 %v956, %v955
        %v1143 = vpack.c.b16 %v958, %v957
        %v1144 = vpack.c.b16 %v960, %v959
        %v1145 = vpack.c.b16 %v962, %v961
        %v1146 = vpack.c.b16 %v964, %v963
        %v1147 = vpack.c.b16 %v966, %v965
        %v1148 = vpack.c.b16 %v968, %v967
        %v1149 = vpack.c.b16 %v970, %v969
        %v1150 = vpack.c.b16 %v972, %v971
        %v1151 = vpack.c.b16 %v974, %v973
        %v1152 = vpack.c.b16 %v976, %v975
        %v1153 = vpack.c.b16 %v978, %v977
        %v1154 = vpack.c.b16 %v980, %v979
        %v1155 = vpack.c.b16 %v982, %v981
        %v1156 = vpack.c.b16 %v984, %v983
        %v1157 = vpack.c.b16 %v986, %v985
        %v1158 = vpack.c.b16 %v988, %v987
        %v1159 = vpack.c.b16 %v990, %v989
        %v1160 = vpack.c.b16 %v992, %v991
        %v1161 = vpack.c.b16 %v994, %v993
        %v1162 = vpack.c.b16 %v996, %v995
        %v1163 = vpack.c.b16 %v998, %v997
        %v1164 = vpack.c.b16 %v1000, %v999
        %v1165 = vpack.c.b16 %v1002, %v1001
        %v1166 = vpack.c.b16 %v1004, %v1003
        %v1167 = vpack.c.b16 %v1006, %v1005
        %v1168 = vpack.c.b16 %v1008, %v1007
        %v1169 = vpack.c.b16 %v1010, %v1009
        %v1170 = vpack.c.b16 %v1012, %v1011
        %v1171 = vpack.c.b16 %v1014, %v1013
        %v1172 = vpack.c.b16 %v1016, %v1015
        %v1173 = vpack.c.b16 %v1018, %v1017
        %v1174 = vpack.c.b16 %v1020, %v1019
        %v1175 = vpack.c.b16 %v1022, %v1021
        %v1176 = vpack.c.b16 %v1024, %v1023
        %v1177 = vpack.c.b16 %v1026, %v1025
        %v1178 = vpack.c.b16 %v1028, %v1027
        %v1179 = vpack.c.b16 %v1030, %v1029
        %v1180 = vpack.c.b16 %v1032, %v1031
        %v1181 = vpack.c.b16 %v1034, %v1033
        %v1182 = vpack.c.b16 %v1036, %v1035
        %v1183 = vpack.c.b16 %v1038, %v1037
        %v1184 = vpack.c.b16 %v1040, %v1039
        %v1185 = vpack.c.b16 %v1042, %v1041
        %v1186 = vpack.c.b16 %v1044, %v1043
        %v1187 = vpack.c.b16 %v1046, %v1045
        %v1188 = vpack.c.b16 %v1048, %v1047
        %v1189 = vpack.c.b16 %v1050, %v1049
        %v1190 = vpack.c.b16 %v1052, %v1051
        %v1191 = vpack.c.b16 %v1054, %v1053
        %v1192 = vpack.c.b16 %v1056, %v1055
        %v1193 = vpack.c.b16 %v1058, %v1057
        %v1194 = vpack.c.b16 %v1060, %v1059
        %v1195 = vpack.c.b16 %v1062, %v1061
        %v1196 = vpack.c.b16 %v1064, %v1063
        %v1197 = vpack.c.b16 %v1066, %v1065
        %v1198 = vpack.c.b16 %v1068, %v1067
        %v1199 = vpack.c.b16 %v1070, %v1069
        %v1200 = vpack.c.b16 %v1072, %v1071
        %v1345 = vunpack.c.l.b16 %v545
        %v1346 = vunpack.c.l.b16 %v546
        %v1347 = vunpack.c.l.b16 %v547
        %v1348 = vunpack.c.l.b16 %v548
        %v1349 = vunpack.c.l.b16 %v549
        %v1350 = vunpack.c.l.b16 %v550
        %v1351 = vunpack.c.l.b16 %v551
        %v1352 = vunpack.c.l.b16 %v552
        %v1353 = vunpack.c.l.b16 %v553
        %v1354 = vunpack.c.l.b16 %v554
        %v1355 = vunpack.c.l.b16 %v555
        %v1356 = vunpack.c.l.b16 %v556
        %v1357 = vunpack.c.l.b16 %v557
        %v1358 = vunpack.c.l.b16 %v558
        %v1359 = vunpack.c.l.b16 %v559
        %v1360 = vunpack.c.l.b16 %v560
        %v1361 = vpack.c.b16 %v1346, %v1345
        %v1362 = vpack.c.b16 %v1348, %v1347
        %v1363 = vpack.c.b16 %v1350, %v1349
        %v1364 = vpack.c.b16 %v1352, %v1351
        %v1365 = vpack.c.b16 %v1354, %v1353
        %v1366 = vpack.c.b16 %v1356, %v1355
        %v1367 = vpack.c.b16 %v1358, %v1357
        %v1368 = vpack.c.b16 %v1360, %v1359
        %1377 = vmatprep.subr.bf16.mxu0 0
        %1378 = vmatpush1.bf16.msra.mxu0 %v1361
        %1379 = vmatprep.subr.bf16.mxu0 0
        %1380 = vmatpush1.bf16.msra.mxu0 %v1362
        %1381 = vmatprep.subr.bf16.mxu0 0
        %1382 = vmatpush1.bf16.msra.mxu0 %v1363
        %1383 = vmatprep.subr.bf16.mxu0 0
        %1384 = vmatpush1.bf16.msra.mxu0 %v1364
        %1385 = vmatprep.subr.bf16.mxu0 0
        %1386 = vmatpush1.bf16.msra.mxu0 %v1365
        %1387 = vmatprep.subr.bf16.mxu0 0
        %1388 = vmatpush1.bf16.msra.mxu0 %v1366
        %1389 = vmatprep.subr.bf16.mxu0 0
        %1390 = vmatpush1.bf16.msra.mxu0 %v1367
        %1391 = vmatprep.subr.bf16.mxu0 0
        %1392 = vmatpush1.bf16.msra.mxu0 %v1368
        %1393 = vmatprep.subr.bf16.mxu0 0
        %1394 = vmatpush1.bf16.msra.mxu0 0
        %1395 = vmatprep.subr.bf16.mxu0 0
        %1396 = vmatpush1.bf16.msra.mxu0 0
        %1397 = vmatprep.subr.bf16.mxu0 0
        %1398 = vmatpush1.bf16.msra.mxu0 0
        %1399 = vmatprep.subr.bf16.mxu0 0
        %1400 = vmatpush1.bf16.msra.mxu0 0
        %1401 = vmatprep.subr.bf16.mxu0 0
        %1402 = vmatpush1.bf16.msra.mxu0 0
        %1403 = vmatprep.subr.bf16.mxu0 0
        %1404 = vmatpush1.bf16.msra.mxu0 0
        %1405 = vmatprep.subr.bf16.mxu0 0
        %1406 = vmatpush1.bf16.msra.mxu0 0
        %1407 = vmatprep.subr.bf16.mxu0 0
        %1408 = vmatpush1.bf16.msra.mxu0 0
        %1409 = vmatprep.mubr.bf16.mxu0 0
        %1410 = vmatmul.mubr.bf16.gmra.mrb[0].mxu0 %v1073
        %v1411 = vpop.f32.mrb[0].mxu0
        %v1412 = vadd.f32 0.0, %v1411
        %v1413 = vpop.f32.mrb[0].mxu0
        %v1414 = vpop.f32.mrb[0].mxu0
        %v1415 = vadd.f32 0.0, %v1414
        %v1416 = vpop.f32.mrb[0].mxu0
        %1417 = vmatprep.mubr.bf16.mxu0 0
        %1418 = vmatmul.mubr.bf16.gmra.mrb[0].mxu0 %v1074
        %v1419 = vpop.f32.mrb[0].mxu0
        %v1420 = vadd.f32 0.0, %v1419
        %v1421 = vpop.f32.mrb[0].mxu0
        %v1422 = vpop.f32.mrb[0].mxu0
        %v1423 = vadd.f32 0.0, %v1422
        %v1424 = vpop.f32.mrb[0].mxu0
        %1425 = vmatprep.mubr.bf16.mxu0 0
        %1426 = vmatmul.mubr.bf16.gmra.mrb[0].mxu0 %v1075
        %v1427 = vpop.f32.mrb[0].mxu0
        %v1428 = vadd.f32 0.0, %v1427
        %v1429 = vpop.f32.mrb[0].mxu0
        %v1430 = vpop.f32.mrb[0].mxu0
        %v1431 = vadd.f32 0.0, %v1430
        %v1432 = vpop.f32.mrb[0].mxu0
        %1433 = vmatprep.mubr.bf16.mxu0 0
        %1434 = vmatmul.mubr.bf16.gmra.mrb[0].mxu0 %v1076
        %v1435 = vpop.f32.mrb[0].mxu0
        %v1436 = vadd.f32 0.0, %v1435
        %v1437 = vpop.f32.mrb[0].mxu0
        %v1438 = vpop.f32.mrb[0].mxu0
        %v1439 = vadd.f32 0.0, %v1438
        %v1440 = vpop.f32.mrb[0].mxu0
        %1441 = vmatprep.mubr.bf16.mxu0 0
        %1442 = vmatmul.mubr.bf16.gmra.mrb[0].mxu0 %v1077
        %v1443 = vpop.f32.mrb[0].mxu0
        %v1444 = vadd.f32 0.0, %v1443
        %v1445 = vpop.f32.mrb[0].mxu0
        %v1446 = vpop.f32.mrb[0].mxu0
        %v1447 = vadd.f32 0.0, %v1446
        %v1448 = vpop.f32.mrb[0].mxu0
        %1449 = vmatprep.mubr.bf16.mxu0 0
        %1450 = vmatmul.mubr.bf16.gmra.mrb[0].mxu0 %v1078
        %v1451 = vpop.f32.mrb[0].mxu0
        %v1452 = vadd.f32 0.0, %v1451
        %v1453 = vpop.f32.mrb[0].mxu0
        %v1454 = vpop.f32.mrb[0].mxu0
        %v1455 = vadd.f32 0.0, %v1454
        %v1456 = vpop.f32.mrb[0].mxu0
        %1457 = vmatprep.mubr.bf16.mxu0 0
        %1458 = vmatmul.mubr.bf16.gmra.mrb[0].mxu0 %v1079
        %v1459 = vpop.f32.mrb[0].mxu0
        %v1460 = vadd.f32 0.0, %v1459
        %v1461 = vpop.f32.mrb[0].mxu0
        %v1462 = vpop.f32.mrb[0].mxu0
        %v1463 = vadd.f32 0.0, %v1462
        %v1464 = vpop.f32.mrb[0].mxu0
        %1465 = vmatprep.mubr.bf16.mxu0 0
        %1466 = vmatmul.mubr.bf16.gmra.mrb[0].mxu0 %v1080
        %v1467 = vpop.f32.mrb[0].mxu0
        %v1468 = vadd.f32 0.0, %v1467
        %v1469 = vpop.f32.mrb[0].mxu0
        %v1470 = vpop.f32.mrb[0].mxu0
        %v1471 = vadd.f32 0.0, %v1470
        %v1472 = vpop.f32.mrb[0].mxu0
        %1473 = vmatprep.mubr.bf16.mxu0 0
        %1474 = vmatmul.mubr.bf16.gmra.mrb[0].mxu0 %v1081
        %v1475 = vpop.f32.mrb[0].mxu0
        %v1476 = vadd.f32 0.0, %v1475
        %v1477 = vpop.f32.mrb[0].mxu0
        %v1478 = vpop.f32.mrb[0].mxu0
        %v1479 = vadd.f32 0.0, %v1478
        %v1480 = vpop.f32.mrb[0].mxu0
        %1481 = vmatprep.mubr.bf16.mxu0 0
        %1482 = vmatmul.mubr.bf16.gmra.mrb[0].mxu0 %v1082
        %v1483 = vpop.f32.mrb[0].mxu0
        %v1484 = vadd.f32 0.0, %v1483
        %v1485 = vpop.f32.mrb[0].mxu0
        %v1486 = vpop.f32.mrb[0].mxu0
        %v1487 = vadd.f32 0.0, %v1486
        %v1488 = vpop.f32.mrb[0].mxu0
        %1489 = vmatprep.mubr.bf16.mxu0 0
        %1490 = vmatmul.mubr.bf16.gmra.mrb[0].mxu0 %v1083
        %v1491 = vpop.f32.mrb[0].mxu0
        %v1492 = vadd.f32 0.0, %v1491
        %v1493 = vpop.f32.mrb[0].mxu0
        %v1494 = vpop.f32.mrb[0].mxu0
        %v1495 = vadd.f32 0.0, %v1494
        %v1496 = vpop.f32.mrb[0].mxu0
        %1497 = vmatprep.mubr.bf16.mxu0 0
        %1498 = vmatmul.mubr.bf16.gmra.mrb[0].mxu0 %v1084
        %v1499 = vpop.f32.mrb[0].mxu0
        %v1500 = vadd.f32 0.0, %v1499
        %v1501 = vpop.f32.mrb[0].mxu0
        %v1502 = vpop.f32.mrb[0].mxu0
        %v1503 = vadd.f32 0.0, %v1502
        %v1504 = vpop.f32.mrb[0].mxu0
        %1505 = vmatprep.mubr.bf16.mxu0 0
        %1506 = vmatmul.mubr.bf16.gmra.mrb[0].mxu0 %v1085
        %v1507 = vpop.f32.mrb[0].mxu0
        %v1508 = vadd.f32 0.0, %v1507
        %v1509 = vpop.f32.mrb[0].mxu0
        %v1510 = vpop.f32.mrb[0].mxu0
        %v1511 = vadd.f32 0.0, %v1510
        %v1512 = vpop.f32.mrb[0].mxu0
        %1513 = vmatprep.mubr.bf16.mxu0 0
        %1514 = vmatmul.mubr.bf16.gmra.mrb[0].mxu0 %v1086
        %v1515 = vpop.f32.mrb[0].mxu0
        %v1516 = vadd.f32 0.0, %v1515
        %v1517 = vpop.f32.mrb[0].mxu0
        %v1518 = vpop.f32.mrb[0].mxu0
        %v1519 = vadd.f32 0.0, %v1518
        %v1520 = vpop.f32.mrb[0].mxu0
        %1521 = vmatprep.mubr.bf16.mxu0 0
        %1522 = vmatmul.mubr.bf16.gmra.mrb[0].mxu0 %v1087
        %v1523 = vpop.f32.mrb[0].mxu0
        %v1524 = vadd.f32 0.0, %v1523
        %v1525 = vpop.f32.mrb[0].mxu0
        %v1526 = vpop.f32.mrb[0].mxu0
        %v1527 = vadd.f32 0.0, %v1526
        %v1528 = vpop.f32.mrb[0].mxu0
        %1529 = vmatprep.mubr.bf16.mxu0 0
        %1530 = vmatmul.mubr.bf16.gmra.mrb[0].mxu0 %v1088
        %v1531 = vpop.f32.mrb[0].mxu0
        %v1532 = vadd.f32 0.0, %v1531
        %v1533 = vpop.f32.mrb[0].mxu0
        %v1534 = vpop.f32.mrb[0].mxu0
        %v1535 = vadd.f32 0.0, %v1534
        %v1536 = vpop.f32.mrb[0].mxu0
        %1537 = vmatprep.mubr.bf16.mxu0 0
        %1538 = vmatmul.mubr.bf16.gmra.mrb[0].mxu0 %v1089
        %v1539 = vpop.f32.mrb[0].mxu0
        %v1540 = vadd.f32 0.0, %v1539
        %v1541 = vpop.f32.mrb[0].mxu0
        %v1542 = vpop.f32.mrb[0].mxu0
        %v1543 = vadd.f32 0.0, %v1542
        %v1544 = vpop.f32.mrb[0].mxu0
        %1545 = vmatprep.mubr.bf16.mxu0 0
        %1546 = vmatmul.mubr.bf16.gmra.mrb[0].mxu0 %v1090
        %v1547 = vpop.f32.mrb[0].mxu0
        %v1548 = vadd.f32 0.0, %v1547
        %v1549 = vpop.f32.mrb[0].mxu0
        %v1550 = vpop.f32.mrb[0].mxu0
        %v1551 = vadd.f32 0.0, %v1550
        %v1552 = vpop.f32.mrb[0].mxu0
        %1553 = vmatprep.mubr.bf16.mxu0 0
        %1554 = vmatmul.mubr.bf16.gmra.mrb[0].mxu0 %v1091
        %v1555 = vpop.f32.mrb[0].mxu0
        %v1556 = vadd.f32 0.0, %v1555
        %v1557 = vpop.f32.mrb[0].mxu0
        %v1558 = vpop.f32.mrb[0].mxu0
        %v1559 = vadd.f32 0.0, %v1558
        %v1560 = vpop.f32.mrb[0].mxu0
        %1561 = vmatprep.mubr.bf16.mxu0 0
        %1562 = vmatmul.mubr.bf16.gmra.mrb[0].mxu0 %v1092
        %v1563 = vpop.f32.mrb[0].mxu0
        %v1564 = vadd.f32 0.0, %v1563
        %v1565 = vpop.f32.mrb[0].mxu0
        %v1566 = vpop.f32.mrb[0].mxu0
        %v1567 = vadd.f32 0.0, %v1566
        %v1568 = vpop.f32.mrb[0].mxu0
        %1569 = vmatprep.mubr.bf16.mxu0 0
        %1570 = vmatmul.mubr.bf16.gmra.mrb[0].mxu0 %v1093
        %v1571 = vpop.f32.mrb[0].mxu0
        %v1572 = vadd.f32 0.0, %v1571
        %v1573 = vpop.f32.mrb[0].mxu0
        %v1574 = vpop.f32.mrb[0].mxu0
        %v1575 = vadd.f32 0.0, %v1574
        %v1576 = vpop.f32.mrb[0].mxu0
        %1577 = vmatprep.mubr.bf16.mxu0 0
        %1578 = vmatmul.mubr.bf16.gmra.mrb[0].mxu0 %v1094
        %v1579 = vpop.f32.mrb[0].mxu0
        %v1580 = vadd.f32 0.0, %v1579
        %v1581 = vpop.f32.mrb[0].mxu0
        %v1582 = vpop.f32.mrb[0].mxu0
        %v1583 = vadd.f32 0.0, %v1582
        %v1584 = vpop.f32.mrb[0].mxu0
        %1585 = vmatprep.mubr.bf16.mxu0 0
        %1586 = vmatmul.mubr.bf16.gmra.mrb[0].mxu0 %v1095
        %v1587 = vpop.f32.mrb[0].mxu0
        %v1588 = vadd.f32 0.0, %v1587
        %v1589 = vpop.f32.mrb[0].mxu0
        %v1590 = vpop.f32.mrb[0].mxu0
        %v1591 = vadd.f32 0.0, %v1590
        %v1592 = vpop.f32.mrb[0].mxu0
        %1593 = vmatprep.mubr.bf16.mxu0 0
        %1594 = vmatmul.mubr.bf16.gmra.mrb[0].mxu0 %v1096
        %v1595 = vpop.f32.mrb[0].mxu0
        %v1596 = vadd.f32 0.0, %v1595
        %v1597 = vpop.f32.mrb[0].mxu0
        %v1598 = vpop.f32.mrb[0].mxu0
        %v1599 = vadd.f32 0.0, %v1598
        %v1600 = vpop.f32.mrb[0].mxu0
        %1601 = vmatprep.mubr.bf16.mxu0 0
        %1602 = vmatmul.mubr.bf16.gmra.mrb[0].mxu0 %v1097
        %v1603 = vpop.f32.mrb[0].mxu0
        %v1604 = vadd.f32 0.0, %v1603
        %v1605 = vpop.f32.mrb[0].mxu0
        %v1606 = vpop.f32.mrb[0].mxu0
        %v1607 = vadd.f32 0.0, %v1606
        %v1608 = vpop.f32.mrb[0].mxu0
        %1609 = vmatprep.mubr.bf16.mxu0 0
        %1610 = vmatmul.mubr.bf16.gmra.mrb[0].mxu0 %v1098
        %v1611 = vpop.f32.mrb[0].mxu0
        %v1612 = vadd.f32 0.0, %v1611
        %v1613 = vpop.f32.mrb[0].mxu0
        %v1614 = vpop.f32.mrb[0].mxu0
        %v1615 = vadd.f32 0.0, %v1614
        %v1616 = vpop.f32.mrb[0].mxu0
        %1617 = vmatprep.mubr.bf16.mxu0 0
        %1618 = vmatmul.mubr.bf16.gmra.mrb[0].mxu0 %v1099
        %v1619 = vpop.f32.mrb[0].mxu0
        %v1620 = vadd.f32 0.0, %v1619
        %v1621 = vpop.f32.mrb[0].mxu0
        %v1622 = vpop.f32.mrb[0].mxu0
        %v1623 = vadd.f32 0.0, %v1622
        %v1624 = vpop.f32.mrb[0].mxu0
        %1625 = vmatprep.mubr.bf16.mxu0 0
        %1626 = vmatmul.mubr.bf16.gmra.mrb[0].mxu0 %v1100
        %v1627 = vpop.f32.mrb[0].mxu0
        %v1628 = vadd.f32 0.0, %v1627
        %v1629 = vpop.f32.mrb[0].mxu0
        %v1630 = vpop.f32.mrb[0].mxu0
        %v1631 = vadd.f32 0.0, %v1630
        %v1632 = vpop.f32.mrb[0].mxu0
        %1633 = vmatprep.mubr.bf16.mxu0 0
        %1634 = vmatmul.mubr.bf16.gmra.mrb[0].mxu0 %v1101
        %v1635 = vpop.f32.mrb[0].mxu0
        %v1636 = vadd.f32 0.0, %v1635
        %v1637 = vpop.f32.mrb[0].mxu0
        %v1638 = vpop.f32.mrb[0].mxu0
        %v1639 = vadd.f32 0.0, %v1638
        %v1640 = vpop.f32.mrb[0].mxu0
        %1641 = vmatprep.mubr.bf16.mxu0 0
        %1642 = vmatmul.mubr.bf16.gmra.mrb[0].mxu0 %v1102
        %v1643 = vpop.f32.mrb[0].mxu0
        %v1644 = vadd.f32 0.0, %v1643
        %v1645 = vpop.f32.mrb[0].mxu0
        %v1646 = vpop.f32.mrb[0].mxu0
        %v1647 = vadd.f32 0.0, %v1646
        %v1648 = vpop.f32.mrb[0].mxu0
        %1649 = vmatprep.mubr.bf16.mxu0 0
        %1650 = vmatmul.mubr.bf16.gmra.mrb[0].mxu0 %v1103
        %v1651 = vpop.f32.mrb[0].mxu0
        %v1652 = vadd.f32 0.0, %v1651
        %v1653 = vpop.f32.mrb[0].mxu0
        %v1654 = vpop.f32.mrb[0].mxu0
        %v1655 = vadd.f32 0.0, %v1654
        %v1656 = vpop.f32.mrb[0].mxu0
        %1657 = vmatprep.mubr.bf16.mxu0 0
        %1658 = vmatmul.mubr.bf16.gmra.mrb[0].mxu0 %v1104
        %v1659 = vpop.f32.mrb[0].mxu0
        %v1660 = vadd.f32 0.0, %v1659
        %v1661 = vpop.f32.mrb[0].mxu0
        %v1662 = vpop.f32.mrb[0].mxu0
        %v1663 = vadd.f32 0.0, %v1662
        %v1664 = vpop.f32.mrb[0].mxu0
        %1665 = vmatprep.mubr.bf16.mxu0 0
        %1666 = vmatmul.mubr.bf16.gmra.mrb[0].mxu0 %v1105
        %v1667 = vpop.f32.mrb[0].mxu0
        %v1668 = vadd.f32 0.0, %v1667
        %v1669 = vpop.f32.mrb[0].mxu0
        %v1670 = vpop.f32.mrb[0].mxu0
        %v1671 = vadd.f32 0.0, %v1670
        %v1672 = vpop.f32.mrb[0].mxu0
        %1673 = vmatprep.mubr.bf16.mxu0 0
        %1674 = vmatmul.mubr.bf16.gmra.mrb[0].mxu0 %v1106
        %v1675 = vpop.f32.mrb[0].mxu0
        %v1676 = vadd.f32 0.0, %v1675
        %v1677 = vpop.f32.mrb[0].mxu0
        %v1678 = vpop.f32.mrb[0].mxu0
        %v1679 = vadd.f32 0.0, %v1678
        %v1680 = vpop.f32.mrb[0].mxu0
        %1681 = vmatprep.mubr.bf16.mxu0 0
        %1682 = vmatmul.mubr.bf16.gmra.mrb[0].mxu0 %v1107
        %v1683 = vpop.f32.mrb[0].mxu0
        %v1684 = vadd.f32 0.0, %v1683
        %v1685 = vpop.f32.mrb[0].mxu0
        %v1686 = vpop.f32.mrb[0].mxu0
        %v1687 = vadd.f32 0.0, %v1686
        %v1688 = vpop.f32.mrb[0].mxu0
        %1689 = vmatprep.mubr.bf16.mxu0 0
        %1690 = vmatmul.mubr.bf16.gmra.mrb[0].mxu0 %v1108
        %v1691 = vpop.f32.mrb[0].mxu0
        %v1692 = vadd.f32 0.0, %v1691
        %v1693 = vpop.f32.mrb[0].mxu0
        %v1694 = vpop.f32.mrb[0].mxu0
        %v1695 = vadd.f32 0.0, %v1694
        %v1696 = vpop.f32.mrb[0].mxu0
        %1697 = vmatprep.mubr.bf16.mxu0 0
        %1698 = vmatmul.mubr.bf16.gmra.mrb[0].mxu0 %v1109
        %v1699 = vpop.f32.mrb[0].mxu0
        %v1700 = vadd.f32 0.0, %v1699
        %v1701 = vpop.f32.mrb[0].mxu0
        %v1702 = vpop.f32.mrb[0].mxu0
        %v1703 = vadd.f32 0.0, %v1702
        %v1704 = vpop.f32.mrb[0].mxu0
        %1705 = vmatprep.mubr.bf16.mxu0 0
        %1706 = vmatmul.mubr.bf16.gmra.mrb[0].mxu0 %v1110
        %v1707 = vpop.f32.mrb[0].mxu0
        %v1708 = vadd.f32 0.0, %v1707
        %v1709 = vpop.f32.mrb[0].mxu0
        %v1710 = vpop.f32.mrb[0].mxu0
        %v1711 = vadd.f32 0.0, %v1710
        %v1712 = vpop.f32.mrb[0].mxu0
        %1713 = vmatprep.mubr.bf16.mxu0 0
        %1714 = vmatmul.mubr.bf16.gmra.mrb[0].mxu0 %v1111
        %v1715 = vpop.f32.mrb[0].mxu0
        %v1716 = vadd.f32 0.0, %v1715
        %v1717 = vpop.f32.mrb[0].mxu0
        %v1718 = vpop.f32.mrb[0].mxu0
        %v1719 = vadd.f32 0.0, %v1718
        %v1720 = vpop.f32.mrb[0].mxu0
        %1721 = vmatprep.mubr.bf16.mxu0 0
        %1722 = vmatmul.mubr.bf16.gmra.mrb[0].mxu0 %v1112
        %v1723 = vpop.f32.mrb[0].mxu0
        %v1724 = vadd.f32 0.0, %v1723
        %v1725 = vpop.f32.mrb[0].mxu0
        %v1726 = vpop.f32.mrb[0].mxu0
        %v1727 = vadd.f32 0.0, %v1726
        %v1728 = vpop.f32.mrb[0].mxu0
        %1729 = vmatprep.mubr.bf16.mxu0 0
        %1730 = vmatmul.mubr.bf16.gmra.mrb[0].mxu0 %v1113
        %v1731 = vpop.f32.mrb[0].mxu0
        %v1732 = vadd.f32 0.0, %v1731
        %v1733 = vpop.f32.mrb[0].mxu0
        %v1734 = vpop.f32.mrb[0].mxu0
        %v1735 = vadd.f32 0.0, %v1734
        %v1736 = vpop.f32.mrb[0].mxu0
        %1737 = vmatprep.mubr.bf16.mxu0 0
        %1738 = vmatmul.mubr.bf16.gmra.mrb[0].mxu0 %v1114
        %v1739 = vpop.f32.mrb[0].mxu0
        %v1740 = vadd.f32 0.0, %v1739
        %v1741 = vpop.f32.mrb[0].mxu0
        %v1742 = vpop.f32.mrb[0].mxu0
        %v1743 = vadd.f32 0.0, %v1742
        %v1744 = vpop.f32.mrb[0].mxu0
        %1745 = vmatprep.mubr.bf16.mxu0 0
        %1746 = vmatmul.mubr.bf16.gmra.mrb[0].mxu0 %v1115
        %v1747 = vpop.f32.mrb[0].mxu0
        %v1748 = vadd.f32 0.0, %v1747
        %v1749 = vpop.f32.mrb[0].mxu0
        %v1750 = vpop.f32.mrb[0].mxu0
        %v1751 = vadd.f32 0.0, %v1750
        %v1752 = vpop.f32.mrb[0].mxu0
        %1753 = vmatprep.mubr.bf16.mxu0 0
        %1754 = vmatmul.mubr.bf16.gmra.mrb[0].mxu0 %v1116
        %v1755 = vpop.f32.mrb[0].mxu0
        %v1756 = vadd.f32 0.0, %v1755
        %v1757 = vpop.f32.mrb[0].mxu0
        %v1758 = vpop.f32.mrb[0].mxu0
        %v1759 = vadd.f32 0.0, %v1758
        %v1760 = vpop.f32.mrb[0].mxu0
        %1761 = vmatprep.mubr.bf16.mxu0 0
        %1762 = vmatmul.mubr.bf16.gmra.mrb[0].mxu0 %v1117
        %v1763 = vpop.f32.mrb[0].mxu0
        %v1764 = vadd.f32 0.0, %v1763
        %v1765 = vpop.f32.mrb[0].mxu0
        %v1766 = vpop.f32.mrb[0].mxu0
        %v1767 = vadd.f32 0.0, %v1766
        %v1768 = vpop.f32.mrb[0].mxu0
        %1769 = vmatprep.mubr.bf16.mxu0 0
        %1770 = vmatmul.mubr.bf16.gmra.mrb[0].mxu0 %v1118
        %v1771 = vpop.f32.mrb[0].mxu0
        %v1772 = vadd.f32 0.0, %v1771
        %v1773 = vpop.f32.mrb[0].mxu0
        %v1774 = vpop.f32.mrb[0].mxu0
        %v1775 = vadd.f32 0.0, %v1774
        %v1776 = vpop.f32.mrb[0].mxu0
        %1777 = vmatprep.mubr.bf16.mxu0 0
        %1778 = vmatmul.mubr.bf16.gmra.mrb[0].mxu0 %v1119
        %v1779 = vpop.f32.mrb[0].mxu0
        %v1780 = vadd.f32 0.0, %v1779
        %v1781 = vpop.f32.mrb[0].mxu0
        %v1782 = vpop.f32.mrb[0].mxu0
        %v1783 = vadd.f32 0.0, %v1782
        %v1784 = vpop.f32.mrb[0].mxu0
        %1785 = vmatprep.mubr.bf16.mxu0 0
        %1786 = vmatmul.mubr.bf16.gmra.mrb[0].mxu0 %v1120
        %v1787 = vpop.f32.mrb[0].mxu0
        %v1788 = vadd.f32 0.0, %v1787
        %v1789 = vpop.f32.mrb[0].mxu0
        %v1790 = vpop.f32.mrb[0].mxu0
        %v1791 = vadd.f32 0.0, %v1790
        %v1792 = vpop.f32.mrb[0].mxu0
        %1793 = vmatprep.mubr.bf16.mxu0 0
        %1794 = vmatmul.mubr.bf16.gmra.mrb[0].mxu0 %v1121
        %v1795 = vpop.f32.mrb[0].mxu0
        %v1796 = vadd.f32 0.0, %v1795
        %v1797 = vpop.f32.mrb[0].mxu0
        %v1798 = vpop.f32.mrb[0].mxu0
        %v1799 = vadd.f32 0.0, %v1798
        %v1800 = vpop.f32.mrb[0].mxu0
        %1801 = vmatprep.mubr.bf16.mxu0 0
        %1802 = vmatmul.mubr.bf16.gmra.mrb[0].mxu0 %v1122
        %v1803 = vpop.f32.mrb[0].mxu0
        %v1804 = vadd.f32 0.0, %v1803
        %v1805 = vpop.f32.mrb[0].mxu0
        %v1806 = vpop.f32.mrb[0].mxu0
        %v1807 = vadd.f32 0.0, %v1806
        %v1808 = vpop.f32.mrb[0].mxu0
        %1809 = vmatprep.mubr.bf16.mxu0 0
        %1810 = vmatmul.mubr.bf16.gmra.mrb[0].mxu0 %v1123
        %v1811 = vpop.f32.mrb[0].mxu0
        %v1812 = vadd.f32 0.0, %v1811
        %v1813 = vpop.f32.mrb[0].mxu0
        %v1814 = vpop.f32.mrb[0].mxu0
        %v1815 = vadd.f32 0.0, %v1814
        %v1816 = vpop.f32.mrb[0].mxu0
        %1817 = vmatprep.mubr.bf16.mxu0 0
        %1818 = vmatmul.mubr.bf16.gmra.mrb[0].mxu0 %v1124
        %v1819 = vpop.f32.mrb[0].mxu0
        %v1820 = vadd.f32 0.0, %v1819
        %v1821 = vpop.f32.mrb[0].mxu0
        %v1822 = vpop.f32.mrb[0].mxu0
        %v1823 = vadd.f32 0.0, %v1822
        %v1824 = vpop.f32.mrb[0].mxu0
        %1825 = vmatprep.mubr.bf16.mxu0 0
        %1826 = vmatmul.mubr.bf16.gmra.mrb[0].mxu0 %v1125
        %v1827 = vpop.f32.mrb[0].mxu0
        %v1828 = vadd.f32 0.0, %v1827
        %v1829 = vpop.f32.mrb[0].mxu0
        %v1830 = vpop.f32.mrb[0].mxu0
        %v1831 = vadd.f32 0.0, %v1830
        %v1832 = vpop.f32.mrb[0].mxu0
        %1833 = vmatprep.mubr.bf16.mxu0 0
        %1834 = vmatmul.mubr.bf16.gmra.mrb[0].mxu0 %v1126
        %v1835 = vpop.f32.mrb[0].mxu0
        %v1836 = vadd.f32 0.0, %v1835
        %v1837 = vpop.f32.mrb[0].mxu0
        %v1838 = vpop.f32.mrb[0].mxu0
        %v1839 = vadd.f32 0.0, %v1838
        %v1840 = vpop.f32.mrb[0].mxu0
        %1841 = vmatprep.mubr.bf16.mxu0 0
        %1842 = vmatmul.mubr.bf16.gmra.mrb[0].mxu0 %v1127
        %v1843 = vpop.f32.mrb[0].mxu0
        %v1844 = vadd.f32 0.0, %v1843
        %v1845 = vpop.f32.mrb[0].mxu0
        %v1846 = vpop.f32.mrb[0].mxu0
        %v1847 = vadd.f32 0.0, %v1846
        %v1848 = vpop.f32.mrb[0].mxu0
        %1849 = vmatprep.mubr.bf16.mxu0 0
        %1850 = vmatmul.mubr.bf16.gmra.mrb[0].mxu0 %v1128
        %v1851 = vpop.f32.mrb[0].mxu0
        %v1852 = vadd.f32 0.0, %v1851
        %v1853 = vpop.f32.mrb[0].mxu0
        %v1854 = vpop.f32.mrb[0].mxu0
        %v1855 = vadd.f32 0.0, %v1854
        %v1856 = vpop.f32.mrb[0].mxu0
        %1857 = vmatprep.mubr.bf16.mxu0 0
        %1858 = vmatmul.mubr.bf16.gmra.mrb[0].mxu0 %v1129
        %v1859 = vpop.f32.mrb[0].mxu0
        %v1860 = vadd.f32 0.0, %v1859
        %v1861 = vpop.f32.mrb[0].mxu0
        %v1862 = vpop.f32.mrb[0].mxu0
        %v1863 = vadd.f32 0.0, %v1862
        %v1864 = vpop.f32.mrb[0].mxu0
        %1865 = vmatprep.mubr.bf16.mxu0 0
        %1866 = vmatmul.mubr.bf16.gmra.mrb[0].mxu0 %v1130
        %v1867 = vpop.f32.mrb[0].mxu0
        %v1868 = vadd.f32 0.0, %v1867
        %v1869 = vpop.f32.mrb[0].mxu0
        %v1870 = vpop.f32.mrb[0].mxu0
        %v1871 = vadd.f32 0.0, %v1870
        %v1872 = vpop.f32.mrb[0].mxu0
        %1873 = vmatprep.mubr.bf16.mxu0 0
        %1874 = vmatmul.mubr.bf16.gmra.mrb[0].mxu0 %v1131
        %v1875 = vpop.f32.mrb[0].mxu0
        %v1876 = vadd.f32 0.0, %v1875
        %v1877 = vpop.f32.mrb[0].mxu0
        %v1878 = vpop.f32.mrb[0].mxu0
        %v1879 = vadd.f32 0.0, %v1878
        %v1880 = vpop.f32.mrb[0].mxu0
        %1881 = vmatprep.mubr.bf16.mxu0 0
        %1882 = vmatmul.mubr.bf16.gmra.mrb[0].mxu0 %v1132
        %v1883 = vpop.f32.mrb[0].mxu0
        %v1884 = vadd.f32 0.0, %v1883
        %v1885 = vpop.f32.mrb[0].mxu0
        %v1886 = vpop.f32.mrb[0].mxu0
        %v1887 = vadd.f32 0.0, %v1886
        %v1888 = vpop.f32.mrb[0].mxu0
        %1889 = vmatprep.mubr.bf16.mxu0 0
        %1890 = vmatmul.mubr.bf16.gmra.mrb[0].mxu0 %v1133
        %v1891 = vpop.f32.mrb[0].mxu0
        %v1892 = vadd.f32 0.0, %v1891
        %v1893 = vpop.f32.mrb[0].mxu0
        %v1894 = vpop.f32.mrb[0].mxu0
        %v1895 = vadd.f32 0.0, %v1894
        %v1896 = vpop.f32.mrb[0].mxu0
        %1897 = vmatprep.mubr.bf16.mxu0 0
        %1898 = vmatmul.mubr.bf16.gmra.mrb[0].mxu0 %v1134
        %v1899 = vpop.f32.mrb[0].mxu0
        %v1900 = vadd.f32 0.0, %v1899
        %v1901 = vpop.f32.mrb[0].mxu0
        %v1902 = vpop.f32.mrb[0].mxu0
        %v1903 = vadd.f32 0.0, %v1902
        %v1904 = vpop.f32.mrb[0].mxu0
        %1905 = vmatprep.mubr.bf16.mxu0 0
        %1906 = vmatmul.mubr.bf16.gmra.mrb[0].mxu0 %v1135
        %v1907 = vpop.f32.mrb[0].mxu0
        %v1908 = vadd.f32 0.0, %v1907
        %v1909 = vpop.f32.mrb[0].mxu0
        %v1910 = vpop.f32.mrb[0].mxu0
        %v1911 = vadd.f32 0.0, %v1910
        %v1912 = vpop.f32.mrb[0].mxu0
        %1913 = vmatprep.mubr.bf16.mxu0 0
        %1914 = vmatmul.mubr.bf16.gmra.mrb[0].mxu0 %v1136
        %v1915 = vpop.f32.mrb[0].mxu0
        %v1916 = vadd.f32 0.0, %v1915
        %v1917 = vpop.f32.mrb[0].mxu0
        %v1918 = vpop.f32.mrb[0].mxu0
        %v1919 = vadd.f32 0.0, %v1918
        %v1920 = vpop.f32.mrb[0].mxu0
        %1921 = vmatprep.mubr.bf16.mxu0 0
        %1922 = vmatmul.mubr.bf16.gmra.mrb[0].mxu0 %v1137
        %v1923 = vpop.f32.mrb[0].mxu0
        %v1924 = vadd.f32 0.0, %v1923
        %v1925 = vpop.f32.mrb[0].mxu0
        %v1926 = vpop.f32.mrb[0].mxu0
        %v1927 = vadd.f32 0.0, %v1926
        %v1928 = vpop.f32.mrb[0].mxu0
        %1929 = vmatprep.mubr.bf16.mxu0 0
        %1930 = vmatmul.mubr.bf16.gmra.mrb[0].mxu0 %v1138
        %v1931 = vpop.f32.mrb[0].mxu0
        %v1932 = vadd.f32 0.0, %v1931
        %v1933 = vpop.f32.mrb[0].mxu0
        %v1934 = vpop.f32.mrb[0].mxu0
        %v1935 = vadd.f32 0.0, %v1934
        %v1936 = vpop.f32.mrb[0].mxu0
        %1937 = vmatprep.mubr.bf16.mxu0 0
        %1938 = vmatmul.mubr.bf16.gmra.mrb[0].mxu0 %v1139
        %v1939 = vpop.f32.mrb[0].mxu0
        %v1940 = vadd.f32 0.0, %v1939
        %v1941 = vpop.f32.mrb[0].mxu0
        %v1942 = vpop.f32.mrb[0].mxu0
        %v1943 = vadd.f32 0.0, %v1942
        %v1944 = vpop.f32.mrb[0].mxu0
        %1945 = vmatprep.mubr.bf16.mxu0 0
        %1946 = vmatmul.mubr.bf16.gmra.mrb[0].mxu0 %v1140
        %v1947 = vpop.f32.mrb[0].mxu0
        %v1948 = vadd.f32 0.0, %v1947
        %v1949 = vpop.f32.mrb[0].mxu0
        %v1950 = vpop.f32.mrb[0].mxu0
        %v1951 = vadd.f32 0.0, %v1950
        %v1952 = vpop.f32.mrb[0].mxu0
        %1953 = vmatprep.mubr.bf16.mxu0 0
        %1954 = vmatmul.mubr.bf16.gmra.mrb[0].mxu0 %v1141
        %v1955 = vpop.f32.mrb[0].mxu0
        %v1956 = vadd.f32 0.0, %v1955
        %v1957 = vpop.f32.mrb[0].mxu0
        %v1958 = vpop.f32.mrb[0].mxu0
        %v1959 = vadd.f32 0.0, %v1958
        %v1960 = vpop.f32.mrb[0].mxu0
        %1961 = vmatprep.mubr.bf16.mxu0 0
        %1962 = vmatmul.mubr.bf16.gmra.mrb[0].mxu0 %v1142
        %v1963 = vpop.f32.mrb[0].mxu0
        %v1964 = vadd.f32 0.0, %v1963
        %v1965 = vpop.f32.mrb[0].mxu0
        %v1966 = vpop.f32.mrb[0].mxu0
        %v1967 = vadd.f32 0.0, %v1966
        %v1968 = vpop.f32.mrb[0].mxu0
        %1969 = vmatprep.mubr.bf16.mxu0 0
        %1970 = vmatmul.mubr.bf16.gmra.mrb[0].mxu0 %v1143
        %v1971 = vpop.f32.mrb[0].mxu0
        %v1972 = vadd.f32 0.0, %v1971
        %v1973 = vpop.f32.mrb[0].mxu0
        %v1974 = vpop.f32.mrb[0].mxu0
        %v1975 = vadd.f32 0.0, %v1974
        %v1976 = vpop.f32.mrb[0].mxu0
        %1977 = vmatprep.mubr.bf16.mxu0 0
        %1978 = vmatmul.mubr.bf16.gmra.mrb[0].mxu0 %v1144
        %v1979 = vpop.f32.mrb[0].mxu0
        %v1980 = vadd.f32 0.0, %v1979
        %v1981 = vpop.f32.mrb[0].mxu0
        %v1982 = vpop.f32.mrb[0].mxu0
        %v1983 = vadd.f32 0.0, %v1982
        %v1984 = vpop.f32.mrb[0].mxu0
        %1985 = vmatprep.mubr.bf16.mxu0 0
        %1986 = vmatmul.mubr.bf16.gmra.mrb[0].mxu0 %v1145
        %v1987 = vpop.f32.mrb[0].mxu0
        %v1988 = vadd.f32 0.0, %v1987
        %v1989 = vpop.f32.mrb[0].mxu0
        %v1990 = vpop.f32.mrb[0].mxu0
        %v1991 = vadd.f32 0.0, %v1990
        %v1992 = vpop.f32.mrb[0].mxu0
        %1993 = vmatprep.mubr.bf16.mxu0 0
        %1994 = vmatmul.mubr.bf16.gmra.mrb[0].mxu0 %v1146
        %v1995 = vpop.f32.mrb[0].mxu0
        %v1996 = vadd.f32 0.0, %v1995
        %v1997 = vpop.f32.mrb[0].mxu0
        %v1998 = vpop.f32.mrb[0].mxu0
        %v1999 = vadd.f32 0.0, %v1998
        %v2000 = vpop.f32.mrb[0].mxu0
        %2001 = vmatprep.mubr.bf16.mxu0 0
        %2002 = vmatmul.mubr.bf16.gmra.mrb[0].mxu0 %v1147
        %v2003 = vpop.f32.mrb[0].mxu0
        %v2004 = vadd.f32 0.0, %v2003
        %v2005 = vpop.f32.mrb[0].mxu0
        %v2006 = vpop.f32.mrb[0].mxu0
        %v2007 = vadd.f32 0.0, %v2006
        %v2008 = vpop.f32.mrb[0].mxu0
        %2009 = vmatprep.mubr.bf16.mxu0 0
        %2010 = vmatmul.mubr.bf16.gmra.mrb[0].mxu0 %v1148
        %v2011 = vpop.f32.mrb[0].mxu0
        %v2012 = vadd.f32 0.0, %v2011
        %v2013 = vpop.f32.mrb[0].mxu0
        %v2014 = vpop.f32.mrb[0].mxu0
        %v2015 = vadd.f32 0.0, %v2014
        %v2016 = vpop.f32.mrb[0].mxu0
        %2017 = vmatprep.mubr.bf16.mxu0 0
        %2018 = vmatmul.mubr.bf16.gmra.mrb[0].mxu0 %v1149
        %v2019 = vpop.f32.mrb[0].mxu0
        %v2020 = vadd.f32 0.0, %v2019
        %v2021 = vpop.f32.mrb[0].mxu0
        %v2022 = vpop.f32.mrb[0].mxu0
        %v2023 = vadd.f32 0.0, %v2022
        %v2024 = vpop.f32.mrb[0].mxu0
        %2025 = vmatprep.mubr.bf16.mxu0 0
        %2026 = vmatmul.mubr.bf16.gmra.mrb[0].mxu0 %v1150
        %v2027 = vpop.f32.mrb[0].mxu0
        %v2028 = vadd.f32 0.0, %v2027
        %v2029 = vpop.f32.mrb[0].mxu0
        %v2030 = vpop.f32.mrb[0].mxu0
        %v2031 = vadd.f32 0.0, %v2030
        %v2032 = vpop.f32.mrb[0].mxu0
        %2033 = vmatprep.mubr.bf16.mxu0 0
        %2034 = vmatmul.mubr.bf16.gmra.mrb[0].mxu0 %v1151
        %v2035 = vpop.f32.mrb[0].mxu0
        %v2036 = vadd.f32 0.0, %v2035
        %v2037 = vpop.f32.mrb[0].mxu0
        %v2038 = vpop.f32.mrb[0].mxu0
        %v2039 = vadd.f32 0.0, %v2038
        %v2040 = vpop.f32.mrb[0].mxu0
        %2041 = vmatprep.mubr.bf16.mxu0 0
        %2042 = vmatmul.mubr.bf16.gmra.mrb[0].mxu0 %v1152
        %v2043 = vpop.f32.mrb[0].mxu0
        %v2044 = vadd.f32 0.0, %v2043
        %v2045 = vpop.f32.mrb[0].mxu0
        %v2046 = vpop.f32.mrb[0].mxu0
        %v2047 = vadd.f32 0.0, %v2046
        %v2048 = vpop.f32.mrb[0].mxu0
        %2049 = vmatprep.mubr.bf16.mxu0 0
        %2050 = vmatmul.mubr.bf16.gmra.mrb[0].mxu0 %v1153
        %v2051 = vpop.f32.mrb[0].mxu0
        %v2052 = vadd.f32 0.0, %v2051
        %v2053 = vpop.f32.mrb[0].mxu0
        %v2054 = vpop.f32.mrb[0].mxu0
        %v2055 = vadd.f32 0.0, %v2054
        %v2056 = vpop.f32.mrb[0].mxu0
        %2057 = vmatprep.mubr.bf16.mxu0 0
        %2058 = vmatmul.mubr.bf16.gmra.mrb[0].mxu0 %v1154
        %v2059 = vpop.f32.mrb[0].mxu0
        %v2060 = vadd.f32 0.0, %v2059
        %v2061 = vpop.f32.mrb[0].mxu0
        %v2062 = vpop.f32.mrb[0].mxu0
        %v2063 = vadd.f32 0.0, %v2062
        %v2064 = vpop.f32.mrb[0].mxu0
        %2065 = vmatprep.mubr.bf16.mxu0 0
        %2066 = vmatmul.mubr.bf16.gmra.mrb[0].mxu0 %v1155
        %v2067 = vpop.f32.mrb[0].mxu0
        %v2068 = vadd.f32 0.0, %v2067
        %v2069 = vpop.f32.mrb[0].mxu0
        %v2070 = vpop.f32.mrb[0].mxu0
        %v2071 = vadd.f32 0.0, %v2070
        %v2072 = vpop.f32.mrb[0].mxu0
        %2073 = vmatprep.mubr.bf16.mxu0 0
        %2074 = vmatmul.mubr.bf16.gmra.mrb[0].mxu0 %v1156
        %v2075 = vpop.f32.mrb[0].mxu0
        %v2076 = vadd.f32 0.0, %v2075
        %v2077 = vpop.f32.mrb[0].mxu0
        %v2078 = vpop.f32.mrb[0].mxu0
        %v2079 = vadd.f32 0.0, %v2078
        %v2080 = vpop.f32.mrb[0].mxu0
        %2081 = vmatprep.mubr.bf16.mxu0 0
        %2082 = vmatmul.mubr.bf16.gmra.mrb[0].mxu0 %v1157
        %v2083 = vpop.f32.mrb[0].mxu0
        %v2084 = vadd.f32 0.0, %v2083
        %v2085 = vpop.f32.mrb[0].mxu0
        %v2086 = vpop.f32.mrb[0].mxu0
        %v2087 = vadd.f32 0.0, %v2086
        %v2088 = vpop.f32.mrb[0].mxu0
        %2089 = vmatprep.mubr.bf16.mxu0 0
        %2090 = vmatmul.mubr.bf16.gmra.mrb[0].mxu0 %v1158
        %v2091 = vpop.f32.mrb[0].mxu0
        %v2092 = vadd.f32 0.0, %v2091
        %v2093 = vpop.f32.mrb[0].mxu0
        %v2094 = vpop.f32.mrb[0].mxu0
        %v2095 = vadd.f32 0.0, %v2094
        %v2096 = vpop.f32.mrb[0].mxu0
        %2097 = vmatprep.mubr.bf16.mxu0 0
        %2098 = vmatmul.mubr.bf16.gmra.mrb[0].mxu0 %v1159
        %v2099 = vpop.f32.mrb[0].mxu0
        %v2100 = vadd.f32 0.0, %v2099
        %v2101 = vpop.f32.mrb[0].mxu0
        %v2102 = vpop.f32.mrb[0].mxu0
        %v2103 = vadd.f32 0.0, %v2102
        %v2104 = vpop.f32.mrb[0].mxu0
        %2105 = vmatprep.mubr.bf16.mxu0 0
        %2106 = vmatmul.mubr.bf16.gmra.mrb[0].mxu0 %v1160
        %v2107 = vpop.f32.mrb[0].mxu0
        %v2108 = vadd.f32 0.0, %v2107
        %v2109 = vpop.f32.mrb[0].mxu0
        %v2110 = vpop.f32.mrb[0].mxu0
        %v2111 = vadd.f32 0.0, %v2110
        %v2112 = vpop.f32.mrb[0].mxu0
        %2113 = vmatprep.mubr.bf16.mxu0 0
        %2114 = vmatmul.mubr.bf16.gmra.mrb[0].mxu0 %v1161
        %v2115 = vpop.f32.mrb[0].mxu0
        %v2116 = vadd.f32 0.0, %v2115
        %v2117 = vpop.f32.mrb[0].mxu0
        %v2118 = vpop.f32.mrb[0].mxu0
        %v2119 = vadd.f32 0.0, %v2118
        %v2120 = vpop.f32.mrb[0].mxu0
        %2121 = vmatprep.mubr.bf16.mxu0 0
        %2122 = vmatmul.mubr.bf16.gmra.mrb[0].mxu0 %v1162
        %v2123 = vpop.f32.mrb[0].mxu0
        %v2124 = vadd.f32 0.0, %v2123
        %v2125 = vpop.f32.mrb[0].mxu0
        %v2126 = vpop.f32.mrb[0].mxu0
        %v2127 = vadd.f32 0.0, %v2126
        %v2128 = vpop.f32.mrb[0].mxu0
        %2129 = vmatprep.mubr.bf16.mxu0 0
        %2130 = vmatmul.mubr.bf16.gmra.mrb[0].mxu0 %v1163
        %v2131 = vpop.f32.mrb[0].mxu0
        %v2132 = vadd.f32 0.0, %v2131
        %v2133 = vpop.f32.mrb[0].mxu0
        %v2134 = vpop.f32.mrb[0].mxu0
        %v2135 = vadd.f32 0.0, %v2134
        %v2136 = vpop.f32.mrb[0].mxu0
        %2137 = vmatprep.mubr.bf16.mxu0 0
        %2138 = vmatmul.mubr.bf16.gmra.mrb[0].mxu0 %v1164
        %v2139 = vpop.f32.mrb[0].mxu0
        %v2140 = vadd.f32 0.0, %v2139
        %v2141 = vpop.f32.mrb[0].mxu0
        %v2142 = vpop.f32.mrb[0].mxu0
        %v2143 = vadd.f32 0.0, %v2142
        %v2144 = vpop.f32.mrb[0].mxu0
        %2145 = vmatprep.mubr.bf16.mxu0 0
        %2146 = vmatmul.mubr.bf16.gmra.mrb[0].mxu0 %v1165
        %v2147 = vpop.f32.mrb[0].mxu0
        %v2148 = vadd.f32 0.0, %v2147
        %v2149 = vpop.f32.mrb[0].mxu0
        %v2150 = vpop.f32.mrb[0].mxu0
        %v2151 = vadd.f32 0.0, %v2150
        %v2152 = vpop.f32.mrb[0].mxu0
        %2153 = vmatprep.mubr.bf16.mxu0 0
        %2154 = vmatmul.mubr.bf16.gmra.mrb[0].mxu0 %v1166
        %v2155 = vpop.f32.mrb[0].mxu0
        %v2156 = vadd.f32 0.0, %v2155
        %v2157 = vpop.f32.mrb[0].mxu0
        %v2158 = vpop.f32.mrb[0].mxu0
        %v2159 = vadd.f32 0.0, %v2158
        %v2160 = vpop.f32.mrb[0].mxu0
        %2161 = vmatprep.mubr.bf16.mxu0 0
        %2162 = vmatmul.mubr.bf16.gmra.mrb[0].mxu0 %v1167
        %v2163 = vpop.f32.mrb[0].mxu0
        %v2164 = vadd.f32 0.0, %v2163
        %v2165 = vpop.f32.mrb[0].mxu0
        %v2166 = vpop.f32.mrb[0].mxu0
        %v2167 = vadd.f32 0.0, %v2166
        %v2168 = vpop.f32.mrb[0].mxu0
        %2169 = vmatprep.mubr.bf16.mxu0 0
        %2170 = vmatmul.mubr.bf16.gmra.mrb[0].mxu0 %v1168
        %v2171 = vpop.f32.mrb[0].mxu0
        %v2172 = vadd.f32 0.0, %v2171
        %v2173 = vpop.f32.mrb[0].mxu0
        %v2174 = vpop.f32.mrb[0].mxu0
        %v2175 = vadd.f32 0.0, %v2174
        %v2176 = vpop.f32.mrb[0].mxu0
        %2177 = vmatprep.mubr.bf16.mxu0 0
        %2178 = vmatmul.mubr.bf16.gmra.mrb[0].mxu0 %v1169
        %v2179 = vpop.f32.mrb[0].mxu0
        %v2180 = vadd.f32 0.0, %v2179
        %v2181 = vpop.f32.mrb[0].mxu0
        %v2182 = vpop.f32.mrb[0].mxu0
        %v2183 = vadd.f32 0.0, %v2182
        %v2184 = vpop.f32.mrb[0].mxu0
        %2185 = vmatprep.mubr.bf16.mxu0 0
        %2186 = vmatmul.mubr.bf16.gmra.mrb[0].mxu0 %v1170
        %v2187 = vpop.f32.mrb[0].mxu0
        %v2188 = vadd.f32 0.0, %v2187
        %v2189 = vpop.f32.mrb[0].mxu0
        %v2190 = vpop.f32.mrb[0].mxu0
        %v2191 = vadd.f32 0.0, %v2190
        %v2192 = vpop.f32.mrb[0].mxu0
        %2193 = vmatprep.mubr.bf16.mxu0 0
        %2194 = vmatmul.mubr.bf16.gmra.mrb[0].mxu0 %v1171
        %v2195 = vpop.f32.mrb[0].mxu0
        %v2196 = vadd.f32 0.0, %v2195
        %v2197 = vpop.f32.mrb[0].mxu0
        %v2198 = vpop.f32.mrb[0].mxu0
        %v2199 = vadd.f32 0.0, %v2198
        %v2200 = vpop.f32.mrb[0].mxu0
        %2201 = vmatprep.mubr.bf16.mxu0 0
        %2202 = vmatmul.mubr.bf16.gmra.mrb[0].mxu0 %v1172
        %v2203 = vpop.f32.mrb[0].mxu0
        %v2204 = vadd.f32 0.0, %v2203
        %v2205 = vpop.f32.mrb[0].mxu0
        %v2206 = vpop.f32.mrb[0].mxu0
        %v2207 = vadd.f32 0.0, %v2206
        %v2208 = vpop.f32.mrb[0].mxu0
        %2209 = vmatprep.mubr.bf16.mxu0 0
        %2210 = vmatmul.mubr.bf16.gmra.mrb[0].mxu0 %v1173
        %v2211 = vpop.f32.mrb[0].mxu0
        %v2212 = vadd.f32 0.0, %v2211
        %v2213 = vpop.f32.mrb[0].mxu0
        %v2214 = vpop.f32.mrb[0].mxu0
        %v2215 = vadd.f32 0.0, %v2214
        %v2216 = vpop.f32.mrb[0].mxu0
        %2217 = vmatprep.mubr.bf16.mxu0 0
        %2218 = vmatmul.mubr.bf16.gmra.mrb[0].mxu0 %v1174
        %v2219 = vpop.f32.mrb[0].mxu0
        %v2220 = vadd.f32 0.0, %v2219
        %v2221 = vpop.f32.mrb[0].mxu0
        %v2222 = vpop.f32.mrb[0].mxu0
        %v2223 = vadd.f32 0.0, %v2222
        %v2224 = vpop.f32.mrb[0].mxu0
        %2225 = vmatprep.mubr.bf16.mxu0 0
        %2226 = vmatmul.mubr.bf16.gmra.mrb[0].mxu0 %v1175
        %v2227 = vpop.f32.mrb[0].mxu0
        %v2228 = vadd.f32 0.0, %v2227
        %v2229 = vpop.f32.mrb[0].mxu0
        %v2230 = vpop.f32.mrb[0].mxu0
        %v2231 = vadd.f32 0.0, %v2230
        %v2232 = vpop.f32.mrb[0].mxu0
        %2233 = vmatprep.mubr.bf16.mxu0 0
        %2234 = vmatmul.mubr.bf16.gmra.mrb[0].mxu0 %v1176
        %v2235 = vpop.f32.mrb[0].mxu0
        %v2236 = vadd.f32 0.0, %v2235
        %v2237 = vpop.f32.mrb[0].mxu0
        %v2238 = vpop.f32.mrb[0].mxu0
        %v2239 = vadd.f32 0.0, %v2238
        %v2240 = vpop.f32.mrb[0].mxu0
        %2241 = vmatprep.mubr.bf16.mxu0 0
        %2242 = vmatmul.mubr.bf16.gmra.mrb[0].mxu0 %v1177
        %v2243 = vpop.f32.mrb[0].mxu0
        %v2244 = vadd.f32 0.0, %v2243
        %v2245 = vpop.f32.mrb[0].mxu0
        %v2246 = vpop.f32.mrb[0].mxu0
        %v2247 = vadd.f32 0.0, %v2246
        %v2248 = vpop.f32.mrb[0].mxu0
        %2249 = vmatprep.mubr.bf16.mxu0 0
        %2250 = vmatmul.mubr.bf16.gmra.mrb[0].mxu0 %v1178
        %v2251 = vpop.f32.mrb[0].mxu0
        %v2252 = vadd.f32 0.0, %v2251
        %v2253 = vpop.f32.mrb[0].mxu0
        %v2254 = vpop.f32.mrb[0].mxu0
        %v2255 = vadd.f32 0.0, %v2254
        %v2256 = vpop.f32.mrb[0].mxu0
        %2257 = vmatprep.mubr.bf16.mxu0 0
        %2258 = vmatmul.mubr.bf16.gmra.mrb[0].mxu0 %v1179
        %v2259 = vpop.f32.mrb[0].mxu0
        %v2260 = vadd.f32 0.0, %v2259
        %v2261 = vpop.f32.mrb[0].mxu0
        %v2262 = vpop.f32.mrb[0].mxu0
        %v2263 = vadd.f32 0.0, %v2262
        %v2264 = vpop.f32.mrb[0].mxu0
        %2265 = vmatprep.mubr.bf16.mxu0 0
        %2266 = vmatmul.mubr.bf16.gmra.mrb[0].mxu0 %v1180
        %v2267 = vpop.f32.mrb[0].mxu0
        %v2268 = vadd.f32 0.0, %v2267
        %v2269 = vpop.f32.mrb[0].mxu0
        %v2270 = vpop.f32.mrb[0].mxu0
        %v2271 = vadd.f32 0.0, %v2270
        %v2272 = vpop.f32.mrb[0].mxu0
        %2273 = vmatprep.mubr.bf16.mxu0 0
        %2274 = vmatmul.mubr.bf16.gmra.mrb[0].mxu0 %v1181
        %v2275 = vpop.f32.mrb[0].mxu0
        %v2276 = vadd.f32 0.0, %v2275
        %v2277 = vpop.f32.mrb[0].mxu0
        %v2278 = vpop.f32.mrb[0].mxu0
        %v2279 = vadd.f32 0.0, %v2278
        %v2280 = vpop.f32.mrb[0].mxu0
        %2281 = vmatprep.mubr.bf16.mxu0 0
        %2282 = vmatmul.mubr.bf16.gmra.mrb[0].mxu0 %v1182
        %v2283 = vpop.f32.mrb[0].mxu0
        %v2284 = vadd.f32 0.0, %v2283
        %v2285 = vpop.f32.mrb[0].mxu0
        %v2286 = vpop.f32.mrb[0].mxu0
        %v2287 = vadd.f32 0.0, %v2286
        %v2288 = vpop.f32.mrb[0].mxu0
        %2289 = vmatprep.mubr.bf16.mxu0 0
        %2290 = vmatmul.mubr.bf16.gmra.mrb[0].mxu0 %v1183
        %v2291 = vpop.f32.mrb[0].mxu0
        %v2292 = vadd.f32 0.0, %v2291
        %v2293 = vpop.f32.mrb[0].mxu0
        %v2294 = vpop.f32.mrb[0].mxu0
        %v2295 = vadd.f32 0.0, %v2294
        %v2296 = vpop.f32.mrb[0].mxu0
        %2297 = vmatprep.mubr.bf16.mxu0 0
        %2298 = vmatmul.mubr.bf16.gmra.mrb[0].mxu0 %v1184
        %v2299 = vpop.f32.mrb[0].mxu0
        %v2300 = vadd.f32 0.0, %v2299
        %v2301 = vpop.f32.mrb[0].mxu0
        %v2302 = vpop.f32.mrb[0].mxu0
        %v2303 = vadd.f32 0.0, %v2302
        %v2304 = vpop.f32.mrb[0].mxu0
        %2305 = vmatprep.mubr.bf16.mxu0 0
        %2306 = vmatmul.mubr.bf16.gmra.mrb[0].mxu0 %v1185
        %v2307 = vpop.f32.mrb[0].mxu0
        %v2308 = vadd.f32 0.0, %v2307
        %v2309 = vpop.f32.mrb[0].mxu0
        %v2310 = vpop.f32.mrb[0].mxu0
        %v2311 = vadd.f32 0.0, %v2310
        %v2312 = vpop.f32.mrb[0].mxu0
        %2313 = vmatprep.mubr.bf16.mxu0 0
        %2314 = vmatmul.mubr.bf16.gmra.mrb[0].mxu0 %v1186
        %v2315 = vpop.f32.mrb[0].mxu0
        %v2316 = vadd.f32 0.0, %v2315
        %v2317 = vpop.f32.mrb[0].mxu0
        %v2318 = vpop.f32.mrb[0].mxu0
        %v2319 = vadd.f32 0.0, %v2318
        %v2320 = vpop.f32.mrb[0].mxu0
        %2321 = vmatprep.mubr.bf16.mxu0 0
        %2322 = vmatmul.mubr.bf16.gmra.mrb[0].mxu0 %v1187
        %v2323 = vpop.f32.mrb[0].mxu0
        %v2324 = vadd.f32 0.0, %v2323
        %v2325 = vpop.f32.mrb[0].mxu0
        %v2326 = vpop.f32.mrb[0].mxu0
        %v2327 = vadd.f32 0.0, %v2326
        %v2328 = vpop.f32.mrb[0].mxu0
        %2329 = vmatprep.mubr.bf16.mxu0 0
        %2330 = vmatmul.mubr.bf16.gmra.mrb[0].mxu0 %v1188
        %v2331 = vpop.f32.mrb[0].mxu0
        %v2332 = vadd.f32 0.0, %v2331
        %v2333 = vpop.f32.mrb[0].mxu0
        %v2334 = vpop.f32.mrb[0].mxu0
        %v2335 = vadd.f32 0.0, %v2334
        %v2336 = vpop.f32.mrb[0].mxu0
        %2337 = vmatprep.mubr.bf16.mxu0 0
        %2338 = vmatmul.mubr.bf16.gmra.mrb[0].mxu0 %v1189
        %v2339 = vpop.f32.mrb[0].mxu0
        %v2340 = vadd.f32 0.0, %v2339
        %v2341 = vpop.f32.mrb[0].mxu0
        %v2342 = vpop.f32.mrb[0].mxu0
        %v2343 = vadd.f32 0.0, %v2342
        %v2344 = vpop.f32.mrb[0].mxu0
        %2345 = vmatprep.mubr.bf16.mxu0 0
        %2346 = vmatmul.mubr.bf16.gmra.mrb[0].mxu0 %v1190
        %v2347 = vpop.f32.mrb[0].mxu0
        %v2348 = vadd.f32 0.0, %v2347
        %v2349 = vpop.f32.mrb[0].mxu0
        %v2350 = vpop.f32.mrb[0].mxu0
        %v2351 = vadd.f32 0.0, %v2350
        %v2352 = vpop.f32.mrb[0].mxu0
        %2353 = vmatprep.mubr.bf16.mxu0 0
        %2354 = vmatmul.mubr.bf16.gmra.mrb[0].mxu0 %v1191
        %v2355 = vpop.f32.mrb[0].mxu0
        %v2356 = vadd.f32 0.0, %v2355
        %v2357 = vpop.f32.mrb[0].mxu0
        %v2358 = vpop.f32.mrb[0].mxu0
        %v2359 = vadd.f32 0.0, %v2358
        %v2360 = vpop.f32.mrb[0].mxu0
        %2361 = vmatprep.mubr.bf16.mxu0 0
        %2362 = vmatmul.mubr.bf16.gmra.mrb[0].mxu0 %v1192
        %v2363 = vpop.f32.mrb[0].mxu0
        %v2364 = vadd.f32 0.0, %v2363
        %v2365 = vpop.f32.mrb[0].mxu0
        %v2366 = vpop.f32.mrb[0].mxu0
        %v2367 = vadd.f32 0.0, %v2366
        %v2368 = vpop.f32.mrb[0].mxu0
        %2369 = vmatprep.mubr.bf16.mxu0 0
        %2370 = vmatmul.mubr.bf16.gmra.mrb[0].mxu0 %v1193
        %v2371 = vpop.f32.mrb[0].mxu0
        %v2372 = vadd.f32 0.0, %v2371
        %v2373 = vpop.f32.mrb[0].mxu0
        %v2374 = vpop.f32.mrb[0].mxu0
        %v2375 = vadd.f32 0.0, %v2374
        %v2376 = vpop.f32.mrb[0].mxu0
        %2377 = vmatprep.mubr.bf16.mxu0 0
        %2378 = vmatmul.mubr.bf16.gmra.mrb[0].mxu0 %v1194
        %v2379 = vpop.f32.mrb[0].mxu0
        %v2380 = vadd.f32 0.0, %v2379
        %v2381 = vpop.f32.mrb[0].mxu0
        %v2382 = vpop.f32.mrb[0].mxu0
        %v2383 = vadd.f32 0.0, %v2382
        %v2384 = vpop.f32.mrb[0].mxu0
        %2385 = vmatprep.mubr.bf16.mxu0 0
        %2386 = vmatmul.mubr.bf16.gmra.mrb[0].mxu0 %v1195
        %v2387 = vpop.f32.mrb[0].mxu0
        %v2388 = vadd.f32 0.0, %v2387
        %v2389 = vpop.f32.mrb[0].mxu0
        %v2390 = vpop.f32.mrb[0].mxu0
        %v2391 = vadd.f32 0.0, %v2390
        %v2392 = vpop.f32.mrb[0].mxu0
        %2393 = vmatprep.mubr.bf16.mxu0 0
        %2394 = vmatmul.mubr.bf16.gmra.mrb[0].mxu0 %v1196
        %v2395 = vpop.f32.mrb[0].mxu0
        %v2396 = vadd.f32 0.0, %v2395
        %v2397 = vpop.f32.mrb[0].mxu0
        %v2398 = vpop.f32.mrb[0].mxu0
        %v2399 = vadd.f32 0.0, %v2398
        %v2400 = vpop.f32.mrb[0].mxu0
        %2401 = vmatprep.mubr.bf16.mxu0 0
        %2402 = vmatmul.mubr.bf16.gmra.mrb[0].mxu0 %v1197
        %v2403 = vpop.f32.mrb[0].mxu0
        %v2404 = vadd.f32 0.0, %v2403
        %v2405 = vpop.f32.mrb[0].mxu0
        %v2406 = vpop.f32.mrb[0].mxu0
        %v2407 = vadd.f32 0.0, %v2406
        %v2408 = vpop.f32.mrb[0].mxu0
        %2409 = vmatprep.mubr.bf16.mxu0 0
        %2410 = vmatmul.mubr.bf16.gmra.mrb[0].mxu0 %v1198
        %v2411 = vpop.f32.mrb[0].mxu0
        %v2412 = vadd.f32 0.0, %v2411
        %v2413 = vpop.f32.mrb[0].mxu0
        %v2414 = vpop.f32.mrb[0].mxu0
        %v2415 = vadd.f32 0.0, %v2414
        %v2416 = vpop.f32.mrb[0].mxu0
        %2417 = vmatprep.mubr.bf16.mxu0 0
        %2418 = vmatmul.mubr.bf16.gmra.mrb[0].mxu0 %v1199
        %v2419 = vpop.f32.mrb[0].mxu0
        %v2420 = vadd.f32 0.0, %v2419
        %v2421 = vpop.f32.mrb[0].mxu0
        %v2422 = vpop.f32.mrb[0].mxu0
        %v2423 = vadd.f32 0.0, %v2422
        %v2424 = vpop.f32.mrb[0].mxu0
        %2425 = vmatprep.mubr.bf16.mxu0 0
        %2426 = vmatmul.mubr.bf16.gmra.mrb[0].mxu0 %v1200
        %v2427 = vpop.f32.mrb[0].mxu0
        %v2428 = vadd.f32 0.0, %v2427
        %v2429 = vpop.f32.mrb[0].mxu0
        %v2430 = vpop.f32.mrb[0].mxu0
        %v2431 = vadd.f32 0.0, %v2430
        %v2432 = vpop.f32.mrb[0].mxu0
        %2433 = vdwg.mxu0
        %p2434 = scmp.eq.s32.totalorder %s26, 0
        // Predicated region
        $region33: #{conv2d_nhwc.1} parent=31 // pred_check
          %p2435 = pneg %p2434
        $region34: #{conv2d_nhwc.1} parent=31 // pred_check_branch
          %2437 = sbr.rel (%p2435) target = $region36
        $region35: #{conv2d_nhwc.1} parent=31 // pred_region
          %2438 = vst [vmem:[#allocation2] sm:$0xff] %v1412
          %2439 = vst [vmem:[#allocation2 + $0x8] sm:$0xff] %v1415
          %2440 = vst [vmem:[#allocation2 + $0x10] sm:$0xff] %v1420
          %2441 = vst [vmem:[#allocation2 + $0x18] sm:$0xff] %v1423
          %2442 = vst [vmem:[#allocation2 + $0x20] sm:$0xff] %v1428
          %2443 = vst [vmem:[#allocation2 + $0x28] sm:$0xff] %v1431
          %2444 = vst [vmem:[#allocation2 + $0x30] sm:$0xff] %v1436
          %2445 = vst [vmem:[#allocation2 + $0x38] sm:$0xff] %v1439
          %2446 = vst [vmem:[#allocation2 + $0x40] sm:$0xff] %v1444
          %2447 = vst [vmem:[#allocation2 + $0x48] sm:$0xff] %v1447
          %2448 = vst [vmem:[#allocation2 + $0x50] sm:$0xff] %v1452
          %2449 = vst [vmem:[#allocation2 + $0x58] sm:$0xff] %v1455
          %2450 = vst [vmem:[#allocation2 + $0x60] sm:$0xff] %v1460
          %2451 = vst [vmem:[#allocation2 + $0x68] sm:$0xff] %v1463
          %2452 = vst [vmem:[#allocation2 + $0x70] sm:$0xff] %v1468
          %2453 = vst [vmem:[#allocation2 + $0x78] sm:$0xff] %v1471
          %2454 = vst [vmem:[#allocation2 + $0x80] sm:$0xff] %v1476
          %2455 = vst [vmem:[#allocation2 + $0x88] sm:$0xff] %v1479
          %2456 = vst [vmem:[#allocation2 + $0x90] sm:$0xff] %v1484
          %2457 = vst [vmem:[#allocation2 + $0x98] sm:$0xff] %v1487
          %2458 = vst [vmem:[#allocation2 + $0xa0] sm:$0xff] %v1492
          %2459 = vst [vmem:[#allocation2 + $0xa8] sm:$0xff] %v1495
          %2460 = vst [vmem:[#allocation2 + $0xb0] sm:$0xff] %v1500
          %2461 = vst [vmem:[#allocation2 + $0xb8] sm:$0xff] %v1503
          %2462 = vst [vmem:[#allocation2 + $0xc0] sm:$0xff] %v1508
          %2463 = vst [vmem:[#allocation2 + $0xc8] sm:$0xff] %v1511
          %2464 = vst [vmem:[#allocation2 + $0xd0] sm:$0xff] %v1516
          %2465 = vst [vmem:[#allocation2 + $0xd8] sm:$0xff] %v1519
          %2466 = vst [vmem:[#allocation2 + $0xe0] sm:$0xff] %v1524
          %2467 = vst [vmem:[#allocation2 + $0xe8] sm:$0xff] %v1527
          %2468 = vst [vmem:[#allocation2 + $0xf0] sm:$0xff] %v1532
          %2469 = vst [vmem:[#allocation2 + $0xf8] sm:$0xff] %v1535
          %2470 = vst [vmem:[#allocation2 + $0x100] sm:$0xff] %v1540
          %2471 = vst [vmem:[#allocation2 + $0x108] sm:$0xff] %v1543
          %2472 = vst [vmem:[#allocation2 + $0x110] sm:$0xff] %v1548
          %2473 = vst [vmem:[#allocation2 + $0x118] sm:$0xff] %v1551
          %2474 = vst [vmem:[#allocation2 + $0x120] sm:$0xff] %v1556
          %2475 = vst [vmem:[#allocation2 + $0x128] sm:$0xff] %v1559
          %2476 = vst [vmem:[#allocation2 + $0x130] sm:$0xff] %v1564
          %2477 = vst [vmem:[#allocation2 + $0x138] sm:$0xff] %v1567
          %2478 = vst [vmem:[#allocation2 + $0x140] sm:$0xff] %v1572
          %2479 = vst [vmem:[#allocation2 + $0x148] sm:$0xff] %v1575
          %2480 = vst [vmem:[#allocation2 + $0x150] sm:$0xff] %v1580
          %2481 = vst [vmem:[#allocation2 + $0x158] sm:$0xff] %v1583
          %2482 = vst [vmem:[#allocation2 + $0x160] sm:$0xff] %v1588
          %2483 = vst [vmem:[#allocation2 + $0x168] sm:$0xff] %v1591
          %2484 = vst [vmem:[#allocation2 + $0x170] sm:$0xff] %v1596
          %2485 = vst [vmem:[#allocation2 + $0x178] sm:$0xff] %v1599
          %2486 = vst [vmem:[#allocation2 + $0x180] sm:$0xff] %v1604
          %2487 = vst [vmem:[#allocation2 + $0x188] sm:$0xff] %v1607
          %2488 = vst [vmem:[#allocation2 + $0x190] sm:$0xff] %v1612
          %2489 = vst [vmem:[#allocation2 + $0x198] sm:$0xff] %v1615
          %2490 = vst [vmem:[#allocation2 + $0x1a0] sm:$0xff] %v1620
          %2491 = vst [vmem:[#allocation2 + $0x1a8] sm:$0xff] %v1623
          %2492 = vst [vmem:[#allocation2 + $0x1b0] sm:$0xff] %v1628
          %2493 = vst [vmem:[#allocation2 + $0x1b8] sm:$0xff] %v1631
          %2494 = vst [vmem:[#allocation2 + $0x1c0] sm:$0xff] %v1636
          %2495 = vst [vmem:[#allocation2 + $0x1c8] sm:$0xff] %v1639
          %2496 = vst [vmem:[#allocation2 + $0x1d0] sm:$0xff] %v1644
          %2497 = vst [vmem:[#allocation2 + $0x1d8] sm:$0xff] %v1647
          %2498 = vst [vmem:[#allocation2 + $0x1e0] sm:$0xff] %v1652
          %2499 = vst [vmem:[#allocation2 + $0x1e8] sm:$0xff] %v1655
          %2500 = vst [vmem:[#allocation2 + $0x1f0] sm:$0xff] %v1660
          %2501 = vst [vmem:[#allocation2 + $0x1f8] sm:$0xff] %v1663
          %2502 = vst [vmem:[#allocation2 + $0x200] sm:$0xff] %v1668
          %2503 = vst [vmem:[#allocation2 + $0x208] sm:$0xff] %v1671
          %2504 = vst [vmem:[#allocation2 + $0x210] sm:$0xff] %v1676
          %2505 = vst [vmem:[#allocation2 + $0x218] sm:$0xff] %v1679
          %2506 = vst [vmem:[#allocation2 + $0x220] sm:$0xff] %v1684
          %2507 = vst [vmem:[#allocation2 + $0x228] sm:$0xff] %v1687
          %2508 = vst [vmem:[#allocation2 + $0x230] sm:$0xff] %v1692
          %2509 = vst [vmem:[#allocation2 + $0x238] sm:$0xff] %v1695
          %2510 = vst [vmem:[#allocation2 + $0x240] sm:$0xff] %v1700
          %2511 = vst [vmem:[#allocation2 + $0x248] sm:$0xff] %v1703
          %2512 = vst [vmem:[#allocation2 + $0x250] sm:$0xff] %v1708
          %2513 = vst [vmem:[#allocation2 + $0x258] sm:$0xff] %v1711
          %2514 = vst [vmem:[#allocation2 + $0x260] sm:$0xff] %v1716
          %2515 = vst [vmem:[#allocation2 + $0x268] sm:$0xff] %v1719
          %2516 = vst [vmem:[#allocation2 + $0x270] sm:$0xff] %v1724
          %2517 = vst [vmem:[#allocation2 + $0x278] sm:$0xff] %v1727
          %2518 = vst [vmem:[#allocation2 + $0x280] sm:$0xff] %v1732
          %2519 = vst [vmem:[#allocation2 + $0x288] sm:$0xff] %v1735
          %2520 = vst [vmem:[#allocation2 + $0x290] sm:$0xff] %v1740
          %2521 = vst [vmem:[#allocation2 + $0x298] sm:$0xff] %v1743
          %2522 = vst [vmem:[#allocation2 + $0x2a0] sm:$0xff] %v1748
          %2523 = vst [vmem:[#allocation2 + $0x2a8] sm:$0xff] %v1751
          %2524 = vst [vmem:[#allocation2 + $0x2b0] sm:$0xff] %v1756
          %2525 = vst [vmem:[#allocation2 + $0x2b8] sm:$0xff] %v1759
          %2526 = vst [vmem:[#allocation2 + $0x2c0] sm:$0xff] %v1764
          %2527 = vst [vmem:[#allocation2 + $0x2c8] sm:$0xff] %v1767
          %2528 = vst [vmem:[#allocation2 + $0x2d0] sm:$0xff] %v1772
          %2529 = vst [vmem:[#allocation2 + $0x2d8] sm:$0xff] %v1775
          %2530 = vst [vmem:[#allocation2 + $0x2e0] sm:$0xff] %v1780
          %2531 = vst [vmem:[#allocation2 + $0x2e8] sm:$0xff] %v1783
          %2532 = vst [vmem:[#allocation2 + $0x2f0] sm:$0xff] %v1788
          %2533 = vst [vmem:[#allocation2 + $0x2f8] sm:$0xff] %v1791
          %2534 = vst [vmem:[#allocation2 + $0x300] sm:$0xff] %v1796
          %2535 = vst [vmem:[#allocation2 + $0x308] sm:$0xff] %v1799
          %2536 = vst [vmem:[#allocation2 + $0x310] sm:$0xff] %v1804
          %2537 = vst [vmem:[#allocation2 + $0x318] sm:$0xff] %v1807
          %2538 = vst [vmem:[#allocation2 + $0x320] sm:$0xff] %v1812
          %2539 = vst [vmem:[#allocation2 + $0x328] sm:$0xff] %v1815
          %2540 = vst [vmem:[#allocation2 + $0x330] sm:$0xff] %v1820
          %2541 = vst [vmem:[#allocation2 + $0x338] sm:$0xff] %v1823
          %2542 = vst [vmem:[#allocation2 + $0x340] sm:$0xff] %v1828
          %2543 = vst [vmem:[#allocation2 + $0x348] sm:$0xff] %v1831
          %2544 = vst [vmem:[#allocation2 + $0x350] sm:$0xff] %v1836
          %2545 = vst [vmem:[#allocation2 + $0x358] sm:$0xff] %v1839
          %2546 = vst [vmem:[#allocation2 + $0x360] sm:$0xff] %v1844
          %2547 = vst [vmem:[#allocation2 + $0x368] sm:$0xff] %v1847
          %2548 = vst [vmem:[#allocation2 + $0x370] sm:$0xff] %v1852
          %2549 = vst [vmem:[#allocation2 + $0x378] sm:$0xff] %v1855
          %2550 = vst [vmem:[#allocation2 + $0x380] sm:$0xff] %v1860
          %2551 = vst [vmem:[#allocation2 + $0x388] sm:$0xff] %v1863
          %2552 = vst [vmem:[#allocation2 + $0x390] sm:$0xff] %v1868
          %2553 = vst [vmem:[#allocation2 + $0x398] sm:$0xff] %v1871
          %2554 = vst [vmem:[#allocation2 + $0x3a0] sm:$0xff] %v1876
          %2555 = vst [vmem:[#allocation2 + $0x3a8] sm:$0xff] %v1879
          %2556 = vst [vmem:[#allocation2 + $0x3b0] sm:$0xff] %v1884
          %2557 = vst [vmem:[#allocation2 + $0x3b8] sm:$0xff] %v1887
          %2558 = vst [vmem:[#allocation2 + $0x3c0] sm:$0xff] %v1892
          %2559 = vst [vmem:[#allocation2 + $0x3c8] sm:$0xff] %v1895
          %2560 = vst [vmem:[#allocation2 + $0x3d0] sm:$0xff] %v1900
          %2561 = vst [vmem:[#allocation2 + $0x3d8] sm:$0xff] %v1903
          %2562 = vst [vmem:[#allocation2 + $0x3e0] sm:$0xff] %v1908
          %2563 = vst [vmem:[#allocation2 + $0x3e8] sm:$0xff] %v1911
          %2564 = vst [vmem:[#allocation2 + $0x3f0] sm:$0xff] %v1916
          %2565 = vst [vmem:[#allocation2 + $0x3f8] sm:$0xff] %v1919
          %2566 = vst [vmem:[#allocation2 + $0x400] sm:$0xff] %v1924
          %2567 = vst [vmem:[#allocation2 + $0x408] sm:$0xff] %v1927
          %2568 = vst [vmem:[#allocation2 + $0x410] sm:$0xff] %v1932
          %2569 = vst [vmem:[#allocation2 + $0x418] sm:$0xff] %v1935
          %2570 = vst [vmem:[#allocation2 + $0x420] sm:$0xff] %v1940
          %2571 = vst [vmem:[#allocation2 + $0x428] sm:$0xff] %v1943
          %2572 = vst [vmem:[#allocation2 + $0x430] sm:$0xff] %v1948
          %2573 = vst [vmem:[#allocation2 + $0x438] sm:$0xff] %v1951
          %2574 = vst [vmem:[#allocation2 + $0x440] sm:$0xff] %v1956
          %2575 = vst [vmem:[#allocation2 + $0x448] sm:$0xff] %v1959
          %2576 = vst [vmem:[#allocation2 + $0x450] sm:$0xff] %v1964
          %2577 = vst [vmem:[#allocation2 + $0x458] sm:$0xff] %v1967
          %2578 = vst [vmem:[#allocation2 + $0x460] sm:$0xff] %v1972
          %2579 = vst [vmem:[#allocation2 + $0x468] sm:$0xff] %v1975
          %2580 = vst [vmem:[#allocation2 + $0x470] sm:$0xff] %v1980
          %2581 = vst [vmem:[#allocation2 + $0x478] sm:$0xff] %v1983
          %2582 = vst [vmem:[#allocation2 + $0x480] sm:$0xff] %v1988
          %2583 = vst [vmem:[#allocation2 + $0x488] sm:$0xff] %v1991
          %2584 = vst [vmem:[#allocation2 + $0x490] sm:$0xff] %v1996
          %2585 = vst [vmem:[#allocation2 + $0x498] sm:$0xff] %v1999
          %2586 = vst [vmem:[#allocation2 + $0x4a0] sm:$0xff] %v2004
          %2587 = vst [vmem:[#allocation2 + $0x4a8] sm:$0xff] %v2007
          %2588 = vst [vmem:[#allocation2 + $0x4b0] sm:$0xff] %v2012
          %2589 = vst [vmem:[#allocation2 + $0x4b8] sm:$0xff] %v2015
          %2590 = vst [vmem:[#allocation2 + $0x4c0] sm:$0xff] %v2020
          %2591 = vst [vmem:[#allocation2 + $0x4c8] sm:$0xff] %v2023
          %2592 = vst [vmem:[#allocation2 + $0x4d0] sm:$0xff] %v2028
          %2593 = vst [vmem:[#allocation2 + $0x4d8] sm:$0xff] %v2031
          %2594 = vst [vmem:[#allocation2 + $0x4e0] sm:$0xff] %v2036
          %2595 = vst [vmem:[#allocation2 + $0x4e8] sm:$0xff] %v2039
          %2596 = vst [vmem:[#allocation2 + $0x4f0] sm:$0xff] %v2044
          %2597 = vst [vmem:[#allocation2 + $0x4f8] sm:$0xff] %v2047
          %2598 = vst [vmem:[#allocation2 + $0x500] sm:$0xff] %v2052
          %2599 = vst [vmem:[#allocation2 + $0x508] sm:$0xff] %v2055
          %2600 = vst [vmem:[#allocation2 + $0x510] sm:$0xff] %v2060
          %2601 = vst [vmem:[#allocation2 + $0x518] sm:$0xff] %v2063
          %2602 = vst [vmem:[#allocation2 + $0x520] sm:$0xff] %v2068
          %2603 = vst [vmem:[#allocation2 + $0x528] sm:$0xff] %v2071
          %2604 = vst [vmem:[#allocation2 + $0x530] sm:$0xff] %v2076
          %2605 = vst [vmem:[#allocation2 + $0x538] sm:$0xff] %v2079
          %2606 = vst [vmem:[#allocation2 + $0x540] sm:$0xff] %v2084
          %2607 = vst [vmem:[#allocation2 + $0x548] sm:$0xff] %v2087
          %2608 = vst [vmem:[#allocation2 + $0x550] sm:$0xff] %v2092
          %2609 = vst [vmem:[#allocation2 + $0x558] sm:$0xff] %v2095
          %2610 = vst [vmem:[#allocation2 + $0x560] sm:$0xff] %v2100
          %2611 = vst [vmem:[#allocation2 + $0x568] sm:$0xff] %v2103
          %2612 = vst [vmem:[#allocation2 + $0x570] sm:$0xff] %v2108
          %2613 = vst [vmem:[#allocation2 + $0x578] sm:$0xff] %v2111
          %2614 = vst [vmem:[#allocation2 + $0x580] sm:$0xff] %v2116
          %2615 = vst [vmem:[#allocation2 + $0x588] sm:$0xff] %v2119
          %2616 = vst [vmem:[#allocation2 + $0x590] sm:$0xff] %v2124
          %2617 = vst [vmem:[#allocation2 + $0x598] sm:$0xff] %v2127
          %2618 = vst [vmem:[#allocation2 + $0x5a0] sm:$0xff] %v2132
          %2619 = vst [vmem:[#allocation2 + $0x5a8] sm:$0xff] %v2135
          %2620 = vst [vmem:[#allocation2 + $0x5b0] sm:$0xff] %v2140
          %2621 = vst [vmem:[#allocation2 + $0x5b8] sm:$0xff] %v2143
          %2622 = vst [vmem:[#allocation2 + $0x5c0] sm:$0xff] %v2148
          %2623 = vst [vmem:[#allocation2 + $0x5c8] sm:$0xff] %v2151
          %2624 = vst [vmem:[#allocation2 + $0x5d0] sm:$0xff] %v2156
          %2625 = vst [vmem:[#allocation2 + $0x5d8] sm:$0xff] %v2159
          %2626 = vst [vmem:[#allocation2 + $0x5e0] sm:$0xff] %v2164
          %2627 = vst [vmem:[#allocation2 + $0x5e8] sm:$0xff] %v2167
          %2628 = vst [vmem:[#allocation2 + $0x5f0] sm:$0xff] %v2172
          %2629 = vst [vmem:[#allocation2 + $0x5f8] sm:$0xff] %v2175
          %2630 = vst [vmem:[#allocation2 + $0x600] sm:$0xff] %v2180
          %2631 = vst [vmem:[#allocation2 + $0x608] sm:$0xff] %v2183
          %2632 = vst [vmem:[#allocation2 + $0x610] sm:$0xff] %v2188
          %2633 = vst [vmem:[#allocation2 + $0x618] sm:$0xff] %v2191
          %2634 = vst [vmem:[#allocation2 + $0x620] sm:$0xff] %v2196
          %2635 = vst [vmem:[#allocation2 + $0x628] sm:$0xff] %v2199
          %2636 = vst [vmem:[#allocation2 + $0x630] sm:$0xff] %v2204
          %2637 = vst [vmem:[#allocation2 + $0x638] sm:$0xff] %v2207
          %2638 = vst [vmem:[#allocation2 + $0x640] sm:$0xff] %v2212
          %2639 = vst [vmem:[#allocation2 + $0x648] sm:$0xff] %v2215
          %2640 = vst [vmem:[#allocation2 + $0x650] sm:$0xff] %v2220
          %2641 = vst [vmem:[#allocation2 + $0x658] sm:$0xff] %v2223
          %2642 = vst [vmem:[#allocation2 + $0x660] sm:$0xff] %v2228
          %2643 = vst [vmem:[#allocation2 + $0x668] sm:$0xff] %v2231
          %2644 = vst [vmem:[#allocation2 + $0x670] sm:$0xff] %v2236
          %2645 = vst [vmem:[#allocation2 + $0x678] sm:$0xff] %v2239
          %2646 = vst [vmem:[#allocation2 + $0x680] sm:$0xff] %v2244
          %2647 = vst [vmem:[#allocation2 + $0x688] sm:$0xff] %v2247
          %2648 = vst [vmem:[#allocation2 + $0x690] sm:$0xff] %v2252
          %2649 = vst [vmem:[#allocation2 + $0x698] sm:$0xff] %v2255
          %2650 = vst [vmem:[#allocation2 + $0x6a0] sm:$0xff] %v2260
          %2651 = vst [vmem:[#allocation2 + $0x6a8] sm:$0xff] %v2263
          %2652 = vst [vmem:[#allocation2 + $0x6b0] sm:$0xff] %v2268
          %2653 = vst [vmem:[#allocation2 + $0x6b8] sm:$0xff] %v2271
          %2654 = vst [vmem:[#allocation2 + $0x6c0] sm:$0xff] %v2276
          %2655 = vst [vmem:[#allocation2 + $0x6c8] sm:$0xff] %v2279
          %2656 = vst [vmem:[#allocation2 + $0x6d0] sm:$0xff] %v2284
          %2657 = vst [vmem:[#allocation2 + $0x6d8] sm:$0xff] %v2287
          %2658 = vst [vmem:[#allocation2 + $0x6e0] sm:$0xff] %v2292
          %2659 = vst [vmem:[#allocation2 + $0x6e8] sm:$0xff] %v2295
          %2660 = vst [vmem:[#allocation2 + $0x6f0] sm:$0xff] %v2300
          %2661 = vst [vmem:[#allocation2 + $0x6f8] sm:$0xff] %v2303
          %2662 = vst [vmem:[#allocation2 + $0x700] sm:$0xff] %v2308
          %2663 = vst [vmem:[#allocation2 + $0x708] sm:$0xff] %v2311
          %2664 = vst [vmem:[#allocation2 + $0x710] sm:$0xff] %v2316
          %2665 = vst [vmem:[#allocation2 + $0x718] sm:$0xff] %v2319
          %2666 = vst [vmem:[#allocation2 + $0x720] sm:$0xff] %v2324
          %2667 = vst [vmem:[#allocation2 + $0x728] sm:$0xff] %v2327
          %2668 = vst [vmem:[#allocation2 + $0x730] sm:$0xff] %v2332
          %2669 = vst [vmem:[#allocation2 + $0x738] sm:$0xff] %v2335
          %2670 = vst [vmem:[#allocation2 + $0x740] sm:$0xff] %v2340
          %2671 = vst [vmem:[#allocation2 + $0x748] sm:$0xff] %v2343
          %2672 = vst [vmem:[#allocation2 + $0x750] sm:$0xff] %v2348
          %2673 = vst [vmem:[#allocation2 + $0x758] sm:$0xff] %v2351
          %2674 = vst [vmem:[#allocation2 + $0x760] sm:$0xff] %v2356
          %2675 = vst [vmem:[#allocation2 + $0x768] sm:$0xff] %v2359
          %2676 = vst [vmem:[#allocation2 + $0x770] sm:$0xff] %v2364
          %2677 = vst [vmem:[#allocation2 + $0x778] sm:$0xff] %v2367
          %2678 = vst [vmem:[#allocation2 + $0x780] sm:$0xff] %v2372
          %2679 = vst [vmem:[#allocation2 + $0x788] sm:$0xff] %v2375
          %2680 = vst [vmem:[#allocation2 + $0x790] sm:$0xff] %v2380
          %2681 = vst [vmem:[#allocation2 + $0x798] sm:$0xff] %v2383
          %2682 = vst [vmem:[#allocation2 + $0x7a0] sm:$0xff] %v2388
          %2683 = vst [vmem:[#allocation2 + $0x7a8] sm:$0xff] %v2391
          %2684 = vst [vmem:[#allocation2 + $0x7b0] sm:$0xff] %v2396
          %2685 = vst [vmem:[#allocation2 + $0x7b8] sm:$0xff] %v2399
          %2686 = vst [vmem:[#allocation2 + $0x7c0] sm:$0xff] %v2404
          %2687 = vst [vmem:[#allocation2 + $0x7c8] sm:$0xff] %v2407
          %2688 = vst [vmem:[#allocation2 + $0x7d0] sm:$0xff] %v2412
          %2689 = vst [vmem:[#allocation2 + $0x7d8] sm:$0xff] %v2415
          %2690 = vst [vmem:[#allocation2 + $0x7e0] sm:$0xff] %v2420
          %2691 = vst [vmem:[#allocation2 + $0x7e8] sm:$0xff] %v2423
          %2692 = vst [vmem:[#allocation2 + $0x7f0] sm:$0xff] %v2428
          %2693 = vst [vmem:[#allocation2 + $0x7f8] sm:$0xff] %v2431
        $region36: #{conv2d_nhwc.1} parent=31 // pred_fallthru
          _
        %p2694 = scmp.gt.s32.totalorder %s26, 0
        // Predicated region
        $region37: #{conv2d_nhwc.1} parent=31 // pred_check
          %p2695 = pneg %p2694
        $region38: #{conv2d_nhwc.1} parent=31 // pred_check_branch
          %2697 = sbr.rel (%p2695) target = $region40
        $region39: #{conv2d_nhwc.1} parent=31 // pred_region
          %v2698 = vld [vmem:[#allocation2] sm:$0xff]
          %v2699 = vld [vmem:[#allocation2 + $0x8] sm:$0xff]
          %v2700 = vld [vmem:[#allocation2 + $0x10] sm:$0xff]
          %v2701 = vld [vmem:[#allocation2 + $0x18] sm:$0xff]
          %v2702 = vld [vmem:[#allocation2 + $0x20] sm:$0xff]
          %v2703 = vld [vmem:[#allocation2 + $0x28] sm:$0xff]
          %v2704 = vld [vmem:[#allocation2 + $0x30] sm:$0xff]
          %v2705 = vld [vmem:[#allocation2 + $0x38] sm:$0xff]
          %v2706 = vld [vmem:[#allocation2 + $0x40] sm:$0xff]
          %v2707 = vld [vmem:[#allocation2 + $0x48] sm:$0xff]
          %v2708 = vld [vmem:[#allocation2 + $0x50] sm:$0xff]
          %v2709 = vld [vmem:[#allocation2 + $0x58] sm:$0xff]
          %v2710 = vld [vmem:[#allocation2 + $0x60] sm:$0xff]
          %v2711 = vld [vmem:[#allocation2 + $0x68] sm:$0xff]
          %v2712 = vld [vmem:[#allocation2 + $0x70] sm:$0xff]
          %v2713 = vld [vmem:[#allocation2 + $0x78] sm:$0xff]
          %v2714 = vld [vmem:[#allocation2 + $0x80] sm:$0xff]
          %v2715 = vld [vmem:[#allocation2 + $0x88] sm:$0xff]
          %v2716 = vld [vmem:[#allocation2 + $0x90] sm:$0xff]
          %v2717 = vld [vmem:[#allocation2 + $0x98] sm:$0xff]
          %v2718 = vld [vmem:[#allocation2 + $0xa0] sm:$0xff]
          %v2719 = vld [vmem:[#allocation2 + $0xa8] sm:$0xff]
          %v2720 = vld [vmem:[#allocation2 + $0xb0] sm:$0xff]
          %v2721 = vld [vmem:[#allocation2 + $0xb8] sm:$0xff]
          %v2722 = vld [vmem:[#allocation2 + $0xc0] sm:$0xff]
          %v2723 = vld [vmem:[#allocation2 + $0xc8] sm:$0xff]
          %v2724 = vld [vmem:[#allocation2 + $0xd0] sm:$0xff]
          %v2725 = vld [vmem:[#allocation2 + $0xd8] sm:$0xff]
          %v2726 = vld [vmem:[#allocation2 + $0xe0] sm:$0xff]
          %v2727 = vld [vmem:[#allocation2 + $0xe8] sm:$0xff]
          %v2728 = vld [vmem:[#allocation2 + $0xf0] sm:$0xff]
          %v2729 = vld [vmem:[#allocation2 + $0xf8] sm:$0xff]
          %v2730 = vld [vmem:[#allocation2 + $0x100] sm:$0xff]
          %v2731 = vld [vmem:[#allocation2 + $0x108] sm:$0xff]
          %v2732 = vld [vmem:[#allocation2 + $0x110] sm:$0xff]
          %v2733 = vld [vmem:[#allocation2 + $0x118] sm:$0xff]
          %v2734 = vld [vmem:[#allocation2 + $0x120] sm:$0xff]
          %v2735 = vld [vmem:[#allocation2 + $0x128] sm:$0xff]
          %v2736 = vld [vmem:[#allocation2 + $0x130] sm:$0xff]
          %v2737 = vld [vmem:[#allocation2 + $0x138] sm:$0xff]
          %v2738 = vld [vmem:[#allocation2 + $0x140] sm:$0xff]
          %v2739 = vld [vmem:[#allocation2 + $0x148] sm:$0xff]
          %v2740 = vld [vmem:[#allocation2 + $0x150] sm:$0xff]
          %v2741 = vld [vmem:[#allocation2 + $0x158] sm:$0xff]
          %v2742 = vld [vmem:[#allocation2 + $0x160] sm:$0xff]
          %v2743 = vld [vmem:[#allocation2 + $0x168] sm:$0xff]
          %v2744 = vld [vmem:[#allocation2 + $0x170] sm:$0xff]
          %v2745 = vld [vmem:[#allocation2 + $0x178] sm:$0xff]
          %v2746 = vld [vmem:[#allocation2 + $0x180] sm:$0xff]
          %v2747 = vld [vmem:[#allocation2 + $0x188] sm:$0xff]
          %v2748 = vld [vmem:[#allocation2 + $0x190] sm:$0xff]
          %v2749 = vld [vmem:[#allocation2 + $0x198] sm:$0xff]
          %v2750 = vld [vmem:[#allocation2 + $0x1a0] sm:$0xff]
          %v2751 = vld [vmem:[#allocation2 + $0x1a8] sm:$0xff]
          %v2752 = vld [vmem:[#allocation2 + $0x1b0] sm:$0xff]
          %v2753 = vld [vmem:[#allocation2 + $0x1b8] sm:$0xff]
          %v2754 = vld [vmem:[#allocation2 + $0x1c0] sm:$0xff]
          %v2755 = vld [vmem:[#allocation2 + $0x1c8] sm:$0xff]
          %v2756 = vld [vmem:[#allocation2 + $0x1d0] sm:$0xff]
          %v2757 = vld [vmem:[#allocation2 + $0x1d8] sm:$0xff]
          %v2758 = vld [vmem:[#allocation2 + $0x1e0] sm:$0xff]
          %v2759 = vld [vmem:[#allocation2 + $0x1e8] sm:$0xff]
          %v2760 = vld [vmem:[#allocation2 + $0x1f0] sm:$0xff]
          %v2761 = vld [vmem:[#allocation2 + $0x1f8] sm:$0xff]
          %v2762 = vld [vmem:[#allocation2 + $0x200] sm:$0xff]
          %v2763 = vld [vmem:[#allocation2 + $0x208] sm:$0xff]
          %v2764 = vld [vmem:[#allocation2 + $0x210] sm:$0xff]
          %v2765 = vld [vmem:[#allocation2 + $0x218] sm:$0xff]
          %v2766 = vld [vmem:[#allocation2 + $0x220] sm:$0xff]
          %v2767 = vld [vmem:[#allocation2 + $0x228] sm:$0xff]
          %v2768 = vld [vmem:[#allocation2 + $0x230] sm:$0xff]
          %v2769 = vld [vmem:[#allocation2 + $0x238] sm:$0xff]
          %v2770 = vld [vmem:[#allocation2 + $0x240] sm:$0xff]
          %v2771 = vld [vmem:[#allocation2 + $0x248] sm:$0xff]
          %v2772 = vld [vmem:[#allocation2 + $0x250] sm:$0xff]
          %v2773 = vld [vmem:[#allocation2 + $0x258] sm:$0xff]
          %v2774 = vld [vmem:[#allocation2 + $0x260] sm:$0xff]
          %v2775 = vld [vmem:[#allocation2 + $0x268] sm:$0xff]
          %v2776 = vld [vmem:[#allocation2 + $0x270] sm:$0xff]
          %v2777 = vld [vmem:[#allocation2 + $0x278] sm:$0xff]
          %v2778 = vld [vmem:[#allocation2 + $0x280] sm:$0xff]
          %v2779 = vld [vmem:[#allocation2 + $0x288] sm:$0xff]
          %v2780 = vld [vmem:[#allocation2 + $0x290] sm:$0xff]
          %v2781 = vld [vmem:[#allocation2 + $0x298] sm:$0xff]
          %v2782 = vld [vmem:[#allocation2 + $0x2a0] sm:$0xff]
          %v2783 = vld [vmem:[#allocation2 + $0x2a8] sm:$0xff]
          %v2784 = vld [vmem:[#allocation2 + $0x2b0] sm:$0xff]
          %v2785 = vld [vmem:[#allocation2 + $0x2b8] sm:$0xff]
          %v2786 = vld [vmem:[#allocation2 + $0x2c0] sm:$0xff]
          %v2787 = vld [vmem:[#allocation2 + $0x2c8] sm:$0xff]
          %v2788 = vld [vmem:[#allocation2 + $0x2d0] sm:$0xff]
          %v2789 = vld [vmem:[#allocation2 + $0x2d8] sm:$0xff]
          %v2790 = vld [vmem:[#allocation2 + $0x2e0] sm:$0xff]
          %v2791 = vld [vmem:[#allocation2 + $0x2e8] sm:$0xff]
          %v2792 = vld [vmem:[#allocation2 + $0x2f0] sm:$0xff]
          %v2793 = vld [vmem:[#allocation2 + $0x2f8] sm:$0xff]
          %v2794 = vld [vmem:[#allocation2 + $0x300] sm:$0xff]
          %v2795 = vld [vmem:[#allocation2 + $0x308] sm:$0xff]
          %v2796 = vld [vmem:[#allocation2 + $0x310] sm:$0xff]
          %v2797 = vld [vmem:[#allocation2 + $0x318] sm:$0xff]
          %v2798 = vld [vmem:[#allocation2 + $0x320] sm:$0xff]
          %v2799 = vld [vmem:[#allocation2 + $0x328] sm:$0xff]
          %v2800 = vld [vmem:[#allocation2 + $0x330] sm:$0xff]
          %v2801 = vld [vmem:[#allocation2 + $0x338] sm:$0xff]
          %v2802 = vld [vmem:[#allocation2 + $0x340] sm:$0xff]
          %v2803 = vld [vmem:[#allocation2 + $0x348] sm:$0xff]
          %v2804 = vld [vmem:[#allocation2 + $0x350] sm:$0xff]
          %v2805 = vld [vmem:[#allocation2 + $0x358] sm:$0xff]
          %v2806 = vld [vmem:[#allocation2 + $0x360] sm:$0xff]
          %v2807 = vld [vmem:[#allocation2 + $0x368] sm:$0xff]
          %v2808 = vld [vmem:[#allocation2 + $0x370] sm:$0xff]
          %v2809 = vld [vmem:[#allocation2 + $0x378] sm:$0xff]
          %v2810 = vld [vmem:[#allocation2 + $0x380] sm:$0xff]
          %v2811 = vld [vmem:[#allocation2 + $0x388] sm:$0xff]
          %v2812 = vld [vmem:[#allocation2 + $0x390] sm:$0xff]
          %v2813 = vld [vmem:[#allocation2 + $0x398] sm:$0xff]
          %v2814 = vld [vmem:[#allocation2 + $0x3a0] sm:$0xff]
          %v2815 = vld [vmem:[#allocation2 + $0x3a8] sm:$0xff]
          %v2816 = vld [vmem:[#allocation2 + $0x3b0] sm:$0xff]
          %v2817 = vld [vmem:[#allocation2 + $0x3b8] sm:$0xff]
          %v2818 = vld [vmem:[#allocation2 + $0x3c0] sm:$0xff]
          %v2819 = vld [vmem:[#allocation2 + $0x3c8] sm:$0xff]
          %v2820 = vld [vmem:[#allocation2 + $0x3d0] sm:$0xff]
          %v2821 = vld [vmem:[#allocation2 + $0x3d8] sm:$0xff]
          %v2822 = vld [vmem:[#allocation2 + $0x3e0] sm:$0xff]
          %v2823 = vld [vmem:[#allocation2 + $0x3e8] sm:$0xff]
          %v2824 = vld [vmem:[#allocation2 + $0x3f0] sm:$0xff]
          %v2825 = vld [vmem:[#allocation2 + $0x3f8] sm:$0xff]
          %v2826 = vld [vmem:[#allocation2 + $0x400] sm:$0xff]
          %v2827 = vld [vmem:[#allocation2 + $0x408] sm:$0xff]
          %v2828 = vld [vmem:[#allocation2 + $0x410] sm:$0xff]
          %v2829 = vld [vmem:[#allocation2 + $0x418] sm:$0xff]
          %v2830 = vld [vmem:[#allocation2 + $0x420] sm:$0xff]
          %v2831 = vld [vmem:[#allocation2 + $0x428] sm:$0xff]
          %v2832 = vld [vmem:[#allocation2 + $0x430] sm:$0xff]
          %v2833 = vld [vmem:[#allocation2 + $0x438] sm:$0xff]
          %v2834 = vld [vmem:[#allocation2 + $0x440] sm:$0xff]
          %v2835 = vld [vmem:[#allocation2 + $0x448] sm:$0xff]
          %v2836 = vld [vmem:[#allocation2 + $0x450] sm:$0xff]
          %v2837 = vld [vmem:[#allocation2 + $0x458] sm:$0xff]
          %v2838 = vld [vmem:[#allocation2 + $0x460] sm:$0xff]
          %v2839 = vld [vmem:[#allocation2 + $0x468] sm:$0xff]
          %v2840 = vld [vmem:[#allocation2 + $0x470] sm:$0xff]
          %v2841 = vld [vmem:[#allocation2 + $0x478] sm:$0xff]
          %v2842 = vld [vmem:[#allocation2 + $0x480] sm:$0xff]
          %v2843 = vld [vmem:[#allocation2 + $0x488] sm:$0xff]
          %v2844 = vld [vmem:[#allocation2 + $0x490] sm:$0xff]
          %v2845 = vld [vmem:[#allocation2 + $0x498] sm:$0xff]
          %v2846 = vld [vmem:[#allocation2 + $0x4a0] sm:$0xff]
          %v2847 = vld [vmem:[#allocation2 + $0x4a8] sm:$0xff]
          %v2848 = vld [vmem:[#allocation2 + $0x4b0] sm:$0xff]
          %v2849 = vld [vmem:[#allocation2 + $0x4b8] sm:$0xff]
          %v2850 = vld [vmem:[#allocation2 + $0x4c0] sm:$0xff]
          %v2851 = vld [vmem:[#allocation2 + $0x4c8] sm:$0xff]
          %v2852 = vld [vmem:[#allocation2 + $0x4d0] sm:$0xff]
          %v2853 = vld [vmem:[#allocation2 + $0x4d8] sm:$0xff]
          %v2854 = vld [vmem:[#allocation2 + $0x4e0] sm:$0xff]
          %v2855 = vld [vmem:[#allocation2 + $0x4e8] sm:$0xff]
          %v2856 = vld [vmem:[#allocation2 + $0x4f0] sm:$0xff]
          %v2857 = vld [vmem:[#allocation2 + $0x4f8] sm:$0xff]
          %v2858 = vld [vmem:[#allocation2 + $0x500] sm:$0xff]
          %v2859 = vld [vmem:[#allocation2 + $0x508] sm:$0xff]
          %v2860 = vld [vmem:[#allocation2 + $0x510] sm:$0xff]
          %v2861 = vld [vmem:[#allocation2 + $0x518] sm:$0xff]
          %v2862 = vld [vmem:[#allocation2 + $0x520] sm:$0xff]
          %v2863 = vld [vmem:[#allocation2 + $0x528] sm:$0xff]
          %v2864 = vld [vmem:[#allocation2 + $0x530] sm:$0xff]
          %v2865 = vld [vmem:[#allocation2 + $0x538] sm:$0xff]
          %v2866 = vld [vmem:[#allocation2 + $0x540] sm:$0xff]
          %v2867 = vld [vmem:[#allocation2 + $0x548] sm:$0xff]
          %v2868 = vld [vmem:[#allocation2 + $0x550] sm:$0xff]
          %v2869 = vld [vmem:[#allocation2 + $0x558] sm:$0xff]
          %v2870 = vld [vmem:[#allocation2 + $0x560] sm:$0xff]
          %v2871 = vld [vmem:[#allocation2 + $0x568] sm:$0xff]
          %v2872 = vld [vmem:[#allocation2 + $0x570] sm:$0xff]
          %v2873 = vld [vmem:[#allocation2 + $0x578] sm:$0xff]
          %v2874 = vld [vmem:[#allocation2 + $0x580] sm:$0xff]
          %v2875 = vld [vmem:[#allocation2 + $0x588] sm:$0xff]
          %v2876 = vld [vmem:[#allocation2 + $0x590] sm:$0xff]
          %v2877 = vld [vmem:[#allocation2 + $0x598] sm:$0xff]
          %v2878 = vld [vmem:[#allocation2 + $0x5a0] sm:$0xff]
          %v2879 = vld [vmem:[#allocation2 + $0x5a8] sm:$0xff]
          %v2880 = vld [vmem:[#allocation2 + $0x5b0] sm:$0xff]
          %v2881 = vld [vmem:[#allocation2 + $0x5b8] sm:$0xff]
          %v2882 = vld [vmem:[#allocation2 + $0x5c0] sm:$0xff]
          %v2883 = vld [vmem:[#allocation2 + $0x5c8] sm:$0xff]
          %v2884 = vld [vmem:[#allocation2 + $0x5d0] sm:$0xff]
          %v2885 = vld [vmem:[#allocation2 + $0x5d8] sm:$0xff]
          %v2886 = vld [vmem:[#allocation2 + $0x5e0] sm:$0xff]
          %v2887 = vld [vmem:[#allocation2 + $0x5e8] sm:$0xff]
          %v2888 = vld [vmem:[#allocation2 + $0x5f0] sm:$0xff]
          %v2889 = vld [vmem:[#allocation2 + $0x5f8] sm:$0xff]
          %v2890 = vld [vmem:[#allocation2 + $0x600] sm:$0xff]
          %v2891 = vld [vmem:[#allocation2 + $0x608] sm:$0xff]
          %v2892 = vld [vmem:[#allocation2 + $0x610] sm:$0xff]
          %v2893 = vld [vmem:[#allocation2 + $0x618] sm:$0xff]
          %v2894 = vld [vmem:[#allocation2 + $0x620] sm:$0xff]
          %v2895 = vld [vmem:[#allocation2 + $0x628] sm:$0xff]
          %v2896 = vld [vmem:[#allocation2 + $0x630] sm:$0xff]
          %v2897 = vld [vmem:[#allocation2 + $0x638] sm:$0xff]
          %v2898 = vld [vmem:[#allocation2 + $0x640] sm:$0xff]
          %v2899 = vld [vmem:[#allocation2 + $0x648] sm:$0xff]
          %v2900 = vld [vmem:[#allocation2 + $0x650] sm:$0xff]
          %v2901 = vld [vmem:[#allocation2 + $0x658] sm:$0xff]
          %v2902 = vld [vmem:[#allocation2 + $0x660] sm:$0xff]
          %v2903 = vld [vmem:[#allocation2 + $0x668] sm:$0xff]
          %v2904 = vld [vmem:[#allocation2 + $0x670] sm:$0xff]
          %v2905 = vld [vmem:[#allocation2 + $0x678] sm:$0xff]
          %v2906 = vld [vmem:[#allocation2 + $0x680] sm:$0xff]
          %v2907 = vld [vmem:[#allocation2 + $0x688] sm:$0xff]
          %v2908 = vld [vmem:[#allocation2 + $0x690] sm:$0xff]
          %v2909 = vld [vmem:[#allocation2 + $0x698] sm:$0xff]
          %v2910 = vld [vmem:[#allocation2 + $0x6a0] sm:$0xff]
          %v2911 = vld [vmem:[#allocation2 + $0x6a8] sm:$0xff]
          %v2912 = vld [vmem:[#allocation2 + $0x6b0] sm:$0xff]
          %v2913 = vld [vmem:[#allocation2 + $0x6b8] sm:$0xff]
          %v2914 = vld [vmem:[#allocation2 + $0x6c0] sm:$0xff]
          %v2915 = vld [vmem:[#allocation2 + $0x6c8] sm:$0xff]
          %v2916 = vld [vmem:[#allocation2 + $0x6d0] sm:$0xff]
          %v2917 = vld [vmem:[#allocation2 + $0x6d8] sm:$0xff]
          %v2918 = vld [vmem:[#allocation2 + $0x6e0] sm:$0xff]
          %v2919 = vld [vmem:[#allocation2 + $0x6e8] sm:$0xff]
          %v2920 = vld [vmem:[#allocation2 + $0x6f0] sm:$0xff]
          %v2921 = vld [vmem:[#allocation2 + $0x6f8] sm:$0xff]
          %v2922 = vld [vmem:[#allocation2 + $0x700] sm:$0xff]
          %v2923 = vld [vmem:[#allocation2 + $0x708] sm:$0xff]
          %v2924 = vld [vmem:[#allocation2 + $0x710] sm:$0xff]
          %v2925 = vld [vmem:[#allocation2 + $0x718] sm:$0xff]
          %v2926 = vld [vmem:[#allocation2 + $0x720] sm:$0xff]
          %v2927 = vld [vmem:[#allocation2 + $0x728] sm:$0xff]
          %v2928 = vld [vmem:[#allocation2 + $0x730] sm:$0xff]
          %v2929 = vld [vmem:[#allocation2 + $0x738] sm:$0xff]
          %v2930 = vld [vmem:[#allocation2 + $0x740] sm:$0xff]
          %v2931 = vld [vmem:[#allocation2 + $0x748] sm:$0xff]
          %v2932 = vld [vmem:[#allocation2 + $0x750] sm:$0xff]
          %v2933 = vld [vmem:[#allocation2 + $0x758] sm:$0xff]
          %v2934 = vld [vmem:[#allocation2 + $0x760] sm:$0xff]
          %v2935 = vld [vmem:[#allocation2 + $0x768] sm:$0xff]
          %v2936 = vld [vmem:[#allocation2 + $0x770] sm:$0xff]
          %v2937 = vld [vmem:[#allocation2 + $0x778] sm:$0xff]
          %v2938 = vld [vmem:[#allocation2 + $0x780] sm:$0xff]
          %v2939 = vld [vmem:[#allocation2 + $0x788] sm:$0xff]
          %v2940 = vld [vmem:[#allocation2 + $0x790] sm:$0xff]
          %v2941 = vld [vmem:[#allocation2 + $0x798] sm:$0xff]
          %v2942 = vld [vmem:[#allocation2 + $0x7a0] sm:$0xff]
          %v2943 = vld [vmem:[#allocation2 + $0x7a8] sm:$0xff]
          %v2944 = vld [vmem:[#allocation2 + $0x7b0] sm:$0xff]
          %v2945 = vld [vmem:[#allocation2 + $0x7b8] sm:$0xff]
          %v2946 = vld [vmem:[#allocation2 + $0x7c0] sm:$0xff]
          %v2947 = vld [vmem:[#allocation2 + $0x7c8] sm:$0xff]
          %v2948 = vld [vmem:[#allocation2 + $0x7d0] sm:$0xff]
          %v2949 = vld [vmem:[#allocation2 + $0x7d8] sm:$0xff]
          %v2950 = vld [vmem:[#allocation2 + $0x7e0] sm:$0xff]
          %v2951 = vld [vmem:[#allocation2 + $0x7e8] sm:$0xff]
          %v2952 = vld [vmem:[#allocation2 + $0x7f0] sm:$0xff]
          %v2953 = vld [vmem:[#allocation2 + $0x7f8] sm:$0xff]
          %v2954 = vadd.f32 %v2698, %v1412
          %v2955 = vadd.f32 %v2699, %v1415
          %v2956 = vadd.f32 %v2700, %v1420
          %v2957 = vadd.f32 %v2701, %v1423
          %v2958 = vadd.f32 %v2702, %v1428
          %v2959 = vadd.f32 %v2703, %v1431
          %v2960 = vadd.f32 %v2704, %v1436
          %v2961 = vadd.f32 %v2705, %v1439
          %v2962 = vadd.f32 %v2706, %v1444
          %v2963 = vadd.f32 %v2707, %v1447
          %v2964 = vadd.f32 %v2708, %v1452
          %v2965 = vadd.f32 %v2709, %v1455
          %v2966 = vadd.f32 %v2710, %v1460
          %v2967 = vadd.f32 %v2711, %v1463
          %v2968 = vadd.f32 %v2712, %v1468
          %v2969 = vadd.f32 %v2713, %v1471
          %v2970 = vadd.f32 %v2714, %v1476
          %v2971 = vadd.f32 %v2715, %v1479
          %v2972 = vadd.f32 %v2716, %v1484
          %v2973 = vadd.f32 %v2717, %v1487
          %v2974 = vadd.f32 %v2718, %v1492
          %v2975 = vadd.f32 %v2719, %v1495
          %v2976 = vadd.f32 %v2720, %v1500
          %v2977 = vadd.f32 %v2721, %v1503
          %v2978 = vadd.f32 %v2722, %v1508
          %v2979 = vadd.f32 %v2723, %v1511
          %v2980 = vadd.f32 %v2724, %v1516
          %v2981 = vadd.f32 %v2725, %v1519
          %v2982 = vadd.f32 %v2726, %v1524
          %v2983 = vadd.f32 %v2727, %v1527
          %v2984 = vadd.f32 %v2728, %v1532
          %v2985 = vadd.f32 %v2729, %v1535
          %v2986 = vadd.f32 %v2730, %v1540
          %v2987 = vadd.f32 %v2731, %v1543
          %v2988 = vadd.f32 %v2732, %v1548
          %v2989 = vadd.f32 %v2733, %v1551
          %v2990 = vadd.f32 %v2734, %v1556
          %v2991 = vadd.f32 %v2735, %v1559
          %v2992 = vadd.f32 %v2736, %v1564
          %v2993 = vadd.f32 %v2737, %v1567
          %v2994 = vadd.f32 %v2738, %v1572
          %v2995 = vadd.f32 %v2739, %v1575
          %v2996 = vadd.f32 %v2740, %v1580
          %v2997 = vadd.f32 %v2741, %v1583
          %v2998 = vadd.f32 %v2742, %v1588
          %v2999 = vadd.f32 %v2743, %v1591
          %v3000 = vadd.f32 %v2744, %v1596
          %v3001 = vadd.f32 %v2745, %v1599
          %v3002 = vadd.f32 %v2746, %v1604
          %v3003 = vadd.f32 %v2747, %v1607
          %v3004 = vadd.f32 %v2748, %v1612
          %v3005 = vadd.f32 %v2749, %v1615
          %v3006 = vadd.f32 %v2750, %v1620
          %v3007 = vadd.f32 %v2751, %v1623
          %v3008 = vadd.f32 %v2752, %v1628
          %v3009 = vadd.f32 %v2753, %v1631
          %v3010 = vadd.f32 %v2754, %v1636
          %v3011 = vadd.f32 %v2755, %v1639
          %v3012 = vadd.f32 %v2756, %v1644
          %v3013 = vadd.f32 %v2757, %v1647
          %v3014 = vadd.f32 %v2758, %v1652
          %v3015 = vadd.f32 %v2759, %v1655
          %v3016 = vadd.f32 %v2760, %v1660
          %v3017 = vadd.f32 %v2761, %v1663
          %v3018 = vadd.f32 %v2762, %v1668
          %v3019 = vadd.f32 %v2763, %v1671
          %v3020 = vadd.f32 %v2764, %v1676
          %v3021 = vadd.f32 %v2765, %v1679
          %v3022 = vadd.f32 %v2766, %v1684
          %v3023 = vadd.f32 %v2767, %v1687
          %v3024 = vadd.f32 %v2768, %v1692
          %v3025 = vadd.f32 %v2769, %v1695
          %v3026 = vadd.f32 %v2770, %v1700
          %v3027 = vadd.f32 %v2771, %v1703
          %v3028 = vadd.f32 %v2772, %v1708
          %v3029 = vadd.f32 %v2773, %v1711
          %v3030 = vadd.f32 %v2774, %v1716
          %v3031 = vadd.f32 %v2775, %v1719
          %v3032 = vadd.f32 %v2776, %v1724
          %v3033 = vadd.f32 %v2777, %v1727
          %v3034 = vadd.f32 %v2778, %v1732
          %v3035 = vadd.f32 %v2779, %v1735
          %v3036 = vadd.f32 %v2780, %v1740
          %v3037 = vadd.f32 %v2781, %v1743
          %v3038 = vadd.f32 %v2782, %v1748
          %v3039 = vadd.f32 %v2783, %v1751
          %v3040 = vadd.f32 %v2784, %v1756
          %v3041 = vadd.f32 %v2785, %v1759
          %v3042 = vadd.f32 %v2786, %v1764
          %v3043 = vadd.f32 %v2787, %v1767
          %v3044 = vadd.f32 %v2788, %v1772
          %v3045 = vadd.f32 %v2789, %v1775
          %v3046 = vadd.f32 %v2790, %v1780
          %v3047 = vadd.f32 %v2791, %v1783
          %v3048 = vadd.f32 %v2792, %v1788
          %v3049 = vadd.f32 %v2793, %v1791
          %v3050 = vadd.f32 %v2794, %v1796
          %v3051 = vadd.f32 %v2795, %v1799
          %v3052 = vadd.f32 %v2796, %v1804
          %v3053 = vadd.f32 %v2797, %v1807
          %v3054 = vadd.f32 %v2798, %v1812
          %v3055 = vadd.f32 %v2799, %v1815
          %v3056 = vadd.f32 %v2800, %v1820
          %v3057 = vadd.f32 %v2801, %v1823
          %v3058 = vadd.f32 %v2802, %v1828
          %v3059 = vadd.f32 %v2803, %v1831
          %v3060 = vadd.f32 %v2804, %v1836
          %v3061 = vadd.f32 %v2805, %v1839
          %v3062 = vadd.f32 %v2806, %v1844
          %v3063 = vadd.f32 %v2807, %v1847
          %v3064 = vadd.f32 %v2808, %v1852
          %v3065 = vadd.f32 %v2809, %v1855
          %v3066 = vadd.f32 %v2810, %v1860
          %v3067 = vadd.f32 %v2811, %v1863
          %v3068 = vadd.f32 %v2812, %v1868
          %v3069 = vadd.f32 %v2813, %v1871
          %v3070 = vadd.f32 %v2814, %v1876
          %v3071 = vadd.f32 %v2815, %v1879
          %v3072 = vadd.f32 %v2816, %v1884
          %v3073 = vadd.f32 %v2817, %v1887
          %v3074 = vadd.f32 %v2818, %v1892
          %v3075 = vadd.f32 %v2819, %v1895
          %v3076 = vadd.f32 %v2820, %v1900
          %v3077 = vadd.f32 %v2821, %v1903
          %v3078 = vadd.f32 %v2822, %v1908
          %v3079 = vadd.f32 %v2823, %v1911
          %v3080 = vadd.f32 %v2824, %v1916
          %v3081 = vadd.f32 %v2825, %v1919
          %v3082 = vadd.f32 %v2826, %v1924
          %v3083 = vadd.f32 %v2827, %v1927
          %v3084 = vadd.f32 %v2828, %v1932
          %v3085 = vadd.f32 %v2829, %v1935
          %v3086 = vadd.f32 %v2830, %v1940
          %v3087 = vadd.f32 %v2831, %v1943
          %v3088 = vadd.f32 %v2832, %v1948
          %v3089 = vadd.f32 %v2833, %v1951
          %v3090 = vadd.f32 %v2834, %v1956
          %v3091 = vadd.f32 %v2835, %v1959
          %v3092 = vadd.f32 %v2836, %v1964
          %v3093 = vadd.f32 %v2837, %v1967
          %v3094 = vadd.f32 %v2838, %v1972
          %v3095 = vadd.f32 %v2839, %v1975
          %v3096 = vadd.f32 %v2840, %v1980
          %v3097 = vadd.f32 %v2841, %v1983
          %v3098 = vadd.f32 %v2842, %v1988
          %v3099 = vadd.f32 %v2843, %v1991
          %v3100 = vadd.f32 %v2844, %v1996
          %v3101 = vadd.f32 %v2845, %v1999
          %v3102 = vadd.f32 %v2846, %v2004
          %v3103 = vadd.f32 %v2847, %v2007
          %v3104 = vadd.f32 %v2848, %v2012
          %v3105 = vadd.f32 %v2849, %v2015
          %v3106 = vadd.f32 %v2850, %v2020
          %v3107 = vadd.f32 %v2851, %v2023
          %v3108 = vadd.f32 %v2852, %v2028
          %v3109 = vadd.f32 %v2853, %v2031
          %v3110 = vadd.f32 %v2854, %v2036
          %v3111 = vadd.f32 %v2855, %v2039
          %v3112 = vadd.f32 %v2856, %v2044
          %v3113 = vadd.f32 %v2857, %v2047
          %v3114 = vadd.f32 %v2858, %v2052
          %v3115 = vadd.f32 %v2859, %v2055
          %v3116 = vadd.f32 %v2860, %v2060
          %v3117 = vadd.f32 %v2861, %v2063
          %v3118 = vadd.f32 %v2862, %v2068
          %v3119 = vadd.f32 %v2863, %v2071
          %v3120 = vadd.f32 %v2864, %v2076
          %v3121 = vadd.f32 %v2865, %v2079
          %v3122 = vadd.f32 %v2866, %v2084
          %v3123 = vadd.f32 %v2867, %v2087
          %v3124 = vadd.f32 %v2868, %v2092
          %v3125 = vadd.f32 %v2869, %v2095
          %v3126 = vadd.f32 %v2870, %v2100
          %v3127 = vadd.f32 %v2871, %v2103
          %v3128 = vadd.f32 %v2872, %v2108
          %v3129 = vadd.f32 %v2873, %v2111
          %v3130 = vadd.f32 %v2874, %v2116
          %v3131 = vadd.f32 %v2875, %v2119
          %v3132 = vadd.f32 %v2876, %v2124
          %v3133 = vadd.f32 %v2877, %v2127
          %v3134 = vadd.f32 %v2878, %v2132
          %v3135 = vadd.f32 %v2879, %v2135
          %v3136 = vadd.f32 %v2880, %v2140
          %v3137 = vadd.f32 %v2881, %v2143
          %v3138 = vadd.f32 %v2882, %v2148
          %v3139 = vadd.f32 %v2883, %v2151
          %v3140 = vadd.f32 %v2884, %v2156
          %v3141 = vadd.f32 %v2885, %v2159
          %v3142 = vadd.f32 %v2886, %v2164
          %v3143 = vadd.f32 %v2887, %v2167
          %v3144 = vadd.f32 %v2888, %v2172
          %v3145 = vadd.f32 %v2889, %v2175
          %v3146 = vadd.f32 %v2890, %v2180
          %v3147 = vadd.f32 %v2891, %v2183
          %v3148 = vadd.f32 %v2892, %v2188
          %v3149 = vadd.f32 %v2893, %v2191
          %v3150 = vadd.f32 %v2894, %v2196
          %v3151 = vadd.f32 %v2895, %v2199
          %v3152 = vadd.f32 %v2896, %v2204
          %v3153 = vadd.f32 %v2897, %v2207
          %v3154 = vadd.f32 %v2898, %v2212
          %v3155 = vadd.f32 %v2899, %v2215
          %v3156 = vadd.f32 %v2900, %v2220
          %v3157 = vadd.f32 %v2901, %v2223
          %v3158 = vadd.f32 %v2902, %v2228
          %v3159 = vadd.f32 %v2903, %v2231
          %v3160 = vadd.f32 %v2904, %v2236
          %v3161 = vadd.f32 %v2905, %v2239
          %v3162 = vadd.f32 %v2906, %v2244
          %v3163 = vadd.f32 %v2907, %v2247
          %v3164 = vadd.f32 %v2908, %v2252
          %v3165 = vadd.f32 %v2909, %v2255
          %v3166 = vadd.f32 %v2910, %v2260
          %v3167 = vadd.f32 %v2911, %v2263
          %v3168 = vadd.f32 %v2912, %v2268
          %v3169 = vadd.f32 %v2913, %v2271
          %v3170 = vadd.f32 %v2914, %v2276
          %v3171 = vadd.f32 %v2915, %v2279
          %v3172 = vadd.f32 %v2916, %v2284
          %v3173 = vadd.f32 %v2917, %v2287
          %v3174 = vadd.f32 %v2918, %v2292
          %v3175 = vadd.f32 %v2919, %v2295
          %v3176 = vadd.f32 %v2920, %v2300
          %v3177 = vadd.f32 %v2921, %v2303
          %v3178 = vadd.f32 %v2922, %v2308
          %v3179 = vadd.f32 %v2923, %v2311
          %v3180 = vadd.f32 %v2924, %v2316
          %v3181 = vadd.f32 %v2925, %v2319
          %v3182 = vadd.f32 %v2926, %v2324
          %v3183 = vadd.f32 %v2927, %v2327
          %v3184 = vadd.f32 %v2928, %v2332
          %v3185 = vadd.f32 %v2929, %v2335
          %v3186 = vadd.f32 %v2930, %v2340
          %v3187 = vadd.f32 %v2931, %v2343
          %v3188 = vadd.f32 %v2932, %v2348
          %v3189 = vadd.f32 %v2933, %v2351
          %v3190 = vadd.f32 %v2934, %v2356
          %v3191 = vadd.f32 %v2935, %v2359
          %v3192 = vadd.f32 %v2936, %v2364
          %v3193 = vadd.f32 %v2937, %v2367
          %v3194 = vadd.f32 %v2938, %v2372
          %v3195 = vadd.f32 %v2939, %v2375
          %v3196 = vadd.f32 %v2940, %v2380
          %v3197 = vadd.f32 %v2941, %v2383
          %v3198 = vadd.f32 %v2942, %v2388
          %v3199 = vadd.f32 %v2943, %v2391
          %v3200 = vadd.f32 %v2944, %v2396
          %v3201 = vadd.f32 %v2945, %v2399
          %v3202 = vadd.f32 %v2946, %v2404
          %v3203 = vadd.f32 %v2947, %v2407
          %v3204 = vadd.f32 %v2948, %v2412
          %v3205 = vadd.f32 %v2949, %v2415
          %v3206 = vadd.f32 %v2950, %v2420
          %v3207 = vadd.f32 %v2951, %v2423
          %v3208 = vadd.f32 %v2952, %v2428
          %v3209 = vadd.f32 %v2953, %v2431
          %3210 = vst [vmem:[#allocation2] sm:$0xff] %v2954
          %3211 = vst [vmem:[#allocation2 + $0x8] sm:$0xff] %v2955
          %3212 = vst [vmem:[#allocation2 + $0x10] sm:$0xff] %v2956
          %3213 = vst [vmem:[#allocation2 + $0x18] sm:$0xff] %v2957
          %3214 = vst [vmem:[#allocation2 + $0x20] sm:$0xff] %v2958
          %3215 = vst [vmem:[#allocation2 + $0x28] sm:$0xff] %v2959
          %3216 = vst [vmem:[#allocation2 + $0x30] sm:$0xff] %v2960
          %3217 = vst [vmem:[#allocation2 + $0x38] sm:$0xff] %v2961
          %3218 = vst [vmem:[#allocation2 + $0x40] sm:$0xff] %v2962
          %3219 = vst [vmem:[#allocation2 + $0x48] sm:$0xff] %v2963
          %3220 = vst [vmem:[#allocation2 + $0x50] sm:$0xff] %v2964
          %3221 = vst [vmem:[#allocation2 + $0x58] sm:$0xff] %v2965
          %3222 = vst [vmem:[#allocation2 + $0x60] sm:$0xff] %v2966
          %3223 = vst [vmem:[#allocation2 + $0x68] sm:$0xff] %v2967
          %3224 = vst [vmem:[#allocation2 + $0x70] sm:$0xff] %v2968
          %3225 = vst [vmem:[#allocation2 + $0x78] sm:$0xff] %v2969
          %3226 = vst [vmem:[#allocation2 + $0x80] sm:$0xff] %v2970
          %3227 = vst [vmem:[#allocation2 + $0x88] sm:$0xff] %v2971
          %3228 = vst [vmem:[#allocation2 + $0x90] sm:$0xff] %v2972
          %3229 = vst [vmem:[#allocation2 + $0x98] sm:$0xff] %v2973
          %3230 = vst [vmem:[#allocation2 + $0xa0] sm:$0xff] %v2974
          %3231 = vst [vmem:[#allocation2 + $0xa8] sm:$0xff] %v2975
          %3232 = vst [vmem:[#allocation2 + $0xb0] sm:$0xff] %v2976
          %3233 = vst [vmem:[#allocation2 + $0xb8] sm:$0xff] %v2977
          %3234 = vst [vmem:[#allocation2 + $0xc0] sm:$0xff] %v2978
          %3235 = vst [vmem:[#allocation2 + $0xc8] sm:$0xff] %v2979
          %3236 = vst [vmem:[#allocation2 + $0xd0] sm:$0xff] %v2980
          %3237 = vst [vmem:[#allocation2 + $0xd8] sm:$0xff] %v2981
          %3238 = vst [vmem:[#allocation2 + $0xe0] sm:$0xff] %v2982
          %3239 = vst [vmem:[#allocation2 + $0xe8] sm:$0xff] %v2983
          %3240 = vst [vmem:[#allocation2 + $0xf0] sm:$0xff] %v2984
          %3241 = vst [vmem:[#allocation2 + $0xf8] sm:$0xff] %v2985
          %3242 = vst [vmem:[#allocation2 + $0x100] sm:$0xff] %v2986
          %3243 = vst [vmem:[#allocation2 + $0x108] sm:$0xff] %v2987
          %3244 = vst [vmem:[#allocation2 + $0x110] sm:$0xff] %v2988
          %3245 = vst [vmem:[#allocation2 + $0x118] sm:$0xff] %v2989
          %3246 = vst [vmem:[#allocation2 + $0x120] sm:$0xff] %v2990
          %3247 = vst [vmem:[#allocation2 + $0x128] sm:$0xff] %v2991
          %3248 = vst [vmem:[#allocation2 + $0x130] sm:$0xff] %v2992
          %3249 = vst [vmem:[#allocation2 + $0x138] sm:$0xff] %v2993
          %3250 = vst [vmem:[#allocation2 + $0x140] sm:$0xff] %v2994
          %3251 = vst [vmem:[#allocation2 + $0x148] sm:$0xff] %v2995
          %3252 = vst [vmem:[#allocation2 + $0x150] sm:$0xff] %v2996
          %3253 = vst [vmem:[#allocation2 + $0x158] sm:$0xff] %v2997
          %3254 = vst [vmem:[#allocation2 + $0x160] sm:$0xff] %v2998
          %3255 = vst [vmem:[#allocation2 + $0x168] sm:$0xff] %v2999
          %3256 = vst [vmem:[#allocation2 + $0x170] sm:$0xff] %v3000
          %3257 = vst [vmem:[#allocation2 + $0x178] sm:$0xff] %v3001
          %3258 = vst [vmem:[#allocation2 + $0x180] sm:$0xff] %v3002
          %3259 = vst [vmem:[#allocation2 + $0x188] sm:$0xff] %v3003
          %3260 = vst [vmem:[#allocation2 + $0x190] sm:$0xff] %v3004
          %3261 = vst [vmem:[#allocation2 + $0x198] sm:$0xff] %v3005
          %3262 = vst [vmem:[#allocation2 + $0x1a0] sm:$0xff] %v3006
          %3263 = vst [vmem:[#allocation2 + $0x1a8] sm:$0xff] %v3007
          %3264 = vst [vmem:[#allocation2 + $0x1b0] sm:$0xff] %v3008
          %3265 = vst [vmem:[#allocation2 + $0x1b8] sm:$0xff] %v3009
          %3266 = vst [vmem:[#allocation2 + $0x1c0] sm:$0xff] %v3010
          %3267 = vst [vmem:[#allocation2 + $0x1c8] sm:$0xff] %v3011
          %3268 = vst [vmem:[#allocation2 + $0x1d0] sm:$0xff] %v3012
          %3269 = vst [vmem:[#allocation2 + $0x1d8] sm:$0xff] %v3013
          %3270 = vst [vmem:[#allocation2 + $0x1e0] sm:$0xff] %v3014
          %3271 = vst [vmem:[#allocation2 + $0x1e8] sm:$0xff] %v3015
          %3272 = vst [vmem:[#allocation2 + $0x1f0] sm:$0xff] %v3016
          %3273 = vst [vmem:[#allocation2 + $0x1f8] sm:$0xff] %v3017
          %3274 = vst [vmem:[#allocation2 + $0x200] sm:$0xff] %v3018
          %3275 = vst [vmem:[#allocation2 + $0x208] sm:$0xff] %v3019
          %3276 = vst [vmem:[#allocation2 + $0x210] sm:$0xff] %v3020
          %3277 = vst [vmem:[#allocation2 + $0x218] sm:$0xff] %v3021
          %3278 = vst [vmem:[#allocation2 + $0x220] sm:$0xff] %v3022
          %3279 = vst [vmem:[#allocation2 + $0x228] sm:$0xff] %v3023
          %3280 = vst [vmem:[#allocation2 + $0x230] sm:$0xff] %v3024
          %3281 = vst [vmem:[#allocation2 + $0x238] sm:$0xff] %v3025
          %3282 = vst [vmem:[#allocation2 + $0x240] sm:$0xff] %v3026
          %3283 = vst [vmem:[#allocation2 + $0x248] sm:$0xff] %v3027
          %3284 = vst [vmem:[#allocation2 + $0x250] sm:$0xff] %v3028
          %3285 = vst [vmem:[#allocation2 + $0x258] sm:$0xff] %v3029
          %3286 = vst [vmem:[#allocation2 + $0x260] sm:$0xff] %v3030
          %3287 = vst [vmem:[#allocation2 + $0x268] sm:$0xff] %v3031
          %3288 = vst [vmem:[#allocation2 + $0x270] sm:$0xff] %v3032
          %3289 = vst [vmem:[#allocation2 + $0x278] sm:$0xff] %v3033
          %3290 = vst [vmem:[#allocation2 + $0x280] sm:$0xff] %v3034
          %3291 = vst [vmem:[#allocation2 + $0x288] sm:$0xff] %v3035
          %3292 = vst [vmem:[#allocation2 + $0x290] sm:$0xff] %v3036
          %3293 = vst [vmem:[#allocation2 + $0x298] sm:$0xff] %v3037
          %3294 = vst [vmem:[#allocation2 + $0x2a0] sm:$0xff] %v3038
          %3295 = vst [vmem:[#allocation2 + $0x2a8] sm:$0xff] %v3039
          %3296 = vst [vmem:[#allocation2 + $0x2b0] sm:$0xff] %v3040
          %3297 = vst [vmem:[#allocation2 + $0x2b8] sm:$0xff] %v3041
          %3298 = vst [vmem:[#allocation2 + $0x2c0] sm:$0xff] %v3042
          %3299 = vst [vmem:[#allocation2 + $0x2c8] sm:$0xff] %v3043
          %3300 = vst [vmem:[#allocation2 + $0x2d0] sm:$0xff] %v3044
          %3301 = vst [vmem:[#allocation2 + $0x2d8] sm:$0xff] %v3045
          %3302 = vst [vmem:[#allocation2 + $0x2e0] sm:$0xff] %v3046
          %3303 = vst [vmem:[#allocation2 + $0x2e8] sm:$0xff] %v3047
          %3304 = vst [vmem:[#allocation2 + $0x2f0] sm:$0xff] %v3048
          %3305 = vst [vmem:[#allocation2 + $0x2f8] sm:$0xff] %v3049
          %3306 = vst [vmem:[#allocation2 + $0x300] sm:$0xff] %v3050
          %3307 = vst [vmem:[#allocation2 + $0x308] sm:$0xff] %v3051
          %3308 = vst [vmem:[#allocation2 + $0x310] sm:$0xff] %v3052
          %3309 = vst [vmem:[#allocation2 + $0x318] sm:$0xff] %v3053
          %3310 = vst [vmem:[#allocation2 + $0x320] sm:$0xff] %v3054
          %3311 = vst [vmem:[#allocation2 + $0x328] sm:$0xff] %v3055
          %3312 = vst [vmem:[#allocation2 + $0x330] sm:$0xff] %v3056
          %3313 = vst [vmem:[#allocation2 + $0x338] sm:$0xff] %v3057
          %3314 = vst [vmem:[#allocation2 + $0x340] sm:$0xff] %v3058
          %3315 = vst [vmem:[#allocation2 + $0x348] sm:$0xff] %v3059
          %3316 = vst [vmem:[#allocation2 + $0x350] sm:$0xff] %v3060
          %3317 = vst [vmem:[#allocation2 + $0x358] sm:$0xff] %v3061
          %3318 = vst [vmem:[#allocation2 + $0x360] sm:$0xff] %v3062
          %3319 = vst [vmem:[#allocation2 + $0x368] sm:$0xff] %v3063
          %3320 = vst [vmem:[#allocation2 + $0x370] sm:$0xff] %v3064
          %3321 = vst [vmem:[#allocation2 + $0x378] sm:$0xff] %v3065
          %3322 = vst [vmem:[#allocation2 + $0x380] sm:$0xff] %v3066
          %3323 = vst [vmem:[#allocation2 + $0x388] sm:$0xff] %v3067
          %3324 = vst [vmem:[#allocation2 + $0x390] sm:$0xff] %v3068
          %3325 = vst [vmem:[#allocation2 + $0x398] sm:$0xff] %v3069
          %3326 = vst [vmem:[#allocation2 + $0x3a0] sm:$0xff] %v3070
          %3327 = vst [vmem:[#allocation2 + $0x3a8] sm:$0xff] %v3071
          %3328 = vst [vmem:[#allocation2 + $0x3b0] sm:$0xff] %v3072
          %3329 = vst [vmem:[#allocation2 + $0x3b8] sm:$0xff] %v3073
          %3330 = vst [vmem:[#allocation2 + $0x3c0] sm:$0xff] %v3074
          %3331 = vst [vmem:[#allocation2 + $0x3c8] sm:$0xff] %v3075
          %3332 = vst [vmem:[#allocation2 + $0x3d0] sm:$0xff] %v3076
          %3333 = vst [vmem:[#allocation2 + $0x3d8] sm:$0xff] %v3077
          %3334 = vst [vmem:[#allocation2 + $0x3e0] sm:$0xff] %v3078
          %3335 = vst [vmem:[#allocation2 + $0x3e8] sm:$0xff] %v3079
          %3336 = vst [vmem:[#allocation2 + $0x3f0] sm:$0xff] %v3080
          %3337 = vst [vmem:[#allocation2 + $0x3f8] sm:$0xff] %v3081
          %3338 = vst [vmem:[#allocation2 + $0x400] sm:$0xff] %v3082
          %3339 = vst [vmem:[#allocation2 + $0x408] sm:$0xff] %v3083
          %3340 = vst [vmem:[#allocation2 + $0x410] sm:$0xff] %v3084
          %3341 = vst [vmem:[#allocation2 + $0x418] sm:$0xff] %v3085
          %3342 = vst [vmem:[#allocation2 + $0x420] sm:$0xff] %v3086
          %3343 = vst [vmem:[#allocation2 + $0x428] sm:$0xff] %v3087
          %3344 = vst [vmem:[#allocation2 + $0x430] sm:$0xff] %v3088
          %3345 = vst [vmem:[#allocation2 + $0x438] sm:$0xff] %v3089
          %3346 = vst [vmem:[#allocation2 + $0x440] sm:$0xff] %v3090
          %3347 = vst [vmem:[#allocation2 + $0x448] sm:$0xff] %v3091
          %3348 = vst [vmem:[#allocation2 + $0x450] sm:$0xff] %v3092
          %3349 = vst [vmem:[#allocation2 + $0x458] sm:$0xff] %v3093
          %3350 = vst [vmem:[#allocation2 + $0x460] sm:$0xff] %v3094
          %3351 = vst [vmem:[#allocation2 + $0x468] sm:$0xff] %v3095
          %3352 = vst [vmem:[#allocation2 + $0x470] sm:$0xff] %v3096
          %3353 = vst [vmem:[#allocation2 + $0x478] sm:$0xff] %v3097
          %3354 = vst [vmem:[#allocation2 + $0x480] sm:$0xff] %v3098
          %3355 = vst [vmem:[#allocation2 + $0x488] sm:$0xff] %v3099
          %3356 = vst [vmem:[#allocation2 + $0x490] sm:$0xff] %v3100
          %3357 = vst [vmem:[#allocation2 + $0x498] sm:$0xff] %v3101
          %3358 = vst [vmem:[#allocation2 + $0x4a0] sm:$0xff] %v3102
          %3359 = vst [vmem:[#allocation2 + $0x4a8] sm:$0xff] %v3103
          %3360 = vst [vmem:[#allocation2 + $0x4b0] sm:$0xff] %v3104
          %3361 = vst [vmem:[#allocation2 + $0x4b8] sm:$0xff] %v3105
          %3362 = vst [vmem:[#allocation2 + $0x4c0] sm:$0xff] %v3106
          %3363 = vst [vmem:[#allocation2 + $0x4c8] sm:$0xff] %v3107
          %3364 = vst [vmem:[#allocation2 + $0x4d0] sm:$0xff] %v3108
          %3365 = vst [vmem:[#allocation2 + $0x4d8] sm:$0xff] %v3109
          %3366 = vst [vmem:[#allocation2 + $0x4e0] sm:$0xff] %v3110
          %3367 = vst [vmem:[#allocation2 + $0x4e8] sm:$0xff] %v3111
          %3368 = vst [vmem:[#allocation2 + $0x4f0] sm:$0xff] %v3112
          %3369 = vst [vmem:[#allocation2 + $0x4f8] sm:$0xff] %v3113
          %3370 = vst [vmem:[#allocation2 + $0x500] sm:$0xff] %v3114
          %3371 = vst [vmem:[#allocation2 + $0x508] sm:$0xff] %v3115
          %3372 = vst [vmem:[#allocation2 + $0x510] sm:$0xff] %v3116
          %3373 = vst [vmem:[#allocation2 + $0x518] sm:$0xff] %v3117
          %3374 = vst [vmem:[#allocation2 + $0x520] sm:$0xff] %v3118
          %3375 = vst [vmem:[#allocation2 + $0x528] sm:$0xff] %v3119
          %3376 = vst [vmem:[#allocation2 + $0x530] sm:$0xff] %v3120
          %3377 = vst [vmem:[#allocation2 + $0x538] sm:$0xff] %v3121
          %3378 = vst [vmem:[#allocation2 + $0x540] sm:$0xff] %v3122
          %3379 = vst [vmem:[#allocation2 + $0x548] sm:$0xff] %v3123
          %3380 = vst [vmem:[#allocation2 + $0x550] sm:$0xff] %v3124
          %3381 = vst [vmem:[#allocation2 + $0x558] sm:$0xff] %v3125
          %3382 = vst [vmem:[#allocation2 + $0x560] sm:$0xff] %v3126
          %3383 = vst [vmem:[#allocation2 + $0x568] sm:$0xff] %v3127
          %3384 = vst [vmem:[#allocation2 + $0x570] sm:$0xff] %v3128
          %3385 = vst [vmem:[#allocation2 + $0x578] sm:$0xff] %v3129
          %3386 = vst [vmem:[#allocation2 + $0x580] sm:$0xff] %v3130
          %3387 = vst [vmem:[#allocation2 + $0x588] sm:$0xff] %v3131
          %3388 = vst [vmem:[#allocation2 + $0x590] sm:$0xff] %v3132
          %3389 = vst [vmem:[#allocation2 + $0x598] sm:$0xff] %v3133
          %3390 = vst [vmem:[#allocation2 + $0x5a0] sm:$0xff] %v3134
          %3391 = vst [vmem:[#allocation2 + $0x5a8] sm:$0xff] %v3135
          %3392 = vst [vmem:[#allocation2 + $0x5b0] sm:$0xff] %v3136
          %3393 = vst [vmem:[#allocation2 + $0x5b8] sm:$0xff] %v3137
          %3394 = vst [vmem:[#allocation2 + $0x5c0] sm:$0xff] %v3138
          %3395 = vst [vmem:[#allocation2 + $0x5c8] sm:$0xff] %v3139
          %3396 = vst [vmem:[#allocation2 + $0x5d0] sm:$0xff] %v3140
          %3397 = vst [vmem:[#allocation2 + $0x5d8] sm:$0xff] %v3141
          %3398 = vst [vmem:[#allocation2 + $0x5e0] sm:$0xff] %v3142
          %3399 = vst [vmem:[#allocation2 + $0x5e8] sm:$0xff] %v3143
          %3400 = vst [vmem:[#allocation2 + $0x5f0] sm:$0xff] %v3144
          %3401 = vst [vmem:[#allocation2 + $0x5f8] sm:$0xff] %v3145
          %3402 = vst [vmem:[#allocation2 + $0x600] sm:$0xff] %v3146
          %3403 = vst [vmem:[#allocation2 + $0x608] sm:$0xff] %v3147
          %3404 = vst [vmem:[#allocation2 + $0x610] sm:$0xff] %v3148
          %3405 = vst [vmem:[#allocation2 + $0x618] sm:$0xff] %v3149
          %3406 = vst [vmem:[#allocation2 + $0x620] sm:$0xff] %v3150
          %3407 = vst [vmem:[#allocation2 + $0x628] sm:$0xff] %v3151
          %3408 = vst [vmem:[#allocation2 + $0x630] sm:$0xff] %v3152
          %3409 = vst [vmem:[#allocation2 + $0x638] sm:$0xff] %v3153
          %3410 = vst [vmem:[#allocation2 + $0x640] sm:$0xff] %v3154
          %3411 = vst [vmem:[#allocation2 + $0x648] sm:$0xff] %v3155
          %3412 = vst [vmem:[#allocation2 + $0x650] sm:$0xff] %v3156
          %3413 = vst [vmem:[#allocation2 + $0x658] sm:$0xff] %v3157
          %3414 = vst [vmem:[#allocation2 + $0x660] sm:$0xff] %v3158
          %3415 = vst [vmem:[#allocation2 + $0x668] sm:$0xff] %v3159
          %3416 = vst [vmem:[#allocation2 + $0x670] sm:$0xff] %v3160
          %3417 = vst [vmem:[#allocation2 + $0x678] sm:$0xff] %v3161
          %3418 = vst [vmem:[#allocation2 + $0x680] sm:$0xff] %v3162
          %3419 = vst [vmem:[#allocation2 + $0x688] sm:$0xff] %v3163
          %3420 = vst [vmem:[#allocation2 + $0x690] sm:$0xff] %v3164
          %3421 = vst [vmem:[#allocation2 + $0x698] sm:$0xff] %v3165
          %3422 = vst [vmem:[#allocation2 + $0x6a0] sm:$0xff] %v3166
          %3423 = vst [vmem:[#allocation2 + $0x6a8] sm:$0xff] %v3167
          %3424 = vst [vmem:[#allocation2 + $0x6b0] sm:$0xff] %v3168
          %3425 = vst [vmem:[#allocation2 + $0x6b8] sm:$0xff] %v3169
          %3426 = vst [vmem:[#allocation2 + $0x6c0] sm:$0xff] %v3170
          %3427 = vst [vmem:[#allocation2 + $0x6c8] sm:$0xff] %v3171
          %3428 = vst [vmem:[#allocation2 + $0x6d0] sm:$0xff] %v3172
          %3429 = vst [vmem:[#allocation2 + $0x6d8] sm:$0xff] %v3173
          %3430 = vst [vmem:[#allocation2 + $0x6e0] sm:$0xff] %v3174
          %3431 = vst [vmem:[#allocation2 + $0x6e8] sm:$0xff] %v3175
          %3432 = vst [vmem:[#allocation2 + $0x6f0] sm:$0xff] %v3176
          %3433 = vst [vmem:[#allocation2 + $0x6f8] sm:$0xff] %v3177
          %3434 = vst [vmem:[#allocation2 + $0x700] sm:$0xff] %v3178
          %3435 = vst [vmem:[#allocation2 + $0x708] sm:$0xff] %v3179
          %3436 = vst [vmem:[#allocation2 + $0x710] sm:$0xff] %v3180
          %3437 = vst [vmem:[#allocation2 + $0x718] sm:$0xff] %v3181
          %3438 = vst [vmem:[#allocation2 + $0x720] sm:$0xff] %v3182
          %3439 = vst [vmem:[#allocation2 + $0x728] sm:$0xff] %v3183
          %3440 = vst [vmem:[#allocation2 + $0x730] sm:$0xff] %v3184
          %3441 = vst [vmem:[#allocation2 + $0x738] sm:$0xff] %v3185
          %3442 = vst [vmem:[#allocation2 + $0x740] sm:$0xff] %v3186
          %3443 = vst [vmem:[#allocation2 + $0x748] sm:$0xff] %v3187
          %3444 = vst [vmem:[#allocation2 + $0x750] sm:$0xff] %v3188
          %3445 = vst [vmem:[#allocation2 + $0x758] sm:$0xff] %v3189
          %3446 = vst [vmem:[#allocation2 + $0x760] sm:$0xff] %v3190
          %3447 = vst [vmem:[#allocation2 + $0x768] sm:$0xff] %v3191
          %3448 = vst [vmem:[#allocation2 + $0x770] sm:$0xff] %v3192
          %3449 = vst [vmem:[#allocation2 + $0x778] sm:$0xff] %v3193
          %3450 = vst [vmem:[#allocation2 + $0x780] sm:$0xff] %v3194
          %3451 = vst [vmem:[#allocation2 + $0x788] sm:$0xff] %v3195
          %3452 = vst [vmem:[#allocation2 + $0x790] sm:$0xff] %v3196
          %3453 = vst [vmem:[#allocation2 + $0x798] sm:$0xff] %v3197
          %3454 = vst [vmem:[#allocation2 + $0x7a0] sm:$0xff] %v3198
          %3455 = vst [vmem:[#allocation2 + $0x7a8] sm:$0xff] %v3199
          %3456 = vst [vmem:[#allocation2 + $0x7b0] sm:$0xff] %v3200
          %3457 = vst [vmem:[#allocation2 + $0x7b8] sm:$0xff] %v3201
          %3458 = vst [vmem:[#allocation2 + $0x7c0] sm:$0xff] %v3202
          %3459 = vst [vmem:[#allocation2 + $0x7c8] sm:$0xff] %v3203
          %3460 = vst [vmem:[#allocation2 + $0x7d0] sm:$0xff] %v3204
          %3461 = vst [vmem:[#allocation2 + $0x7d8] sm:$0xff] %v3205
          %3462 = vst [vmem:[#allocation2 + $0x7e0] sm:$0xff] %v3206
          %3463 = vst [vmem:[#allocation2 + $0x7e8] sm:$0xff] %v3207
          %3464 = vst [vmem:[#allocation2 + $0x7f0] sm:$0xff] %v3208
          %3465 = vst [vmem:[#allocation2 + $0x7f8] sm:$0xff] %v3209
        $region40: #{conv2d_nhwc.1} parent=31 // pred_fallthru
          _
        // Predicated region
        $region41: #{conv2d_nhwc.1} parent=31 // pred_check
          %p3466 = pneg %p2434
        $region42: #{conv2d_nhwc.1} parent=31 // pred_check_branch
          %3468 = sbr.rel (%p3466) target = $region44
        $region43: #{conv2d_nhwc.1} parent=31 // pred_region
          %v3469 = vld [vmem:[#allocation2] sm:$0xff]
          %v3470 = vld [vmem:[#allocation2 + $0x8] sm:$0xff]
          %v3471 = vld [vmem:[#allocation2 + $0x10] sm:$0xff]
          %v3472 = vld [vmem:[#allocation2 + $0x18] sm:$0xff]
          %v3473 = vld [vmem:[#allocation2 + $0x20] sm:$0xff]
          %v3474 = vld [vmem:[#allocation2 + $0x28] sm:$0xff]
          %v3475 = vld [vmem:[#allocation2 + $0x30] sm:$0xff]
          %v3476 = vld [vmem:[#allocation2 + $0x38] sm:$0xff]
          %v3477 = vld [vmem:[#allocation2 + $0x40] sm:$0xff]
          %v3478 = vld [vmem:[#allocation2 + $0x48] sm:$0xff]
          %v3479 = vld [vmem:[#allocation2 + $0x50] sm:$0xff]
          %v3480 = vld [vmem:[#allocation2 + $0x58] sm:$0xff]
          %v3481 = vld [vmem:[#allocation2 + $0x60] sm:$0xff]
          %v3482 = vld [vmem:[#allocation2 + $0x68] sm:$0xff]
          %v3483 = vld [vmem:[#allocation2 + $0x70] sm:$0xff]
          %v3484 = vld [vmem:[#allocation2 + $0x78] sm:$0xff]
          %v3485 = vld [vmem:[#allocation2 + $0x80] sm:$0xff]
          %v3486 = vld [vmem:[#allocation2 + $0x88] sm:$0xff]
          %v3487 = vld [vmem:[#allocation2 + $0x90] sm:$0xff]
          %v3488 = vld [vmem:[#allocation2 + $0x98] sm:$0xff]
          %v3489 = vld [vmem:[#allocation2 + $0xa0] sm:$0xff]
          %v3490 = vld [vmem:[#allocation2 + $0xa8] sm:$0xff]
          %v3491 = vld [vmem:[#allocation2 + $0xb0] sm:$0xff]
          %v3492 = vld [vmem:[#allocation2 + $0xb8] sm:$0xff]
          %v3493 = vld [vmem:[#allocation2 + $0xc0] sm:$0xff]
          %v3494 = vld [vmem:[#allocation2 + $0xc8] sm:$0xff]
          %v3495 = vld [vmem:[#allocation2 + $0xd0] sm:$0xff]
          %v3496 = vld [vmem:[#allocation2 + $0xd8] sm:$0xff]
          %v3497 = vld [vmem:[#allocation2 + $0xe0] sm:$0xff]
          %v3498 = vld [vmem:[#allocation2 + $0xe8] sm:$0xff]
          %v3499 = vld [vmem:[#allocation2 + $0xf0] sm:$0xff]
          %v3500 = vld [vmem:[#allocation2 + $0xf8] sm:$0xff]
          %v3501 = vld [vmem:[#allocation2 + $0x100] sm:$0xff]
          %v3502 = vld [vmem:[#allocation2 + $0x108] sm:$0xff]
          %v3503 = vld [vmem:[#allocation2 + $0x110] sm:$0xff]
          %v3504 = vld [vmem:[#allocation2 + $0x118] sm:$0xff]
          %v3505 = vld [vmem:[#allocation2 + $0x120] sm:$0xff]
          %v3506 = vld [vmem:[#allocation2 + $0x128] sm:$0xff]
          %v3507 = vld [vmem:[#allocation2 + $0x130] sm:$0xff]
          %v3508 = vld [vmem:[#allocation2 + $0x138] sm:$0xff]
          %v3509 = vld [vmem:[#allocation2 + $0x140] sm:$0xff]
          %v3510 = vld [vmem:[#allocation2 + $0x148] sm:$0xff]
          %v3511 = vld [vmem:[#allocation2 + $0x150] sm:$0xff]
          %v3512 = vld [vmem:[#allocation2 + $0x158] sm:$0xff]
          %v3513 = vld [vmem:[#allocation2 + $0x160] sm:$0xff]
          %v3514 = vld [vmem:[#allocation2 + $0x168] sm:$0xff]
          %v3515 = vld [vmem:[#allocation2 + $0x170] sm:$0xff]
          %v3516 = vld [vmem:[#allocation2 + $0x178] sm:$0xff]
          %v3517 = vld [vmem:[#allocation2 + $0x180] sm:$0xff]
          %v3518 = vld [vmem:[#allocation2 + $0x188] sm:$0xff]
          %v3519 = vld [vmem:[#allocation2 + $0x190] sm:$0xff]
          %v3520 = vld [vmem:[#allocation2 + $0x198] sm:$0xff]
          %v3521 = vld [vmem:[#allocation2 + $0x1a0] sm:$0xff]
          %v3522 = vld [vmem:[#allocation2 + $0x1a8] sm:$0xff]
          %v3523 = vld [vmem:[#allocation2 + $0x1b0] sm:$0xff]
          %v3524 = vld [vmem:[#allocation2 + $0x1b8] sm:$0xff]
          %v3525 = vld [vmem:[#allocation2 + $0x1c0] sm:$0xff]
          %v3526 = vld [vmem:[#allocation2 + $0x1c8] sm:$0xff]
          %v3527 = vld [vmem:[#allocation2 + $0x1d0] sm:$0xff]
          %v3528 = vld [vmem:[#allocation2 + $0x1d8] sm:$0xff]
          %v3529 = vld [vmem:[#allocation2 + $0x1e0] sm:$0xff]
          %v3530 = vld [vmem:[#allocation2 + $0x1e8] sm:$0xff]
          %v3531 = vld [vmem:[#allocation2 + $0x1f0] sm:$0xff]
          %v3532 = vld [vmem:[#allocation2 + $0x1f8] sm:$0xff]
          %v3533 = vld [vmem:[#allocation2 + $0x200] sm:$0xff]
          %v3534 = vld [vmem:[#allocation2 + $0x208] sm:$0xff]
          %v3535 = vld [vmem:[#allocation2 + $0x210] sm:$0xff]
          %v3536 = vld [vmem:[#allocation2 + $0x218] sm:$0xff]
          %v3537 = vld [vmem:[#allocation2 + $0x220] sm:$0xff]
          %v3538 = vld [vmem:[#allocation2 + $0x228] sm:$0xff]
          %v3539 = vld [vmem:[#allocation2 + $0x230] sm:$0xff]
          %v3540 = vld [vmem:[#allocation2 + $0x238] sm:$0xff]
          %v3541 = vld [vmem:[#allocation2 + $0x240] sm:$0xff]
          %v3542 = vld [vmem:[#allocation2 + $0x248] sm:$0xff]
          %v3543 = vld [vmem:[#allocation2 + $0x250] sm:$0xff]
          %v3544 = vld [vmem:[#allocation2 + $0x258] sm:$0xff]
          %v3545 = vld [vmem:[#allocation2 + $0x260] sm:$0xff]
          %v3546 = vld [vmem:[#allocation2 + $0x268] sm:$0xff]
          %v3547 = vld [vmem:[#allocation2 + $0x270] sm:$0xff]
          %v3548 = vld [vmem:[#allocation2 + $0x278] sm:$0xff]
          %v3549 = vld [vmem:[#allocation2 + $0x280] sm:$0xff]
          %v3550 = vld [vmem:[#allocation2 + $0x288] sm:$0xff]
          %v3551 = vld [vmem:[#allocation2 + $0x290] sm:$0xff]
          %v3552 = vld [vmem:[#allocation2 + $0x298] sm:$0xff]
          %v3553 = vld [vmem:[#allocation2 + $0x2a0] sm:$0xff]
          %v3554 = vld [vmem:[#allocation2 + $0x2a8] sm:$0xff]
          %v3555 = vld [vmem:[#allocation2 + $0x2b0] sm:$0xff]
          %v3556 = vld [vmem:[#allocation2 + $0x2b8] sm:$0xff]
          %v3557 = vld [vmem:[#allocation2 + $0x2c0] sm:$0xff]
          %v3558 = vld [vmem:[#allocation2 + $0x2c8] sm:$0xff]
          %v3559 = vld [vmem:[#allocation2 + $0x2d0] sm:$0xff]
          %v3560 = vld [vmem:[#allocation2 + $0x2d8] sm:$0xff]
          %v3561 = vld [vmem:[#allocation2 + $0x2e0] sm:$0xff]
          %v3562 = vld [vmem:[#allocation2 + $0x2e8] sm:$0xff]
          %v3563 = vld [vmem:[#allocation2 + $0x2f0] sm:$0xff]
          %v3564 = vld [vmem:[#allocation2 + $0x2f8] sm:$0xff]
          %v3565 = vld [vmem:[#allocation2 + $0x300] sm:$0xff]
          %v3566 = vld [vmem:[#allocation2 + $0x308] sm:$0xff]
          %v3567 = vld [vmem:[#allocation2 + $0x310] sm:$0xff]
          %v3568 = vld [vmem:[#allocation2 + $0x318] sm:$0xff]
          %v3569 = vld [vmem:[#allocation2 + $0x320] sm:$0xff]
          %v3570 = vld [vmem:[#allocation2 + $0x328] sm:$0xff]
          %v3571 = vld [vmem:[#allocation2 + $0x330] sm:$0xff]
          %v3572 = vld [vmem:[#allocation2 + $0x338] sm:$0xff]
          %v3573 = vld [vmem:[#allocation2 + $0x340] sm:$0xff]
          %v3574 = vld [vmem:[#allocation2 + $0x348] sm:$0xff]
          %v3575 = vld [vmem:[#allocation2 + $0x350] sm:$0xff]
          %v3576 = vld [vmem:[#allocation2 + $0x358] sm:$0xff]
          %v3577 = vld [vmem:[#allocation2 + $0x360] sm:$0xff]
          %v3578 = vld [vmem:[#allocation2 + $0x368] sm:$0xff]
          %v3579 = vld [vmem:[#allocation2 + $0x370] sm:$0xff]
          %v3580 = vld [vmem:[#allocation2 + $0x378] sm:$0xff]
          %v3581 = vld [vmem:[#allocation2 + $0x380] sm:$0xff]
          %v3582 = vld [vmem:[#allocation2 + $0x388] sm:$0xff]
          %v3583 = vld [vmem:[#allocation2 + $0x390] sm:$0xff]
          %v3584 = vld [vmem:[#allocation2 + $0x398] sm:$0xff]
          %v3585 = vld [vmem:[#allocation2 + $0x3a0] sm:$0xff]
          %v3586 = vld [vmem:[#allocation2 + $0x3a8] sm:$0xff]
          %v3587 = vld [vmem:[#allocation2 + $0x3b0] sm:$0xff]
          %v3588 = vld [vmem:[#allocation2 + $0x3b8] sm:$0xff]
          %v3589 = vld [vmem:[#allocation2 + $0x3c0] sm:$0xff]
          %v3590 = vld [vmem:[#allocation2 + $0x3c8] sm:$0xff]
          %v3591 = vld [vmem:[#allocation2 + $0x3d0] sm:$0xff]
          %v3592 = vld [vmem:[#allocation2 + $0x3d8] sm:$0xff]
          %v3593 = vld [vmem:[#allocation2 + $0x3e0] sm:$0xff]
          %v3594 = vld [vmem:[#allocation2 + $0x3e8] sm:$0xff]
          %v3595 = vld [vmem:[#allocation2 + $0x3f0] sm:$0xff]
          %v3596 = vld [vmem:[#allocation2 + $0x3f8] sm:$0xff]
          %v3597 = vld [vmem:[#allocation2 + $0x400] sm:$0xff]
          %v3598 = vld [vmem:[#allocation2 + $0x408] sm:$0xff]
          %v3599 = vld [vmem:[#allocation2 + $0x410] sm:$0xff]
          %v3600 = vld [vmem:[#allocation2 + $0x418] sm:$0xff]
          %v3601 = vld [vmem:[#allocation2 + $0x420] sm:$0xff]
          %v3602 = vld [vmem:[#allocation2 + $0x428] sm:$0xff]
          %v3603 = vld [vmem:[#allocation2 + $0x430] sm:$0xff]
          %v3604 = vld [vmem:[#allocation2 + $0x438] sm:$0xff]
          %v3605 = vld [vmem:[#allocation2 + $0x440] sm:$0xff]
          %v3606 = vld [vmem:[#allocation2 + $0x448] sm:$0xff]
          %v3607 = vld [vmem:[#allocation2 + $0x450] sm:$0xff]
          %v3608 = vld [vmem:[#allocation2 + $0x458] sm:$0xff]
          %v3609 = vld [vmem:[#allocation2 + $0x460] sm:$0xff]
          %v3610 = vld [vmem:[#allocation2 + $0x468] sm:$0xff]
          %v3611 = vld [vmem:[#allocation2 + $0x470] sm:$0xff]
          %v3612 = vld [vmem:[#allocation2 + $0x478] sm:$0xff]
          %v3613 = vld [vmem:[#allocation2 + $0x480] sm:$0xff]
          %v3614 = vld [vmem:[#allocation2 + $0x488] sm:$0xff]
          %v3615 = vld [vmem:[#allocation2 + $0x490] sm:$0xff]
          %v3616 = vld [vmem:[#allocation2 + $0x498] sm:$0xff]
          %v3617 = vld [vmem:[#allocation2 + $0x4a0] sm:$0xff]
          %v3618 = vld [vmem:[#allocation2 + $0x4a8] sm:$0xff]
          %v3619 = vld [vmem:[#allocation2 + $0x4b0] sm:$0xff]
          %v3620 = vld [vmem:[#allocation2 + $0x4b8] sm:$0xff]
          %v3621 = vld [vmem:[#allocation2 + $0x4c0] sm:$0xff]
          %v3622 = vld [vmem:[#allocation2 + $0x4c8] sm:$0xff]
          %v3623 = vld [vmem:[#allocation2 + $0x4d0] sm:$0xff]
          %v3624 = vld [vmem:[#allocation2 + $0x4d8] sm:$0xff]
          %v3625 = vld [vmem:[#allocation2 + $0x4e0] sm:$0xff]
          %v3626 = vld [vmem:[#allocation2 + $0x4e8] sm:$0xff]
          %v3627 = vld [vmem:[#allocation2 + $0x4f0] sm:$0xff]
          %v3628 = vld [vmem:[#allocation2 + $0x4f8] sm:$0xff]
          %v3629 = vld [vmem:[#allocation2 + $0x500] sm:$0xff]
          %v3630 = vld [vmem:[#allocation2 + $0x508] sm:$0xff]
          %v3631 = vld [vmem:[#allocation2 + $0x510] sm:$0xff]
          %v3632 = vld [vmem:[#allocation2 + $0x518] sm:$0xff]
          %v3633 = vld [vmem:[#allocation2 + $0x520] sm:$0xff]
          %v3634 = vld [vmem:[#allocation2 + $0x528] sm:$0xff]
          %v3635 = vld [vmem:[#allocation2 + $0x530] sm:$0xff]
          %v3636 = vld [vmem:[#allocation2 + $0x538] sm:$0xff]
          %v3637 = vld [vmem:[#allocation2 + $0x540] sm:$0xff]
          %v3638 = vld [vmem:[#allocation2 + $0x548] sm:$0xff]
          %v3639 = vld [vmem:[#allocation2 + $0x550] sm:$0xff]
          %v3640 = vld [vmem:[#allocation2 + $0x558] sm:$0xff]
          %v3641 = vld [vmem:[#allocation2 + $0x560] sm:$0xff]
          %v3642 = vld [vmem:[#allocation2 + $0x568] sm:$0xff]
          %v3643 = vld [vmem:[#allocation2 + $0x570] sm:$0xff]
          %v3644 = vld [vmem:[#allocation2 + $0x578] sm:$0xff]
          %v3645 = vld [vmem:[#allocation2 + $0x580] sm:$0xff]
          %v3646 = vld [vmem:[#allocation2 + $0x588] sm:$0xff]
          %v3647 = vld [vmem:[#allocation2 + $0x590] sm:$0xff]
          %v3648 = vld [vmem:[#allocation2 + $0x598] sm:$0xff]
          %v3649 = vld [vmem:[#allocation2 + $0x5a0] sm:$0xff]
          %v3650 = vld [vmem:[#allocation2 + $0x5a8] sm:$0xff]
          %v3651 = vld [vmem:[#allocation2 + $0x5b0] sm:$0xff]
          %v3652 = vld [vmem:[#allocation2 + $0x5b8] sm:$0xff]
          %v3653 = vld [vmem:[#allocation2 + $0x5c0] sm:$0xff]
          %v3654 = vld [vmem:[#allocation2 + $0x5c8] sm:$0xff]
          %v3655 = vld [vmem:[#allocation2 + $0x5d0] sm:$0xff]
          %v3656 = vld [vmem:[#allocation2 + $0x5d8] sm:$0xff]
          %v3657 = vld [vmem:[#allocation2 + $0x5e0] sm:$0xff]
          %v3658 = vld [vmem:[#allocation2 + $0x5e8] sm:$0xff]
          %v3659 = vld [vmem:[#allocation2 + $0x5f0] sm:$0xff]
          %v3660 = vld [vmem:[#allocation2 + $0x5f8] sm:$0xff]
          %v3661 = vld [vmem:[#allocation2 + $0x600] sm:$0xff]
          %v3662 = vld [vmem:[#allocation2 + $0x608] sm:$0xff]
          %v3663 = vld [vmem:[#allocation2 + $0x610] sm:$0xff]
          %v3664 = vld [vmem:[#allocation2 + $0x618] sm:$0xff]
          %v3665 = vld [vmem:[#allocation2 + $0x620] sm:$0xff]
          %v3666 = vld [vmem:[#allocation2 + $0x628] sm:$0xff]
          %v3667 = vld [vmem:[#allocation2 + $0x630] sm:$0xff]
          %v3668 = vld [vmem:[#allocation2 + $0x638] sm:$0xff]
          %v3669 = vld [vmem:[#allocation2 + $0x640] sm:$0xff]
          %v3670 = vld [vmem:[#allocation2 + $0x648] sm:$0xff]
          %v3671 = vld [vmem:[#allocation2 + $0x650] sm:$0xff]
          %v3672 = vld [vmem:[#allocation2 + $0x658] sm:$0xff]
          %v3673 = vld [vmem:[#allocation2 + $0x660] sm:$0xff]
          %v3674 = vld [vmem:[#allocation2 + $0x668] sm:$0xff]
          %v3675 = vld [vmem:[#allocation2 + $0x670] sm:$0xff]
          %v3676 = vld [vmem:[#allocation2 + $0x678] sm:$0xff]
          %v3677 = vld [vmem:[#allocation2 + $0x680] sm:$0xff]
          %v3678 = vld [vmem:[#allocation2 + $0x688] sm:$0xff]
          %v3679 = vld [vmem:[#allocation2 + $0x690] sm:$0xff]
          %v3680 = vld [vmem:[#allocation2 + $0x698] sm:$0xff]
          %v3681 = vld [vmem:[#allocation2 + $0x6a0] sm:$0xff]
          %v3682 = vld [vmem:[#allocation2 + $0x6a8] sm:$0xff]
          %v3683 = vld [vmem:[#allocation2 + $0x6b0] sm:$0xff]
          %v3684 = vld [vmem:[#allocation2 + $0x6b8] sm:$0xff]
          %v3685 = vld [vmem:[#allocation2 + $0x6c0] sm:$0xff]
          %v3686 = vld [vmem:[#allocation2 + $0x6c8] sm:$0xff]
          %v3687 = vld [vmem:[#allocation2 + $0x6d0] sm:$0xff]
          %v3688 = vld [vmem:[#allocation2 + $0x6d8] sm:$0xff]
          %v3689 = vld [vmem:[#allocation2 + $0x6e0] sm:$0xff]
          %v3690 = vld [vmem:[#allocation2 + $0x6e8] sm:$0xff]
          %v3691 = vld [vmem:[#allocation2 + $0x6f0] sm:$0xff]
          %v3692 = vld [vmem:[#allocation2 + $0x6f8] sm:$0xff]
          %v3693 = vld [vmem:[#allocation2 + $0x700] sm:$0xff]
          %v3694 = vld [vmem:[#allocation2 + $0x708] sm:$0xff]
          %v3695 = vld [vmem:[#allocation2 + $0x710] sm:$0xff]
          %v3696 = vld [vmem:[#allocation2 + $0x718] sm:$0xff]
          %v3697 = vld [vmem:[#allocation2 + $0x720] sm:$0xff]
          %v3698 = vld [vmem:[#allocation2 + $0x728] sm:$0xff]
          %v3699 = vld [vmem:[#allocation2 + $0x730] sm:$0xff]
          %v3700 = vld [vmem:[#allocation2 + $0x738] sm:$0xff]
          %v3701 = vld [vmem:[#allocation2 + $0x740] sm:$0xff]
          %v3702 = vld [vmem:[#allocation2 + $0x748] sm:$0xff]
          %v3703 = vld [vmem:[#allocation2 + $0x750] sm:$0xff]
          %v3704 = vld [vmem:[#allocation2 + $0x758] sm:$0xff]
          %v3705 = vld [vmem:[#allocation2 + $0x760] sm:$0xff]
          %v3706 = vld [vmem:[#allocation2 + $0x768] sm:$0xff]
          %v3707 = vld [vmem:[#allocation2 + $0x770] sm:$0xff]
          %v3708 = vld [vmem:[#allocation2 + $0x778] sm:$0xff]
          %v3709 = vld [vmem:[#allocation2 + $0x780] sm:$0xff]
          %v3710 = vld [vmem:[#allocation2 + $0x788] sm:$0xff]
          %v3711 = vld [vmem:[#allocation2 + $0x790] sm:$0xff]
          %v3712 = vld [vmem:[#allocation2 + $0x798] sm:$0xff]
          %v3713 = vld [vmem:[#allocation2 + $0x7a0] sm:$0xff]
          %v3714 = vld [vmem:[#allocation2 + $0x7a8] sm:$0xff]
          %v3715 = vld [vmem:[#allocation2 + $0x7b0] sm:$0xff]
          %v3716 = vld [vmem:[#allocation2 + $0x7b8] sm:$0xff]
          %v3717 = vld [vmem:[#allocation2 + $0x7c0] sm:$0xff]
          %v3718 = vld [vmem:[#allocation2 + $0x7c8] sm:$0xff]
          %v3719 = vld [vmem:[#allocation2 + $0x7d0] sm:$0xff]
          %v3720 = vld [vmem:[#allocation2 + $0x7d8] sm:$0xff]
          %v3721 = vld [vmem:[#allocation2 + $0x7e0] sm:$0xff]
          %v3722 = vld [vmem:[#allocation2 + $0x7e8] sm:$0xff]
          %v3723 = vld [vmem:[#allocation2 + $0x7f0] sm:$0xff]
          %v3724 = vld [vmem:[#allocation2 + $0x7f8] sm:$0xff]
          %v3725 = vld [vmem:[%s286] sm:$0x1]
          %v3727 = vlaneseq
          %v3728 = vshrl.u32 %v3727, 7
          %v3729 = vsub.s32 0, %v3728
          %v3730 = vrot.slane %v3725, %v3729
          %v3732 = vadd.f32 %v3469, %v3730
          %v3733 = vadd.f32 %v3470, %v3730
          %v3734 = vadd.f32 %v3471, %v3730
          %v3735 = vadd.f32 %v3472, %v3730
          %v3736 = vadd.f32 %v3473, %v3730
          %v3737 = vadd.f32 %v3474, %v3730
          %v3738 = vadd.f32 %v3475, %v3730
          %v3739 = vadd.f32 %v3476, %v3730
          %v3740 = vadd.f32 %v3477, %v3730
          %v3741 = vadd.f32 %v3478, %v3730
          %v3742 = vadd.f32 %v3479, %v3730
          %v3743 = vadd.f32 %v3480, %v3730
          %v3744 = vadd.f32 %v3481, %v3730
          %v3745 = vadd.f32 %v3482, %v3730
          %v3746 = vadd.f32 %v3483, %v3730
          %v3747 = vadd.f32 %v3484, %v3730
          %v3748 = vadd.f32 %v3485, %v3730
          %v3749 = vadd.f32 %v3486, %v3730
          %v3750 = vadd.f32 %v3487, %v3730
          %v3751 = vadd.f32 %v3488, %v3730
          %v3752 = vadd.f32 %v3489, %v3730
          %v3753 = vadd.f32 %v3490, %v3730
          %v3754 = vadd.f32 %v3491, %v3730
          %v3755 = vadd.f32 %v3492, %v3730
          %v3756 = vadd.f32 %v3493, %v3730
          %v3757 = vadd.f32 %v3494, %v3730
          %v3758 = vadd.f32 %v3495, %v3730
          %v3759 = vadd.f32 %v3496, %v3730
          %v3760 = vadd.f32 %v3497, %v3730
          %v3761 = vadd.f32 %v3498, %v3730
          %v3762 = vadd.f32 %v3499, %v3730
          %v3763 = vadd.f32 %v3500, %v3730
          %v3764 = vadd.f32 %v3501, %v3730
          %v3765 = vadd.f32 %v3502, %v3730
          %v3766 = vadd.f32 %v3503, %v3730
          %v3767 = vadd.f32 %v3504, %v3730
          %v3768 = vadd.f32 %v3505, %v3730
          %v3769 = vadd.f32 %v3506, %v3730
          %v3770 = vadd.f32 %v3507, %v3730
          %v3771 = vadd.f32 %v3508, %v3730
          %v3772 = vadd.f32 %v3509, %v3730
          %v3773 = vadd.f32 %v3510, %v3730
          %v3774 = vadd.f32 %v3511, %v3730
          %v3775 = vadd.f32 %v3512, %v3730
          %v3776 = vadd.f32 %v3513, %v3730
          %v3777 = vadd.f32 %v3514, %v3730
          %v3778 = vadd.f32 %v3515, %v3730
          %v3779 = vadd.f32 %v3516, %v3730
          %v3780 = vadd.f32 %v3517, %v3730
          %v3781 = vadd.f32 %v3518, %v3730
          %v3782 = vadd.f32 %v3519, %v3730
          %v3783 = vadd.f32 %v3520, %v3730
          %v3784 = vadd.f32 %v3521, %v3730
          %v3785 = vadd.f32 %v3522, %v3730
          %v3786 = vadd.f32 %v3523, %v3730
          %v3787 = vadd.f32 %v3524, %v3730
          %v3788 = vadd.f32 %v3525, %v3730
          %v3789 = vadd.f32 %v3526, %v3730
          %v3790 = vadd.f32 %v3527, %v3730
          %v3791 = vadd.f32 %v3528, %v3730
          %v3792 = vadd.f32 %v3529, %v3730
          %v3793 = vadd.f32 %v3530, %v3730
          %v3794 = vadd.f32 %v3531, %v3730
          %v3795 = vadd.f32 %v3532, %v3730
          %v3796 = vadd.f32 %v3533, %v3730
          %v3797 = vadd.f32 %v3534, %v3730
          %v3798 = vadd.f32 %v3535, %v3730
          %v3799 = vadd.f32 %v3536, %v3730
          %v3800 = vadd.f32 %v3537, %v3730
          %v3801 = vadd.f32 %v3538, %v3730
          %v3802 = vadd.f32 %v3539, %v3730
          %v3803 = vadd.f32 %v3540, %v3730
          %v3804 = vadd.f32 %v3541, %v3730
          %v3805 = vadd.f32 %v3542, %v3730
          %v3806 = vadd.f32 %v3543, %v3730
          %v3807 = vadd.f32 %v3544, %v3730
          %v3808 = vadd.f32 %v3545, %v3730
          %v3809 = vadd.f32 %v3546, %v3730
          %v3810 = vadd.f32 %v3547, %v3730
          %v3811 = vadd.f32 %v3548, %v3730
          %v3812 = vadd.f32 %v3549, %v3730
          %v3813 = vadd.f32 %v3550, %v3730
          %v3814 = vadd.f32 %v3551, %v3730
          %v3815 = vadd.f32 %v3552, %v3730
          %v3816 = vadd.f32 %v3553, %v3730
          %v3817 = vadd.f32 %v3554, %v3730
          %v3818 = vadd.f32 %v3555, %v3730
          %v3819 = vadd.f32 %v3556, %v3730
          %v3820 = vadd.f32 %v3557, %v3730
          %v3821 = vadd.f32 %v3558, %v3730
          %v3822 = vadd.f32 %v3559, %v3730
          %v3823 = vadd.f32 %v3560, %v3730
          %v3824 = vadd.f32 %v3561, %v3730
          %v3825 = vadd.f32 %v3562, %v3730
          %v3826 = vadd.f32 %v3563, %v3730
          %v3827 = vadd.f32 %v3564, %v3730
          %v3828 = vadd.f32 %v3565, %v3730
          %v3829 = vadd.f32 %v3566, %v3730
          %v3830 = vadd.f32 %v3567, %v3730
          %v3831 = vadd.f32 %v3568, %v3730
          %v3832 = vadd.f32 %v3569, %v3730
          %v3833 = vadd.f32 %v3570, %v3730
          %v3834 = vadd.f32 %v3571, %v3730
          %v3835 = vadd.f32 %v3572, %v3730
          %v3836 = vadd.f32 %v3573, %v3730
          %v3837 = vadd.f32 %v3574, %v3730
          %v3838 = vadd.f32 %v3575, %v3730
          %v3839 = vadd.f32 %v3576, %v3730
          %v3840 = vadd.f32 %v3577, %v3730
          %v3841 = vadd.f32 %v3578, %v3730
          %v3842 = vadd.f32 %v3579, %v3730
          %v3843 = vadd.f32 %v3580, %v3730
          %v3844 = vadd.f32 %v3581, %v3730
          %v3845 = vadd.f32 %v3582, %v3730
          %v3846 = vadd.f32 %v3583, %v3730
          %v3847 = vadd.f32 %v3584, %v3730
          %v3848 = vadd.f32 %v3585, %v3730
          %v3849 = vadd.f32 %v3586, %v3730
          %v3850 = vadd.f32 %v3587, %v3730
          %v3851 = vadd.f32 %v3588, %v3730
          %v3852 = vadd.f32 %v3589, %v3730
          %v3853 = vadd.f32 %v3590, %v3730
          %v3854 = vadd.f32 %v3591, %v3730
          %v3855 = vadd.f32 %v3592, %v3730
          %v3856 = vadd.f32 %v3593, %v3730
          %v3857 = vadd.f32 %v3594, %v3730
          %v3858 = vadd.f32 %v3595, %v3730
          %v3859 = vadd.f32 %v3596, %v3730
          %v3860 = vadd.f32 %v3597, %v3730
          %v3861 = vadd.f32 %v3598, %v3730
          %v3862 = vadd.f32 %v3599, %v3730
          %v3863 = vadd.f32 %v3600, %v3730
          %v3864 = vadd.f32 %v3601, %v3730
          %v3865 = vadd.f32 %v3602, %v3730
          %v3866 = vadd.f32 %v3603, %v3730
          %v3867 = vadd.f32 %v3604, %v3730
          %v3868 = vadd.f32 %v3605, %v3730
          %v3869 = vadd.f32 %v3606, %v3730
          %v3870 = vadd.f32 %v3607, %v3730
          %v3871 = vadd.f32 %v3608, %v3730
          %v3872 = vadd.f32 %v3609, %v3730
          %v3873 = vadd.f32 %v3610, %v3730
          %v3874 = vadd.f32 %v3611, %v3730
          %v3875 = vadd.f32 %v3612, %v3730
          %v3876 = vadd.f32 %v3613, %v3730
          %v3877 = vadd.f32 %v3614, %v3730
          %v3878 = vadd.f32 %v3615, %v3730
          %v3879 = vadd.f32 %v3616, %v3730
          %v3880 = vadd.f32 %v3617, %v3730
          %v3881 = vadd.f32 %v3618, %v3730
          %v3882 = vadd.f32 %v3619, %v3730
          %v3883 = vadd.f32 %v3620, %v3730
          %v3884 = vadd.f32 %v3621, %v3730
          %v3885 = vadd.f32 %v3622, %v3730
          %v3886 = vadd.f32 %v3623, %v3730
          %v3887 = vadd.f32 %v3624, %v3730
          %v3888 = vadd.f32 %v3625, %v3730
          %v3889 = vadd.f32 %v3626, %v3730
          %v3890 = vadd.f32 %v3627, %v3730
          %v3891 = vadd.f32 %v3628, %v3730
          %v3892 = vadd.f32 %v3629, %v3730
          %v3893 = vadd.f32 %v3630, %v3730
          %v3894 = vadd.f32 %v3631, %v3730
          %v3895 = vadd.f32 %v3632, %v3730
          %v3896 = vadd.f32 %v3633, %v3730
          %v3897 = vadd.f32 %v3634, %v3730
          %v3898 = vadd.f32 %v3635, %v3730
          %v3899 = vadd.f32 %v3636, %v3730
          %v3900 = vadd.f32 %v3637, %v3730
          %v3901 = vadd.f32 %v3638, %v3730
          %v3902 = vadd.f32 %v3639, %v3730
          %v3903 = vadd.f32 %v3640, %v3730
          %v3904 = vadd.f32 %v3641, %v3730
          %v3905 = vadd.f32 %v3642, %v3730
          %v3906 = vadd.f32 %v3643, %v3730
          %v3907 = vadd.f32 %v3644, %v3730
          %v3908 = vadd.f32 %v3645, %v3730
          %v3909 = vadd.f32 %v3646, %v3730
          %v3910 = vadd.f32 %v3647, %v3730
          %v3911 = vadd.f32 %v3648, %v3730
          %v3912 = vadd.f32 %v3649, %v3730
          %v3913 = vadd.f32 %v3650, %v3730
          %v3914 = vadd.f32 %v3651, %v3730
          %v3915 = vadd.f32 %v3652, %v3730
          %v3916 = vadd.f32 %v3653, %v3730
          %v3917 = vadd.f32 %v3654, %v3730
          %v3918 = vadd.f32 %v3655, %v3730
          %v3919 = vadd.f32 %v3656, %v3730
          %v3920 = vadd.f32 %v3657, %v3730
          %v3921 = vadd.f32 %v3658, %v3730
          %v3922 = vadd.f32 %v3659, %v3730
          %v3923 = vadd.f32 %v3660, %v3730
          %v3924 = vadd.f32 %v3661, %v3730
          %v3925 = vadd.f32 %v3662, %v3730
          %v3926 = vadd.f32 %v3663, %v3730
          %v3927 = vadd.f32 %v3664, %v3730
          %v3928 = vadd.f32 %v3665, %v3730
          %v3929 = vadd.f32 %v3666, %v3730
          %v3930 = vadd.f32 %v3667, %v3730
          %v3931 = vadd.f32 %v3668, %v3730
          %v3932 = vadd.f32 %v3669, %v3730
          %v3933 = vadd.f32 %v3670, %v3730
          %v3934 = vadd.f32 %v3671, %v3730
          %v3935 = vadd.f32 %v3672, %v3730
          %v3936 = vadd.f32 %v3673, %v3730
          %v3937 = vadd.f32 %v3674, %v3730
          %v3938 = vadd.f32 %v3675, %v3730
          %v3939 = vadd.f32 %v3676, %v3730
          %v3940 = vadd.f32 %v3677, %v3730
          %v3941 = vadd.f32 %v3678, %v3730
          %v3942 = vadd.f32 %v3679, %v3730
          %v3943 = vadd.f32 %v3680, %v3730
          %v3944 = vadd.f32 %v3681, %v3730
          %v3945 = vadd.f32 %v3682, %v3730
          %v3946 = vadd.f32 %v3683, %v3730
          %v3947 = vadd.f32 %v3684, %v3730
          %v3948 = vadd.f32 %v3685, %v3730
          %v3949 = vadd.f32 %v3686, %v3730
          %v3950 = vadd.f32 %v3687, %v3730
          %v3951 = vadd.f32 %v3688, %v3730
          %v3952 = vadd.f32 %v3689, %v3730
          %v3953 = vadd.f32 %v3690, %v3730
          %v3954 = vadd.f32 %v3691, %v3730
          %v3955 = vadd.f32 %v3692, %v3730
          %v3956 = vadd.f32 %v3693, %v3730
          %v3957 = vadd.f32 %v3694, %v3730
          %v3958 = vadd.f32 %v3695, %v3730
          %v3959 = vadd.f32 %v3696, %v3730
          %v3960 = vadd.f32 %v3697, %v3730
          %v3961 = vadd.f32 %v3698, %v3730
          %v3962 = vadd.f32 %v3699, %v3730
          %v3963 = vadd.f32 %v3700, %v3730
          %v3964 = vadd.f32 %v3701, %v3730
          %v3965 = vadd.f32 %v3702, %v3730
          %v3966 = vadd.f32 %v3703, %v3730
          %v3967 = vadd.f32 %v3704, %v3730
          %v3968 = vadd.f32 %v3705, %v3730
          %v3969 = vadd.f32 %v3706, %v3730
          %v3970 = vadd.f32 %v3707, %v3730
          %v3971 = vadd.f32 %v3708, %v3730
          %v3972 = vadd.f32 %v3709, %v3730
          %v3973 = vadd.f32 %v3710, %v3730
          %v3974 = vadd.f32 %v3711, %v3730
          %v3975 = vadd.f32 %v3712, %v3730
          %v3976 = vadd.f32 %v3713, %v3730
          %v3977 = vadd.f32 %v3714, %v3730
          %v3978 = vadd.f32 %v3715, %v3730
          %v3979 = vadd.f32 %v3716, %v3730
          %v3980 = vadd.f32 %v3717, %v3730
          %v3981 = vadd.f32 %v3718, %v3730
          %v3982 = vadd.f32 %v3719, %v3730
          %v3983 = vadd.f32 %v3720, %v3730
          %v3984 = vadd.f32 %v3721, %v3730
          %v3985 = vadd.f32 %v3722, %v3730
          %v3986 = vadd.f32 %v3723, %v3730
          %v3987 = vadd.f32 %v3724, %v3730
          %vm3988 = vcmp.ge.f32.partialorder %v3732, 0.0
          %vm3989 = vcmp.ge.f32.partialorder %v3733, 0.0
          %vm3990 = vcmp.ge.f32.partialorder %v3734, 0.0
          %vm3991 = vcmp.ge.f32.partialorder %v3735, 0.0
          %vm3992 = vcmp.ge.f32.partialorder %v3736, 0.0
          %vm3993 = vcmp.ge.f32.partialorder %v3737, 0.0
          %vm3994 = vcmp.ge.f32.partialorder %v3738, 0.0
          %vm3995 = vcmp.ge.f32.partialorder %v3739, 0.0
          %vm3996 = vcmp.ge.f32.partialorder %v3740, 0.0
          %vm3997 = vcmp.ge.f32.partialorder %v3741, 0.0
          %vm3998 = vcmp.ge.f32.partialorder %v3742, 0.0
          %vm3999 = vcmp.ge.f32.partialorder %v3743, 0.0
          %vm4000 = vcmp.ge.f32.partialorder %v3744, 0.0
          %vm4001 = vcmp.ge.f32.partialorder %v3745, 0.0
          %vm4002 = vcmp.ge.f32.partialorder %v3746, 0.0
          %vm4003 = vcmp.ge.f32.partialorder %v3747, 0.0
          %vm4004 = vcmp.ge.f32.partialorder %v3748, 0.0
          %vm4005 = vcmp.ge.f32.partialorder %v3749, 0.0
          %vm4006 = vcmp.ge.f32.partialorder %v3750, 0.0
          %vm4007 = vcmp.ge.f32.partialorder %v3751, 0.0
          %vm4008 = vcmp.ge.f32.partialorder %v3752, 0.0
          %vm4009 = vcmp.ge.f32.partialorder %v3753, 0.0
          %vm4010 = vcmp.ge.f32.partialorder %v3754, 0.0
          %vm4011 = vcmp.ge.f32.partialorder %v3755, 0.0
          %vm4012 = vcmp.ge.f32.partialorder %v3756, 0.0
          %vm4013 = vcmp.ge.f32.partialorder %v3757, 0.0
          %vm4014 = vcmp.ge.f32.partialorder %v3758, 0.0
          %vm4015 = vcmp.ge.f32.partialorder %v3759, 0.0
          %vm4016 = vcmp.ge.f32.partialorder %v3760, 0.0
          %vm4017 = vcmp.ge.f32.partialorder %v3761, 0.0
          %vm4018 = vcmp.ge.f32.partialorder %v3762, 0.0
          %vm4019 = vcmp.ge.f32.partialorder %v3763, 0.0
          %vm4020 = vcmp.ge.f32.partialorder %v3764, 0.0
          %vm4021 = vcmp.ge.f32.partialorder %v3765, 0.0
          %vm4022 = vcmp.ge.f32.partialorder %v3766, 0.0
          %vm4023 = vcmp.ge.f32.partialorder %v3767, 0.0
          %vm4024 = vcmp.ge.f32.partialorder %v3768, 0.0
          %vm4025 = vcmp.ge.f32.partialorder %v3769, 0.0
          %vm4026 = vcmp.ge.f32.partialorder %v3770, 0.0
          %vm4027 = vcmp.ge.f32.partialorder %v3771, 0.0
          %vm4028 = vcmp.ge.f32.partialorder %v3772, 0.0
          %vm4029 = vcmp.ge.f32.partialorder %v3773, 0.0
          %vm4030 = vcmp.ge.f32.partialorder %v3774, 0.0
          %vm4031 = vcmp.ge.f32.partialorder %v3775, 0.0
          %vm4032 = vcmp.ge.f32.partialorder %v3776, 0.0
          %vm4033 = vcmp.ge.f32.partialorder %v3777, 0.0
          %vm4034 = vcmp.ge.f32.partialorder %v3778, 0.0
          %vm4035 = vcmp.ge.f32.partialorder %v3779, 0.0
          %vm4036 = vcmp.ge.f32.partialorder %v3780, 0.0
          %vm4037 = vcmp.ge.f32.partialorder %v3781, 0.0
          %vm4038 = vcmp.ge.f32.partialorder %v3782, 0.0
          %vm4039 = vcmp.ge.f32.partialorder %v3783, 0.0
          %vm4040 = vcmp.ge.f32.partialorder %v3784, 0.0
          %vm4041 = vcmp.ge.f32.partialorder %v3785, 0.0
          %vm4042 = vcmp.ge.f32.partialorder %v3786, 0.0
          %vm4043 = vcmp.ge.f32.partialorder %v3787, 0.0
          %vm4044 = vcmp.ge.f32.partialorder %v3788, 0.0
          %vm4045 = vcmp.ge.f32.partialorder %v3789, 0.0
          %vm4046 = vcmp.ge.f32.partialorder %v3790, 0.0
          %vm4047 = vcmp.ge.f32.partialorder %v3791, 0.0
          %vm4048 = vcmp.ge.f32.partialorder %v3792, 0.0
          %vm4049 = vcmp.ge.f32.partialorder %v3793, 0.0
          %vm4050 = vcmp.ge.f32.partialorder %v3794, 0.0
          %vm4051 = vcmp.ge.f32.partialorder %v3795, 0.0
          %vm4052 = vcmp.ge.f32.partialorder %v3796, 0.0
          %vm4053 = vcmp.ge.f32.partialorder %v3797, 0.0
          %vm4054 = vcmp.ge.f32.partialorder %v3798, 0.0
          %vm4055 = vcmp.ge.f32.partialorder %v3799, 0.0
          %vm4056 = vcmp.ge.f32.partialorder %v3800, 0.0
          %vm4057 = vcmp.ge.f32.partialorder %v3801, 0.0
          %vm4058 = vcmp.ge.f32.partialorder %v3802, 0.0
          %vm4059 = vcmp.ge.f32.partialorder %v3803, 0.0
          %vm4060 = vcmp.ge.f32.partialorder %v3804, 0.0
          %vm4061 = vcmp.ge.f32.partialorder %v3805, 0.0
          %vm4062 = vcmp.ge.f32.partialorder %v3806, 0.0
          %vm4063 = vcmp.ge.f32.partialorder %v3807, 0.0
          %vm4064 = vcmp.ge.f32.partialorder %v3808, 0.0
          %vm4065 = vcmp.ge.f32.partialorder %v3809, 0.0
          %vm4066 = vcmp.ge.f32.partialorder %v3810, 0.0
          %vm4067 = vcmp.ge.f32.partialorder %v3811, 0.0
          %vm4068 = vcmp.ge.f32.partialorder %v3812, 0.0
          %vm4069 = vcmp.ge.f32.partialorder %v3813, 0.0
          %vm4070 = vcmp.ge.f32.partialorder %v3814, 0.0
          %vm4071 = vcmp.ge.f32.partialorder %v3815, 0.0
          %vm4072 = vcmp.ge.f32.partialorder %v3816, 0.0
          %vm4073 = vcmp.ge.f32.partialorder %v3817, 0.0
          %vm4074 = vcmp.ge.f32.partialorder %v3818, 0.0
          %vm4075 = vcmp.ge.f32.partialorder %v3819, 0.0
          %vm4076 = vcmp.ge.f32.partialorder %v3820, 0.0
          %vm4077 = vcmp.ge.f32.partialorder %v3821, 0.0
          %vm4078 = vcmp.ge.f32.partialorder %v3822, 0.0
          %vm4079 = vcmp.ge.f32.partialorder %v3823, 0.0
          %vm4080 = vcmp.ge.f32.partialorder %v3824, 0.0
          %vm4081 = vcmp.ge.f32.partialorder %v3825, 0.0
          %vm4082 = vcmp.ge.f32.partialorder %v3826, 0.0
          %vm4083 = vcmp.ge.f32.partialorder %v3827, 0.0
          %vm4084 = vcmp.ge.f32.partialorder %v3828, 0.0
          %vm4085 = vcmp.ge.f32.partialorder %v3829, 0.0
          %vm4086 = vcmp.ge.f32.partialorder %v3830, 0.0
          %vm4087 = vcmp.ge.f32.partialorder %v3831, 0.0
          %vm4088 = vcmp.ge.f32.partialorder %v3832, 0.0
          %vm4089 = vcmp.ge.f32.partialorder %v3833, 0.0
          %vm4090 = vcmp.ge.f32.partialorder %v3834, 0.0
          %vm4091 = vcmp.ge.f32.partialorder %v3835, 0.0
          %vm4092 = vcmp.ge.f32.partialorder %v3836, 0.0
          %vm4093 = vcmp.ge.f32.partialorder %v3837, 0.0
          %vm4094 = vcmp.ge.f32.partialorder %v3838, 0.0
          %vm4095 = vcmp.ge.f32.partialorder %v3839, 0.0
          %vm4096 = vcmp.ge.f32.partialorder %v3840, 0.0
          %vm4097 = vcmp.ge.f32.partialorder %v3841, 0.0
          %vm4098 = vcmp.ge.f32.partialorder %v3842, 0.0
          %vm4099 = vcmp.ge.f32.partialorder %v3843, 0.0
          %vm4100 = vcmp.ge.f32.partialorder %v3844, 0.0
          %vm4101 = vcmp.ge.f32.partialorder %v3845, 0.0
          %vm4102 = vcmp.ge.f32.partialorder %v3846, 0.0
          %vm4103 = vcmp.ge.f32.partialorder %v3847, 0.0
          %vm4104 = vcmp.ge.f32.partialorder %v3848, 0.0
          %vm4105 = vcmp.ge.f32.partialorder %v3849, 0.0
          %vm4106 = vcmp.ge.f32.partialorder %v3850, 0.0
          %vm4107 = vcmp.ge.f32.partialorder %v3851, 0.0
          %vm4108 = vcmp.ge.f32.partialorder %v3852, 0.0
          %vm4109 = vcmp.ge.f32.partialorder %v3853, 0.0
          %vm4110 = vcmp.ge.f32.partialorder %v3854, 0.0
          %vm4111 = vcmp.ge.f32.partialorder %v3855, 0.0
          %vm4112 = vcmp.ge.f32.partialorder %v3856, 0.0
          %vm4113 = vcmp.ge.f32.partialorder %v3857, 0.0
          %vm4114 = vcmp.ge.f32.partialorder %v3858, 0.0
          %vm4115 = vcmp.ge.f32.partialorder %v3859, 0.0
          %vm4116 = vcmp.ge.f32.partialorder %v3860, 0.0
          %vm4117 = vcmp.ge.f32.partialorder %v3861, 0.0
          %vm4118 = vcmp.ge.f32.partialorder %v3862, 0.0
          %vm4119 = vcmp.ge.f32.partialorder %v3863, 0.0
          %vm4120 = vcmp.ge.f32.partialorder %v3864, 0.0
          %vm4121 = vcmp.ge.f32.partialorder %v3865, 0.0
          %vm4122 = vcmp.ge.f32.partialorder %v3866, 0.0
          %vm4123 = vcmp.ge.f32.partialorder %v3867, 0.0
          %vm4124 = vcmp.ge.f32.partialorder %v3868, 0.0
          %vm4125 = vcmp.ge.f32.partialorder %v3869, 0.0
          %vm4126 = vcmp.ge.f32.partialorder %v3870, 0.0
          %vm4127 = vcmp.ge.f32.partialorder %v3871, 0.0
          %vm4128 = vcmp.ge.f32.partialorder %v3872, 0.0
          %vm4129 = vcmp.ge.f32.partialorder %v3873, 0.0
          %vm4130 = vcmp.ge.f32.partialorder %v3874, 0.0
          %vm4131 = vcmp.ge.f32.partialorder %v3875, 0.0
          %vm4132 = vcmp.ge.f32.partialorder %v3876, 0.0
          %vm4133 = vcmp.ge.f32.partialorder %v3877, 0.0
          %vm4134 = vcmp.ge.f32.partialorder %v3878, 0.0
          %vm4135 = vcmp.ge.f32.partialorder %v3879, 0.0
          %vm4136 = vcmp.ge.f32.partialorder %v3880, 0.0
          %vm4137 = vcmp.ge.f32.partialorder %v3881, 0.0
          %vm4138 = vcmp.ge.f32.partialorder %v3882, 0.0
          %vm4139 = vcmp.ge.f32.partialorder %v3883, 0.0
          %vm4140 = vcmp.ge.f32.partialorder %v3884, 0.0
          %vm4141 = vcmp.ge.f32.partialorder %v3885, 0.0
          %vm4142 = vcmp.ge.f32.partialorder %v3886, 0.0
          %vm4143 = vcmp.ge.f32.partialorder %v3887, 0.0
          %vm4144 = vcmp.ge.f32.partialorder %v3888, 0.0
          %vm4145 = vcmp.ge.f32.partialorder %v3889, 0.0
          %vm4146 = vcmp.ge.f32.partialorder %v3890, 0.0
          %vm4147 = vcmp.ge.f32.partialorder %v3891, 0.0
          %vm4148 = vcmp.ge.f32.partialorder %v3892, 0.0
          %vm4149 = vcmp.ge.f32.partialorder %v3893, 0.0
          %vm4150 = vcmp.ge.f32.partialorder %v3894, 0.0
          %vm4151 = vcmp.ge.f32.partialorder %v3895, 0.0
          %vm4152 = vcmp.ge.f32.partialorder %v3896, 0.0
          %vm4153 = vcmp.ge.f32.partialorder %v3897, 0.0
          %vm4154 = vcmp.ge.f32.partialorder %v3898, 0.0
          %vm4155 = vcmp.ge.f32.partialorder %v3899, 0.0
          %vm4156 = vcmp.ge.f32.partialorder %v3900, 0.0
          %vm4157 = vcmp.ge.f32.partialorder %v3901, 0.0
          %vm4158 = vcmp.ge.f32.partialorder %v3902, 0.0
          %vm4159 = vcmp.ge.f32.partialorder %v3903, 0.0
          %vm4160 = vcmp.ge.f32.partialorder %v3904, 0.0
          %vm4161 = vcmp.ge.f32.partialorder %v3905, 0.0
          %vm4162 = vcmp.ge.f32.partialorder %v3906, 0.0
          %vm4163 = vcmp.ge.f32.partialorder %v3907, 0.0
          %vm4164 = vcmp.ge.f32.partialorder %v3908, 0.0
          %vm4165 = vcmp.ge.f32.partialorder %v3909, 0.0
          %vm4166 = vcmp.ge.f32.partialorder %v3910, 0.0
          %vm4167 = vcmp.ge.f32.partialorder %v3911, 0.0
          %vm4168 = vcmp.ge.f32.partialorder %v3912, 0.0
          %vm4169 = vcmp.ge.f32.partialorder %v3913, 0.0
          %vm4170 = vcmp.ge.f32.partialorder %v3914, 0.0
          %vm4171 = vcmp.ge.f32.partialorder %v3915, 0.0
          %vm4172 = vcmp.ge.f32.partialorder %v3916, 0.0
          %vm4173 = vcmp.ge.f32.partialorder %v3917, 0.0
          %vm4174 = vcmp.ge.f32.partialorder %v3918, 0.0
          %vm4175 = vcmp.ge.f32.partialorder %v3919, 0.0
          %vm4176 = vcmp.ge.f32.partialorder %v3920, 0.0
          %vm4177 = vcmp.ge.f32.partialorder %v3921, 0.0
          %vm4178 = vcmp.ge.f32.partialorder %v3922, 0.0
          %vm4179 = vcmp.ge.f32.partialorder %v3923, 0.0
          %vm4180 = vcmp.ge.f32.partialorder %v3924, 0.0
          %vm4181 = vcmp.ge.f32.partialorder %v3925, 0.0
          %vm4182 = vcmp.ge.f32.partialorder %v3926, 0.0
          %vm4183 = vcmp.ge.f32.partialorder %v3927, 0.0
          %vm4184 = vcmp.ge.f32.partialorder %v3928, 0.0
          %vm4185 = vcmp.ge.f32.partialorder %v3929, 0.0
          %vm4186 = vcmp.ge.f32.partialorder %v3930, 0.0
          %vm4187 = vcmp.ge.f32.partialorder %v3931, 0.0
          %vm4188 = vcmp.ge.f32.partialorder %v3932, 0.0
          %vm4189 = vcmp.ge.f32.partialorder %v3933, 0.0
          %vm4190 = vcmp.ge.f32.partialorder %v3934, 0.0
          %vm4191 = vcmp.ge.f32.partialorder %v3935, 0.0
          %vm4192 = vcmp.ge.f32.partialorder %v3936, 0.0
          %vm4193 = vcmp.ge.f32.partialorder %v3937, 0.0
          %vm4194 = vcmp.ge.f32.partialorder %v3938, 0.0
          %vm4195 = vcmp.ge.f32.partialorder %v3939, 0.0
          %vm4196 = vcmp.ge.f32.partialorder %v3940, 0.0
          %vm4197 = vcmp.ge.f32.partialorder %v3941, 0.0
          %vm4198 = vcmp.ge.f32.partialorder %v3942, 0.0
          %vm4199 = vcmp.ge.f32.partialorder %v3943, 0.0
          %vm4200 = vcmp.ge.f32.partialorder %v3944, 0.0
          %vm4201 = vcmp.ge.f32.partialorder %v3945, 0.0
          %vm4202 = vcmp.ge.f32.partialorder %v3946, 0.0
          %vm4203 = vcmp.ge.f32.partialorder %v3947, 0.0
          %vm4204 = vcmp.ge.f32.partialorder %v3948, 0.0
          %vm4205 = vcmp.ge.f32.partialorder %v3949, 0.0
          %vm4206 = vcmp.ge.f32.partialorder %v3950, 0.0
          %vm4207 = vcmp.ge.f32.partialorder %v3951, 0.0
          %vm4208 = vcmp.ge.f32.partialorder %v3952, 0.0
          %vm4209 = vcmp.ge.f32.partialorder %v3953, 0.0
          %vm4210 = vcmp.ge.f32.partialorder %v3954, 0.0
          %vm4211 = vcmp.ge.f32.partialorder %v3955, 0.0
          %vm4212 = vcmp.ge.f32.partialorder %v3956, 0.0
          %vm4213 = vcmp.ge.f32.partialorder %v3957, 0.0
          %vm4214 = vcmp.ge.f32.partialorder %v3958, 0.0
          %vm4215 = vcmp.ge.f32.partialorder %v3959, 0.0
          %vm4216 = vcmp.ge.f32.partialorder %v3960, 0.0
          %vm4217 = vcmp.ge.f32.partialorder %v3961, 0.0
          %vm4218 = vcmp.ge.f32.partialorder %v3962, 0.0
          %vm4219 = vcmp.ge.f32.partialorder %v3963, 0.0
          %vm4220 = vcmp.ge.f32.partialorder %v3964, 0.0
          %vm4221 = vcmp.ge.f32.partialorder %v3965, 0.0
          %vm4222 = vcmp.ge.f32.partialorder %v3966, 0.0
          %vm4223 = vcmp.ge.f32.partialorder %v3967, 0.0
          %vm4224 = vcmp.ge.f32.partialorder %v3968, 0.0
          %vm4225 = vcmp.ge.f32.partialorder %v3969, 0.0
          %vm4226 = vcmp.ge.f32.partialorder %v3970, 0.0
          %vm4227 = vcmp.ge.f32.partialorder %v3971, 0.0
          %vm4228 = vcmp.ge.f32.partialorder %v3972, 0.0
          %vm4229 = vcmp.ge.f32.partialorder %v3973, 0.0
          %vm4230 = vcmp.ge.f32.partialorder %v3974, 0.0
          %vm4231 = vcmp.ge.f32.partialorder %v3975, 0.0
          %vm4232 = vcmp.ge.f32.partialorder %v3976, 0.0
          %vm4233 = vcmp.ge.f32.partialorder %v3977, 0.0
          %vm4234 = vcmp.ge.f32.partialorder %v3978, 0.0
          %vm4235 = vcmp.ge.f32.partialorder %v3979, 0.0
          %vm4236 = vcmp.ge.f32.partialorder %v3980, 0.0
          %vm4237 = vcmp.ge.f32.partialorder %v3981, 0.0
          %vm4238 = vcmp.ge.f32.partialorder %v3982, 0.0
          %vm4239 = vcmp.ge.f32.partialorder %v3983, 0.0
          %vm4240 = vcmp.ge.f32.partialorder %v3984, 0.0
          %vm4241 = vcmp.ge.f32.partialorder %v3985, 0.0
          %vm4242 = vcmp.ge.f32.partialorder %v3986, 0.0
          %vm4243 = vcmp.ge.f32.partialorder %v3987, 0.0
          %v4244 = vmul.f32 %v3732, 0.2
          %v4245 = vmul.f32 %v3733, 0.2
          %v4246 = vmul.f32 %v3734, 0.2
          %v4247 = vmul.f32 %v3735, 0.2
          %v4248 = vmul.f32 %v3736, 0.2
          %v4249 = vmul.f32 %v3737, 0.2
          %v4250 = vmul.f32 %v3738, 0.2
          %v4251 = vmul.f32 %v3739, 0.2
          %v4252 = vmul.f32 %v3740, 0.2
          %v4253 = vmul.f32 %v3741, 0.2
          %v4254 = vmul.f32 %v3742, 0.2
          %v4255 = vmul.f32 %v3743, 0.2
          %v4256 = vmul.f32 %v3744, 0.2
          %v4257 = vmul.f32 %v3745, 0.2
          %v4258 = vmul.f32 %v3746, 0.2
          %v4259 = vmul.f32 %v3747, 0.2
          %v4260 = vmul.f32 %v3748, 0.2
          %v4261 = vmul.f32 %v3749, 0.2
          %v4262 = vmul.f32 %v3750, 0.2
          %v4263 = vmul.f32 %v3751, 0.2
          %v4264 = vmul.f32 %v3752, 0.2
          %v4265 = vmul.f32 %v3753, 0.2
          %v4266 = vmul.f32 %v3754, 0.2
          %v4267 = vmul.f32 %v3755, 0.2
          %v4268 = vmul.f32 %v3756, 0.2
          %v4269 = vmul.f32 %v3757, 0.2
          %v4270 = vmul.f32 %v3758, 0.2
          %v4271 = vmul.f32 %v3759, 0.2
          %v4272 = vmul.f32 %v3760, 0.2
          %v4273 = vmul.f32 %v3761, 0.2
          %v4274 = vmul.f32 %v3762, 0.2
          %v4275 = vmul.f32 %v3763, 0.2
          %v4276 = vmul.f32 %v3764, 0.2
          %v4277 = vmul.f32 %v3765, 0.2
          %v4278 = vmul.f32 %v3766, 0.2
          %v4279 = vmul.f32 %v3767, 0.2
          %v4280 = vmul.f32 %v3768, 0.2
          %v4281 = vmul.f32 %v3769, 0.2
          %v4282 = vmul.f32 %v3770, 0.2
          %v4283 = vmul.f32 %v3771, 0.2
          %v4284 = vmul.f32 %v3772, 0.2
          %v4285 = vmul.f32 %v3773, 0.2
          %v4286 = vmul.f32 %v3774, 0.2
          %v4287 = vmul.f32 %v3775, 0.2
          %v4288 = vmul.f32 %v3776, 0.2
          %v4289 = vmul.f32 %v3777, 0.2
          %v4290 = vmul.f32 %v3778, 0.2
          %v4291 = vmul.f32 %v3779, 0.2
          %v4292 = vmul.f32 %v3780, 0.2
          %v4293 = vmul.f32 %v3781, 0.2
          %v4294 = vmul.f32 %v3782, 0.2
          %v4295 = vmul.f32 %v3783, 0.2
          %v4296 = vmul.f32 %v3784, 0.2
          %v4297 = vmul.f32 %v3785, 0.2
          %v4298 = vmul.f32 %v3786, 0.2
          %v4299 = vmul.f32 %v3787, 0.2
          %v4300 = vmul.f32 %v3788, 0.2
          %v4301 = vmul.f32 %v3789, 0.2
          %v4302 = vmul.f32 %v3790, 0.2
          %v4303 = vmul.f32 %v3791, 0.2
          %v4304 = vmul.f32 %v3792, 0.2
          %v4305 = vmul.f32 %v3793, 0.2
          %v4306 = vmul.f32 %v3794, 0.2
          %v4307 = vmul.f32 %v3795, 0.2
          %v4308 = vmul.f32 %v3796, 0.2
          %v4309 = vmul.f32 %v3797, 0.2
          %v4310 = vmul.f32 %v3798, 0.2
          %v4311 = vmul.f32 %v3799, 0.2
          %v4312 = vmul.f32 %v3800, 0.2
          %v4313 = vmul.f32 %v3801, 0.2
          %v4314 = vmul.f32 %v3802, 0.2
          %v4315 = vmul.f32 %v3803, 0.2
          %v4316 = vmul.f32 %v3804, 0.2
          %v4317 = vmul.f32 %v3805, 0.2
          %v4318 = vmul.f32 %v3806, 0.2
          %v4319 = vmul.f32 %v3807, 0.2
          %v4320 = vmul.f32 %v3808, 0.2
          %v4321 = vmul.f32 %v3809, 0.2
          %v4322 = vmul.f32 %v3810, 0.2
          %v4323 = vmul.f32 %v3811, 0.2
          %v4324 = vmul.f32 %v3812, 0.2
          %v4325 = vmul.f32 %v3813, 0.2
          %v4326 = vmul.f32 %v3814, 0.2
          %v4327 = vmul.f32 %v3815, 0.2
          %v4328 = vmul.f32 %v3816, 0.2
          %v4329 = vmul.f32 %v3817, 0.2
          %v4330 = vmul.f32 %v3818, 0.2
          %v4331 = vmul.f32 %v3819, 0.2
          %v4332 = vmul.f32 %v3820, 0.2
          %v4333 = vmul.f32 %v3821, 0.2
          %v4334 = vmul.f32 %v3822, 0.2
          %v4335 = vmul.f32 %v3823, 0.2
          %v4336 = vmul.f32 %v3824, 0.2
          %v4337 = vmul.f32 %v3825, 0.2
          %v4338 = vmul.f32 %v3826, 0.2
          %v4339 = vmul.f32 %v3827, 0.2
          %v4340 = vmul.f32 %v3828, 0.2
          %v4341 = vmul.f32 %v3829, 0.2
          %v4342 = vmul.f32 %v3830, 0.2
          %v4343 = vmul.f32 %v3831, 0.2
          %v4344 = vmul.f32 %v3832, 0.2
          %v4345 = vmul.f32 %v3833, 0.2
          %v4346 = vmul.f32 %v3834, 0.2
          %v4347 = vmul.f32 %v3835, 0.2
          %v4348 = vmul.f32 %v3836, 0.2
          %v4349 = vmul.f32 %v3837, 0.2
          %v4350 = vmul.f32 %v3838, 0.2
          %v4351 = vmul.f32 %v3839, 0.2
          %v4352 = vmul.f32 %v3840, 0.2
          %v4353 = vmul.f32 %v3841, 0.2
          %v4354 = vmul.f32 %v3842, 0.2
          %v4355 = vmul.f32 %v3843, 0.2
          %v4356 = vmul.f32 %v3844, 0.2
          %v4357 = vmul.f32 %v3845, 0.2
          %v4358 = vmul.f32 %v3846, 0.2
          %v4359 = vmul.f32 %v3847, 0.2
          %v4360 = vmul.f32 %v3848, 0.2
          %v4361 = vmul.f32 %v3849, 0.2
          %v4362 = vmul.f32 %v3850, 0.2
          %v4363 = vmul.f32 %v3851, 0.2
          %v4364 = vmul.f32 %v3852, 0.2
          %v4365 = vmul.f32 %v3853, 0.2
          %v4366 = vmul.f32 %v3854, 0.2
          %v4367 = vmul.f32 %v3855, 0.2
          %v4368 = vmul.f32 %v3856, 0.2
          %v4369 = vmul.f32 %v3857, 0.2
          %v4370 = vmul.f32 %v3858, 0.2
          %v4371 = vmul.f32 %v3859, 0.2
          %v4372 = vmul.f32 %v3860, 0.2
          %v4373 = vmul.f32 %v3861, 0.2
          %v4374 = vmul.f32 %v3862, 0.2
          %v4375 = vmul.f32 %v3863, 0.2
          %v4376 = vmul.f32 %v3864, 0.2
          %v4377 = vmul.f32 %v3865, 0.2
          %v4378 = vmul.f32 %v3866, 0.2
          %v4379 = vmul.f32 %v3867, 0.2
          %v4380 = vmul.f32 %v3868, 0.2
          %v4381 = vmul.f32 %v3869, 0.2
          %v4382 = vmul.f32 %v3870, 0.2
          %v4383 = vmul.f32 %v3871, 0.2
          %v4384 = vmul.f32 %v3872, 0.2
          %v4385 = vmul.f32 %v3873, 0.2
          %v4386 = vmul.f32 %v3874, 0.2
          %v4387 = vmul.f32 %v3875, 0.2
          %v4388 = vmul.f32 %v3876, 0.2
          %v4389 = vmul.f32 %v3877, 0.2
          %v4390 = vmul.f32 %v3878, 0.2
          %v4391 = vmul.f32 %v3879, 0.2
          %v4392 = vmul.f32 %v3880, 0.2
          %v4393 = vmul.f32 %v3881, 0.2
          %v4394 = vmul.f32 %v3882, 0.2
          %v4395 = vmul.f32 %v3883, 0.2
          %v4396 = vmul.f32 %v3884, 0.2
          %v4397 = vmul.f32 %v3885, 0.2
          %v4398 = vmul.f32 %v3886, 0.2
          %v4399 = vmul.f32 %v3887, 0.2
          %v4400 = vmul.f32 %v3888, 0.2
          %v4401 = vmul.f32 %v3889, 0.2
          %v4402 = vmul.f32 %v3890, 0.2
          %v4403 = vmul.f32 %v3891, 0.2
          %v4404 = vmul.f32 %v3892, 0.2
          %v4405 = vmul.f32 %v3893, 0.2
          %v4406 = vmul.f32 %v3894, 0.2
          %v4407 = vmul.f32 %v3895, 0.2
          %v4408 = vmul.f32 %v3896, 0.2
          %v4409 = vmul.f32 %v3897, 0.2
          %v4410 = vmul.f32 %v3898, 0.2
          %v4411 = vmul.f32 %v3899, 0.2
          %v4412 = vmul.f32 %v3900, 0.2
          %v4413 = vmul.f32 %v3901, 0.2
          %v4414 = vmul.f32 %v3902, 0.2
          %v4415 = vmul.f32 %v3903, 0.2
          %v4416 = vmul.f32 %v3904, 0.2
          %v4417 = vmul.f32 %v3905, 0.2
          %v4418 = vmul.f32 %v3906, 0.2
          %v4419 = vmul.f32 %v3907, 0.2
          %v4420 = vmul.f32 %v3908, 0.2
          %v4421 = vmul.f32 %v3909, 0.2
          %v4422 = vmul.f32 %v3910, 0.2
          %v4423 = vmul.f32 %v3911, 0.2
          %v4424 = vmul.f32 %v3912, 0.2
          %v4425 = vmul.f32 %v3913, 0.2
          %v4426 = vmul.f32 %v3914, 0.2
          %v4427 = vmul.f32 %v3915, 0.2
          %v4428 = vmul.f32 %v3916, 0.2
          %v4429 = vmul.f32 %v3917, 0.2
          %v4430 = vmul.f32 %v3918, 0.2
          %v4431 = vmul.f32 %v3919, 0.2
          %v4432 = vmul.f32 %v3920, 0.2
          %v4433 = vmul.f32 %v3921, 0.2
          %v4434 = vmul.f32 %v3922, 0.2
          %v4435 = vmul.f32 %v3923, 0.2
          %v4436 = vmul.f32 %v3924, 0.2
          %v4437 = vmul.f32 %v3925, 0.2
          %v4438 = vmul.f32 %v3926, 0.2
          %v4439 = vmul.f32 %v3927, 0.2
          %v4440 = vmul.f32 %v3928, 0.2
          %v4441 = vmul.f32 %v3929, 0.2
          %v4442 = vmul.f32 %v3930, 0.2
          %v4443 = vmul.f32 %v3931, 0.2
          %v4444 = vmul.f32 %v3932, 0.2
          %v4445 = vmul.f32 %v3933, 0.2
          %v4446 = vmul.f32 %v3934, 0.2
          %v4447 = vmul.f32 %v3935, 0.2
          %v4448 = vmul.f32 %v3936, 0.2
          %v4449 = vmul.f32 %v3937, 0.2
          %v4450 = vmul.f32 %v3938, 0.2
          %v4451 = vmul.f32 %v3939, 0.2
          %v4452 = vmul.f32 %v3940, 0.2
          %v4453 = vmul.f32 %v3941, 0.2
          %v4454 = vmul.f32 %v3942, 0.2
          %v4455 = vmul.f32 %v3943, 0.2
          %v4456 = vmul.f32 %v3944, 0.2
          %v4457 = vmul.f32 %v3945, 0.2
          %v4458 = vmul.f32 %v3946, 0.2
          %v4459 = vmul.f32 %v3947, 0.2
          %v4460 = vmul.f32 %v3948, 0.2
          %v4461 = vmul.f32 %v3949, 0.2
          %v4462 = vmul.f32 %v3950, 0.2
          %v4463 = vmul.f32 %v3951, 0.2
          %v4464 = vmul.f32 %v3952, 0.2
          %v4465 = vmul.f32 %v3953, 0.2
          %v4466 = vmul.f32 %v3954, 0.2
          %v4467 = vmul.f32 %v3955, 0.2
          %v4468 = vmul.f32 %v3956, 0.2
          %v4469 = vmul.f32 %v3957, 0.2
          %v4470 = vmul.f32 %v3958, 0.2
          %v4471 = vmul.f32 %v3959, 0.2
          %v4472 = vmul.f32 %v3960, 0.2
          %v4473 = vmul.f32 %v3961, 0.2
          %v4474 = vmul.f32 %v3962, 0.2
          %v4475 = vmul.f32 %v3963, 0.2
          %v4476 = vmul.f32 %v3964, 0.2
          %v4477 = vmul.f32 %v3965, 0.2
          %v4478 = vmul.f32 %v3966, 0.2
          %v4479 = vmul.f32 %v3967, 0.2
          %v4480 = vmul.f32 %v3968, 0.2
          %v4481 = vmul.f32 %v3969, 0.2
          %v4482 = vmul.f32 %v3970, 0.2
          %v4483 = vmul.f32 %v3971, 0.2
          %v4484 = vmul.f32 %v3972, 0.2
          %v4485 = vmul.f32 %v3973, 0.2
          %v4486 = vmul.f32 %v3974, 0.2
          %v4487 = vmul.f32 %v3975, 0.2
          %v4488 = vmul.f32 %v3976, 0.2
          %v4489 = vmul.f32 %v3977, 0.2
          %v4490 = vmul.f32 %v3978, 0.2
          %v4491 = vmul.f32 %v3979, 0.2
          %v4492 = vmul.f32 %v3980, 0.2
          %v4493 = vmul.f32 %v3981, 0.2
          %v4494 = vmul.f32 %v3982, 0.2
          %v4495 = vmul.f32 %v3983, 0.2
          %v4496 = vmul.f32 %v3984, 0.2
          %v4497 = vmul.f32 %v3985, 0.2
          %v4498 = vmul.f32 %v3986, 0.2
          %v4499 = vmul.f32 %v3987, 0.2
          %v4500 = vsel %vm3988, %v3732, %v4244
          %v4501 = vsel %vm3989, %v3733, %v4245
          %v4502 = vsel %vm3990, %v3734, %v4246
          %v4503 = vsel %vm3991, %v3735, %v4247
          %v4504 = vsel %vm3992, %v3736, %v4248
          %v4505 = vsel %vm3993, %v3737, %v4249
          %v4506 = vsel %vm3994, %v3738, %v4250
          %v4507 = vsel %vm3995, %v3739, %v4251
          %v4508 = vsel %vm3996, %v3740, %v4252
          %v4509 = vsel %vm3997, %v3741, %v4253
          %v4510 = vsel %vm3998, %v3742, %v4254
          %v4511 = vsel %vm3999, %v3743, %v4255
          %v4512 = vsel %vm4000, %v3744, %v4256
          %v4513 = vsel %vm4001, %v3745, %v4257
          %v4514 = vsel %vm4002, %v3746, %v4258
          %v4515 = vsel %vm4003, %v3747, %v4259
          %v4516 = vsel %vm4004, %v3748, %v4260
          %v4517 = vsel %vm4005, %v3749, %v4261
          %v4518 = vsel %vm4006, %v3750, %v4262
          %v4519 = vsel %vm4007, %v3751, %v4263
          %v4520 = vsel %vm4008, %v3752, %v4264
          %v4521 = vsel %vm4009, %v3753, %v4265
          %v4522 = vsel %vm4010, %v3754, %v4266
          %v4523 = vsel %vm4011, %v3755, %v4267
          %v4524 = vsel %vm4012, %v3756, %v4268
          %v4525 = vsel %vm4013, %v3757, %v4269
          %v4526 = vsel %vm4014, %v3758, %v4270
          %v4527 = vsel %vm4015, %v3759, %v4271
          %v4528 = vsel %vm4016, %v3760, %v4272
          %v4529 = vsel %vm4017, %v3761, %v4273
          %v4530 = vsel %vm4018, %v3762, %v4274
          %v4531 = vsel %vm4019, %v3763, %v4275
          %v4532 = vsel %vm4020, %v3764, %v4276
          %v4533 = vsel %vm4021, %v3765, %v4277
          %v4534 = vsel %vm4022, %v3766, %v4278
          %v4535 = vsel %vm4023, %v3767, %v4279
          %v4536 = vsel %vm4024, %v3768, %v4280
          %v4537 = vsel %vm4025, %v3769, %v4281
          %v4538 = vsel %vm4026, %v3770, %v4282
          %v4539 = vsel %vm4027, %v3771, %v4283
          %v4540 = vsel %vm4028, %v3772, %v4284
          %v4541 = vsel %vm4029, %v3773, %v4285
          %v4542 = vsel %vm4030, %v3774, %v4286
          %v4543 = vsel %vm4031, %v3775, %v4287
          %v4544 = vsel %vm4032, %v3776, %v4288
          %v4545 = vsel %vm4033, %v3777, %v4289
          %v4546 = vsel %vm4034, %v3778, %v4290
          %v4547 = vsel %vm4035, %v3779, %v4291
          %v4548 = vsel %vm4036, %v3780, %v4292
          %v4549 = vsel %vm4037, %v3781, %v4293
          %v4550 = vsel %vm4038, %v3782, %v4294
          %v4551 = vsel %vm4039, %v3783, %v4295
          %v4552 = vsel %vm4040, %v3784, %v4296
          %v4553 = vsel %vm4041, %v3785, %v4297
          %v4554 = vsel %vm4042, %v3786, %v4298
          %v4555 = vsel %vm4043, %v3787, %v4299
          %v4556 = vsel %vm4044, %v3788, %v4300
          %v4557 = vsel %vm4045, %v3789, %v4301
          %v4558 = vsel %vm4046, %v3790, %v4302
          %v4559 = vsel %vm4047, %v3791, %v4303
          %v4560 = vsel %vm4048, %v3792, %v4304
          %v4561 = vsel %vm4049, %v3793, %v4305
          %v4562 = vsel %vm4050, %v3794, %v4306
          %v4563 = vsel %vm4051, %v3795, %v4307
          %v4564 = vsel %vm4052, %v3796, %v4308
          %v4565 = vsel %vm4053, %v3797, %v4309
          %v4566 = vsel %vm4054, %v3798, %v4310
          %v4567 = vsel %vm4055, %v3799, %v4311
          %v4568 = vsel %vm4056, %v3800, %v4312
          %v4569 = vsel %vm4057, %v3801, %v4313
          %v4570 = vsel %vm4058, %v3802, %v4314
          %v4571 = vsel %vm4059, %v3803, %v4315
          %v4572 = vsel %vm4060, %v3804, %v4316
          %v4573 = vsel %vm4061, %v3805, %v4317
          %v4574 = vsel %vm4062, %v3806, %v4318
          %v4575 = vsel %vm4063, %v3807, %v4319
          %v4576 = vsel %vm4064, %v3808, %v4320
          %v4577 = vsel %vm4065, %v3809, %v4321
          %v4578 = vsel %vm4066, %v3810, %v4322
          %v4579 = vsel %vm4067, %v3811, %v4323
          %v4580 = vsel %vm4068, %v3812, %v4324
          %v4581 = vsel %vm4069, %v3813, %v4325
          %v4582 = vsel %vm4070, %v3814, %v4326
          %v4583 = vsel %vm4071, %v3815, %v4327
          %v4584 = vsel %vm4072, %v3816, %v4328
          %v4585 = vsel %vm4073, %v3817, %v4329
          %v4586 = vsel %vm4074, %v3818, %v4330
          %v4587 = vsel %vm4075, %v3819, %v4331
          %v4588 = vsel %vm4076, %v3820, %v4332
          %v4589 = vsel %vm4077, %v3821, %v4333
          %v4590 = vsel %vm4078, %v3822, %v4334
          %v4591 = vsel %vm4079, %v3823, %v4335
          %v4592 = vsel %vm4080, %v3824, %v4336
          %v4593 = vsel %vm4081, %v3825, %v4337
          %v4594 = vsel %vm4082, %v3826, %v4338
          %v4595 = vsel %vm4083, %v3827, %v4339
          %v4596 = vsel %vm4084, %v3828, %v4340
          %v4597 = vsel %vm4085, %v3829, %v4341
          %v4598 = vsel %vm4086, %v3830, %v4342
          %v4599 = vsel %vm4087, %v3831, %v4343
          %v4600 = vsel %vm4088, %v3832, %v4344
          %v4601 = vsel %vm4089, %v3833, %v4345
          %v4602 = vsel %vm4090, %v3834, %v4346
          %v4603 = vsel %vm4091, %v3835, %v4347
          %v4604 = vsel %vm4092, %v3836, %v4348
          %v4605 = vsel %vm4093, %v3837, %v4349
          %v4606 = vsel %vm4094, %v3838, %v4350
          %v4607 = vsel %vm4095, %v3839, %v4351
          %v4608 = vsel %vm4096, %v3840, %v4352
          %v4609 = vsel %vm4097, %v3841, %v4353
          %v4610 = vsel %vm4098, %v3842, %v4354
          %v4611 = vsel %vm4099, %v3843, %v4355
          %v4612 = vsel %vm4100, %v3844, %v4356
          %v4613 = vsel %vm4101, %v3845, %v4357
          %v4614 = vsel %vm4102, %v3846, %v4358
          %v4615 = vsel %vm4103, %v3847, %v4359
          %v4616 = vsel %vm4104, %v3848, %v4360
          %v4617 = vsel %vm4105, %v3849, %v4361
          %v4618 = vsel %vm4106, %v3850, %v4362
          %v4619 = vsel %vm4107, %v3851, %v4363
          %v4620 = vsel %vm4108, %v3852, %v4364
          %v4621 = vsel %vm4109, %v3853, %v4365
          %v4622 = vsel %vm4110, %v3854, %v4366
          %v4623 = vsel %vm4111, %v3855, %v4367
          %v4624 = vsel %vm4112, %v3856, %v4368
          %v4625 = vsel %vm4113, %v3857, %v4369
          %v4626 = vsel %vm4114, %v3858, %v4370
          %v4627 = vsel %vm4115, %v3859, %v4371
          %v4628 = vsel %vm4116, %v3860, %v4372
          %v4629 = vsel %vm4117, %v3861, %v4373
          %v4630 = vsel %vm4118, %v3862, %v4374
          %v4631 = vsel %vm4119, %v3863, %v4375
          %v4632 = vsel %vm4120, %v3864, %v4376
          %v4633 = vsel %vm4121, %v3865, %v4377
          %v4634 = vsel %vm4122, %v3866, %v4378
          %v4635 = vsel %vm4123, %v3867, %v4379
          %v4636 = vsel %vm4124, %v3868, %v4380
          %v4637 = vsel %vm4125, %v3869, %v4381
          %v4638 = vsel %vm4126, %v3870, %v4382
          %v4639 = vsel %vm4127, %v3871, %v4383
          %v4640 = vsel %vm4128, %v3872, %v4384
          %v4641 = vsel %vm4129, %v3873, %v4385
          %v4642 = vsel %vm4130, %v3874, %v4386
          %v4643 = vsel %vm4131, %v3875, %v4387
          %v4644 = vsel %vm4132, %v3876, %v4388
          %v4645 = vsel %vm4133, %v3877, %v4389
          %v4646 = vsel %vm4134, %v3878, %v4390
          %v4647 = vsel %vm4135, %v3879, %v4391
          %v4648 = vsel %vm4136, %v3880, %v4392
          %v4649 = vsel %vm4137, %v3881, %v4393
          %v4650 = vsel %vm4138, %v3882, %v4394
          %v4651 = vsel %vm4139, %v3883, %v4395
          %v4652 = vsel %vm4140, %v3884, %v4396
          %v4653 = vsel %vm4141, %v3885, %v4397
          %v4654 = vsel %vm4142, %v3886, %v4398
          %v4655 = vsel %vm4143, %v3887, %v4399
          %v4656 = vsel %vm4144, %v3888, %v4400
          %v4657 = vsel %vm4145, %v3889, %v4401
          %v4658 = vsel %vm4146, %v3890, %v4402
          %v4659 = vsel %vm4147, %v3891, %v4403
          %v4660 = vsel %vm4148, %v3892, %v4404
          %v4661 = vsel %vm4149, %v3893, %v4405
          %v4662 = vsel %vm4150, %v3894, %v4406
          %v4663 = vsel %vm4151, %v3895, %v4407
          %v4664 = vsel %vm4152, %v3896, %v4408
          %v4665 = vsel %vm4153, %v3897, %v4409
          %v4666 = vsel %vm4154, %v3898, %v4410
          %v4667 = vsel %vm4155, %v3899, %v4411
          %v4668 = vsel %vm4156, %v3900, %v4412
          %v4669 = vsel %vm4157, %v3901, %v4413
          %v4670 = vsel %vm4158, %v3902, %v4414
          %v4671 = vsel %vm4159, %v3903, %v4415
          %v4672 = vsel %vm4160, %v3904, %v4416
          %v4673 = vsel %vm4161, %v3905, %v4417
          %v4674 = vsel %vm4162, %v3906, %v4418
          %v4675 = vsel %vm4163, %v3907, %v4419
          %v4676 = vsel %vm4164, %v3908, %v4420
          %v4677 = vsel %vm4165, %v3909, %v4421
          %v4678 = vsel %vm4166, %v3910, %v4422
          %v4679 = vsel %vm4167, %v3911, %v4423
          %v4680 = vsel %vm4168, %v3912, %v4424
          %v4681 = vsel %vm4169, %v3913, %v4425
          %v4682 = vsel %vm4170, %v3914, %v4426
          %v4683 = vsel %vm4171, %v3915, %v4427
          %v4684 = vsel %vm4172, %v3916, %v4428
          %v4685 = vsel %vm4173, %v3917, %v4429
          %v4686 = vsel %vm4174, %v3918, %v4430
          %v4687 = vsel %vm4175, %v3919, %v4431
          %v4688 = vsel %vm4176, %v3920, %v4432
          %v4689 = vsel %vm4177, %v3921, %v4433
          %v4690 = vsel %vm4178, %v3922, %v4434
          %v4691 = vsel %vm4179, %v3923, %v4435
          %v4692 = vsel %vm4180, %v3924, %v4436
          %v4693 = vsel %vm4181, %v3925, %v4437
          %v4694 = vsel %vm4182, %v3926, %v4438
          %v4695 = vsel %vm4183, %v3927, %v4439
          %v4696 = vsel %vm4184, %v3928, %v4440
          %v4697 = vsel %vm4185, %v3929, %v4441
          %v4698 = vsel %vm4186, %v3930, %v4442
          %v4699 = vsel %vm4187, %v3931, %v4443
          %v4700 = vsel %vm4188, %v3932, %v4444
          %v4701 = vsel %vm4189, %v3933, %v4445
          %v4702 = vsel %vm4190, %v3934, %v4446
          %v4703 = vsel %vm4191, %v3935, %v4447
          %v4704 = vsel %vm4192, %v3936, %v4448
          %v4705 = vsel %vm4193, %v3937, %v4449
          %v4706 = vsel %vm4194, %v3938, %v4450
          %v4707 = vsel %vm4195, %v3939, %v4451
          %v4708 = vsel %vm4196, %v3940, %v4452
          %v4709 = vsel %vm4197, %v3941, %v4453
          %v4710 = vsel %vm4198, %v3942, %v4454
          %v4711 = vsel %vm4199, %v3943, %v4455
          %v4712 = vsel %vm4200, %v3944, %v4456
          %v4713 = vsel %vm4201, %v3945, %v4457
          %v4714 = vsel %vm4202, %v3946, %v4458
          %v4715 = vsel %vm4203, %v3947, %v4459
          %v4716 = vsel %vm4204, %v3948, %v4460
          %v4717 = vsel %vm4205, %v3949, %v4461
          %v4718 = vsel %vm4206, %v3950, %v4462
          %v4719 = vsel %vm4207, %v3951, %v4463
          %v4720 = vsel %vm4208, %v3952, %v4464
          %v4721 = vsel %vm4209, %v3953, %v4465
          %v4722 = vsel %vm4210, %v3954, %v4466
          %v4723 = vsel %vm4211, %v3955, %v4467
          %v4724 = vsel %vm4212, %v3956, %v4468
          %v4725 = vsel %vm4213, %v3957, %v4469
          %v4726 = vsel %vm4214, %v3958, %v4470
          %v4727 = vsel %vm4215, %v3959, %v4471
          %v4728 = vsel %vm4216, %v3960, %v4472
          %v4729 = vsel %vm4217, %v3961, %v4473
          %v4730 = vsel %vm4218, %v3962, %v4474
          %v4731 = vsel %vm4219, %v3963, %v4475
          %v4732 = vsel %vm4220, %v3964, %v4476
          %v4733 = vsel %vm4221, %v3965, %v4477
          %v4734 = vsel %vm4222, %v3966, %v4478
          %v4735 = vsel %vm4223, %v3967, %v4479
          %v4736 = vsel %vm4224, %v3968, %v4480
          %v4737 = vsel %vm4225, %v3969, %v4481
          %v4738 = vsel %vm4226, %v3970, %v4482
          %v4739 = vsel %vm4227, %v3971, %v4483
          %v4740 = vsel %vm4228, %v3972, %v4484
          %v4741 = vsel %vm4229, %v3973, %v4485
          %v4742 = vsel %vm4230, %v3974, %v4486
          %v4743 = vsel %vm4231, %v3975, %v4487
          %v4744 = vsel %vm4232, %v3976, %v4488
          %v4745 = vsel %vm4233, %v3977, %v4489
          %v4746 = vsel %vm4234, %v3978, %v4490
          %v4747 = vsel %vm4235, %v3979, %v4491
          %v4748 = vsel %vm4236, %v3980, %v4492
          %v4749 = vsel %vm4237, %v3981, %v4493
          %v4750 = vsel %vm4238, %v3982, %v4494
          %v4751 = vsel %vm4239, %v3983, %v4495
          %v4752 = vsel %vm4240, %v3984, %v4496
          %v4753 = vsel %vm4241, %v3985, %v4497
          %v4754 = vsel %vm4242, %v3986, %v4498
          %v4755 = vsel %vm4243, %v3987, %v4499
          %v4756 = vpack.c.bf16 %v4501, %v4500
          %v4757 = vpack.c.bf16 %v4503, %v4502
          %v4758 = vpack.c.bf16 %v4505, %v4504
          %v4759 = vpack.c.bf16 %v4507, %v4506
          %v4760 = vpack.c.bf16 %v4509, %v4508
          %v4761 = vpack.c.bf16 %v4511, %v4510
          %v4762 = vpack.c.bf16 %v4513, %v4512
          %v4763 = vpack.c.bf16 %v4515, %v4514
          %v4764 = vpack.c.bf16 %v4517, %v4516
          %v4765 = vpack.c.bf16 %v4519, %v4518
          %v4766 = vpack.c.bf16 %v4521, %v4520
          %v4767 = vpack.c.bf16 %v4523, %v4522
          %v4768 = vpack.c.bf16 %v4525, %v4524
          %v4769 = vpack.c.bf16 %v4527, %v4526
          %v4770 = vpack.c.bf16 %v4529, %v4528
          %v4771 = vpack.c.bf16 %v4531, %v4530
          %v4772 = vpack.c.bf16 %v4533, %v4532
          %v4773 = vpack.c.bf16 %v4535, %v4534
          %v4774 = vpack.c.bf16 %v4537, %v4536
          %v4775 = vpack.c.bf16 %v4539, %v4538
          %v4776 = vpack.c.bf16 %v4541, %v4540
          %v4777 = vpack.c.bf16 %v4543, %v4542
          %v4778 = vpack.c.bf16 %v4545, %v4544
          %v4779 = vpack.c.bf16 %v4547, %v4546
          %v4780 = vpack.c.bf16 %v4549, %v4548
          %v4781 = vpack.c.bf16 %v4551, %v4550
          %v4782 = vpack.c.bf16 %v4553, %v4552
          %v4783 = vpack.c.bf16 %v4555, %v4554
          %v4784 = vpack.c.bf16 %v4557, %v4556
          %v4785 = vpack.c.bf16 %v4559, %v4558
          %v4786 = vpack.c.bf16 %v4561, %v4560
          %v4787 = vpack.c.bf16 %v4563, %v4562
          %v4788 = vpack.c.bf16 %v4565, %v4564
          %v4789 = vpack.c.bf16 %v4567, %v4566
          %v4790 = vpack.c.bf16 %v4569, %v4568
          %v4791 = vpack.c.bf16 %v4571, %v4570
          %v4792 = vpack.c.bf16 %v4573, %v4572
          %v4793 = vpack.c.bf16 %v4575, %v4574
          %v4794 = vpack.c.bf16 %v4577, %v4576
          %v4795 = vpack.c.bf16 %v4579, %v4578
          %v4796 = vpack.c.bf16 %v4581, %v4580
          %v4797 = vpack.c.bf16 %v4583, %v4582
          %v4798 = vpack.c.bf16 %v4585, %v4584
          %v4799 = vpack.c.bf16 %v4587, %v4586
          %v4800 = vpack.c.bf16 %v4589, %v4588
          %v4801 = vpack.c.bf16 %v4591, %v4590
          %v4802 = vpack.c.bf16 %v4593, %v4592
          %v4803 = vpack.c.bf16 %v4595, %v4594
          %v4804 = vpack.c.bf16 %v4597, %v4596
          %v4805 = vpack.c.bf16 %v4599, %v4598
          %v4806 = vpack.c.bf16 %v4601, %v4600
          %v4807 = vpack.c.bf16 %v4603, %v4602
          %v4808 = vpack.c.bf16 %v4605, %v4604
          %v4809 = vpack.c.bf16 %v4607, %v4606
          %v4810 = vpack.c.bf16 %v4609, %v4608
          %v4811 = vpack.c.bf16 %v4611, %v4610
          %v4812 = vpack.c.bf16 %v4613, %v4612
          %v4813 = vpack.c.bf16 %v4615, %v4614
          %v4814 = vpack.c.bf16 %v4617, %v4616
          %v4815 = vpack.c.bf16 %v4619, %v4618
          %v4816 = vpack.c.bf16 %v4621, %v4620
          %v4817 = vpack.c.bf16 %v4623, %v4622
          %v4818 = vpack.c.bf16 %v4625, %v4624
          %v4819 = vpack.c.bf16 %v4627, %v4626
          %v4820 = vpack.c.bf16 %v4629, %v4628
          %v4821 = vpack.c.bf16 %v4631, %v4630
          %v4822 = vpack.c.bf16 %v4633, %v4632
          %v4823 = vpack.c.bf16 %v4635, %v4634
          %v4824 = vpack.c.bf16 %v4637, %v4636
          %v4825 = vpack.c.bf16 %v4639, %v4638
          %v4826 = vpack.c.bf16 %v4641, %v4640
          %v4827 = vpack.c.bf16 %v4643, %v4642
          %v4828 = vpack.c.bf16 %v4645, %v4644
          %v4829 = vpack.c.bf16 %v4647, %v4646
          %v4830 = vpack.c.bf16 %v4649, %v4648
          %v4831 = vpack.c.bf16 %v4651, %v4650
          %v4832 = vpack.c.bf16 %v4653, %v4652
          %v4833 = vpack.c.bf16 %v4655, %v4654
          %v4834 = vpack.c.bf16 %v4657, %v4656
          %v4835 = vpack.c.bf16 %v4659, %v4658
          %v4836 = vpack.c.bf16 %v4661, %v4660
          %v4837 = vpack.c.bf16 %v4663, %v4662
          %v4838 = vpack.c.bf16 %v4665, %v4664
          %v4839 = vpack.c.bf16 %v4667, %v4666
          %v4840 = vpack.c.bf16 %v4669, %v4668
          %v4841 = vpack.c.bf16 %v4671, %v4670
          %v4842 = vpack.c.bf16 %v4673, %v4672
          %v4843 = vpack.c.bf16 %v4675, %v4674
          %v4844 = vpack.c.bf16 %v4677, %v4676
          %v4845 = vpack.c.bf16 %v4679, %v4678
          %v4846 = vpack.c.bf16 %v4681, %v4680
          %v4847 = vpack.c.bf16 %v4683, %v4682
          %v4848 = vpack.c.bf16 %v4685, %v4684
          %v4849 = vpack.c.bf16 %v4687, %v4686
          %v4850 = vpack.c.bf16 %v4689, %v4688
          %v4851 = vpack.c.bf16 %v4691, %v4690
          %v4852 = vpack.c.bf16 %v4693, %v4692
          %v4853 = vpack.c.bf16 %v4695, %v4694
          %v4854 = vpack.c.bf16 %v4697, %v4696
          %v4855 = vpack.c.bf16 %v4699, %v4698
          %v4856 = vpack.c.bf16 %v4701, %v4700
          %v4857 = vpack.c.bf16 %v4703, %v4702
          %v4858 = vpack.c.bf16 %v4705, %v4704
          %v4859 = vpack.c.bf16 %v4707, %v4706
          %v4860 = vpack.c.bf16 %v4709, %v4708
          %v4861 = vpack.c.bf16 %v4711, %v4710
          %v4862 = vpack.c.bf16 %v4713, %v4712
          %v4863 = vpack.c.bf16 %v4715, %v4714
          %v4864 = vpack.c.bf16 %v4717, %v4716
          %v4865 = vpack.c.bf16 %v4719, %v4718
          %v4866 = vpack.c.bf16 %v4721, %v4720
          %v4867 = vpack.c.bf16 %v4723, %v4722
          %v4868 = vpack.c.bf16 %v4725, %v4724
          %v4869 = vpack.c.bf16 %v4727, %v4726
          %v4870 = vpack.c.bf16 %v4729, %v4728
          %v4871 = vpack.c.bf16 %v4731, %v4730
          %v4872 = vpack.c.bf16 %v4733, %v4732
          %v4873 = vpack.c.bf16 %v4735, %v4734
          %v4874 = vpack.c.bf16 %v4737, %v4736
          %v4875 = vpack.c.bf16 %v4739, %v4738
          %v4876 = vpack.c.bf16 %v4741, %v4740
          %v4877 = vpack.c.bf16 %v4743, %v4742
          %v4878 = vpack.c.bf16 %v4745, %v4744
          %v4879 = vpack.c.bf16 %v4747, %v4746
          %v4880 = vpack.c.bf16 %v4749, %v4748
          %v4881 = vpack.c.bf16 %v4751, %v4750
          %v4882 = vpack.c.bf16 %v4753, %v4752
          %v4883 = vpack.c.bf16 %v4755, %v4754
          %v5012 = vunpack.c.l.b16 %v4756
          %v5013 = vunpack.c.h.b16 %v4756
          %v5014 = vunpack.c.l.b16 %v4757
          %v5015 = vunpack.c.h.b16 %v4757
          %v5016 = vunpack.c.l.b16 %v4758
          %v5017 = vunpack.c.h.b16 %v4758
          %v5018 = vunpack.c.l.b16 %v4759
          %v5019 = vunpack.c.h.b16 %v4759
          %v5020 = vunpack.c.l.b16 %v4760
          %v5021 = vunpack.c.h.b16 %v4760
          %v5022 = vunpack.c.l.b16 %v4761
          %v5023 = vunpack.c.h.b16 %v4761
          %v5024 = vunpack.c.l.b16 %v4762
          %v5025 = vunpack.c.h.b16 %v4762
          %v5026 = vunpack.c.l.b16 %v4763
          %v5027 = vunpack.c.h.b16 %v4763
          %v5028 = vunpack.c.l.b16 %v4764
          %v5029 = vunpack.c.h.b16 %v4764
          %v5030 = vunpack.c.l.b16 %v4765
          %v5031 = vunpack.c.h.b16 %v4765
          %v5032 = vunpack.c.l.b16 %v4766
          %v5033 = vunpack.c.h.b16 %v4766
          %v5034 = vunpack.c.l.b16 %v4767
          %v5035 = vunpack.c.h.b16 %v4767
          %v5036 = vunpack.c.l.b16 %v4768
          %v5037 = vunpack.c.h.b16 %v4768
          %v5038 = vunpack.c.l.b16 %v4769
          %v5039 = vunpack.c.h.b16 %v4769
          %v5040 = vunpack.c.l.b16 %v4770
          %v5041 = vunpack.c.h.b16 %v4770
          %v5042 = vunpack.c.l.b16 %v4771
          %v5043 = vunpack.c.h.b16 %v4771
          %v5044 = vunpack.c.l.b16 %v4772
          %v5045 = vunpack.c.h.b16 %v4772
          %v5046 = vunpack.c.l.b16 %v4773
          %v5047 = vunpack.c.h.b16 %v4773
          %v5048 = vunpack.c.l.b16 %v4774
          %v5049 = vunpack.c.h.b16 %v4774
          %v5050 = vunpack.c.l.b16 %v4775
          %v5051 = vunpack.c.h.b16 %v4775
          %v5052 = vunpack.c.l.b16 %v4776
          %v5053 = vunpack.c.h.b16 %v4776
          %v5054 = vunpack.c.l.b16 %v4777
          %v5055 = vunpack.c.h.b16 %v4777
          %v5056 = vunpack.c.l.b16 %v4778
          %v5057 = vunpack.c.h.b16 %v4778
          %v5058 = vunpack.c.l.b16 %v4779
          %v5059 = vunpack.c.h.b16 %v4779
          %v5060 = vunpack.c.l.b16 %v4780
          %v5061 = vunpack.c.h.b16 %v4780
          %v5062 = vunpack.c.l.b16 %v4781
          %v5063 = vunpack.c.h.b16 %v4781
          %v5064 = vunpack.c.l.b16 %v4782
          %v5065 = vunpack.c.h.b16 %v4782
          %v5066 = vunpack.c.l.b16 %v4783
          %v5067 = vunpack.c.h.b16 %v4783
          %v5068 = vunpack.c.l.b16 %v4784
          %v5069 = vunpack.c.h.b16 %v4784
          %v5070 = vunpack.c.l.b16 %v4785
          %v5071 = vunpack.c.h.b16 %v4785
          %v5072 = vunpack.c.l.b16 %v4786
          %v5073 = vunpack.c.h.b16 %v4786
          %v5074 = vunpack.c.l.b16 %v4787
          %v5075 = vunpack.c.h.b16 %v4787
          %v5076 = vunpack.c.l.b16 %v4788
          %v5077 = vunpack.c.h.b16 %v4788
          %v5078 = vunpack.c.l.b16 %v4789
          %v5079 = vunpack.c.h.b16 %v4789
          %v5080 = vunpack.c.l.b16 %v4790
          %v5081 = vunpack.c.h.b16 %v4790
          %v5082 = vunpack.c.l.b16 %v4791
          %v5083 = vunpack.c.h.b16 %v4791
          %v5084 = vunpack.c.l.b16 %v4792
          %v5085 = vunpack.c.h.b16 %v4792
          %v5086 = vunpack.c.l.b16 %v4793
          %v5087 = vunpack.c.h.b16 %v4793
          %v5088 = vunpack.c.l.b16 %v4794
          %v5089 = vunpack.c.h.b16 %v4794
          %v5090 = vunpack.c.l.b16 %v4795
          %v5091 = vunpack.c.h.b16 %v4795
          %v5092 = vunpack.c.l.b16 %v4796
          %v5093 = vunpack.c.h.b16 %v4796
          %v5094 = vunpack.c.l.b16 %v4797
          %v5095 = vunpack.c.h.b16 %v4797
          %v5096 = vunpack.c.l.b16 %v4798
          %v5097 = vunpack.c.h.b16 %v4798
          %v5098 = vunpack.c.l.b16 %v4799
          %v5099 = vunpack.c.h.b16 %v4799
          %v5100 = vunpack.c.l.b16 %v4800
          %v5101 = vunpack.c.h.b16 %v4800
          %v5102 = vunpack.c.l.b16 %v4801
          %v5103 = vunpack.c.h.b16 %v4801
          %v5104 = vunpack.c.l.b16 %v4802
          %v5105 = vunpack.c.h.b16 %v4802
          %v5106 = vunpack.c.l.b16 %v4803
          %v5107 = vunpack.c.h.b16 %v4803
          %v5108 = vunpack.c.l.b16 %v4804
          %v5109 = vunpack.c.h.b16 %v4804
          %v5110 = vunpack.c.l.b16 %v4805
          %v5111 = vunpack.c.h.b16 %v4805
          %v5112 = vunpack.c.l.b16 %v4806
          %v5113 = vunpack.c.h.b16 %v4806
          %v5114 = vunpack.c.l.b16 %v4807
          %v5115 = vunpack.c.h.b16 %v4807
          %v5116 = vunpack.c.l.b16 %v4808
          %v5117 = vunpack.c.h.b16 %v4808
          %v5118 = vunpack.c.l.b16 %v4809
          %v5119 = vunpack.c.h.b16 %v4809
          %v5120 = vunpack.c.l.b16 %v4810
          %v5121 = vunpack.c.h.b16 %v4810
          %v5122 = vunpack.c.l.b16 %v4811
          %v5123 = vunpack.c.h.b16 %v4811
          %v5124 = vunpack.c.l.b16 %v4812
          %v5125 = vunpack.c.h.b16 %v4812
          %v5126 = vunpack.c.l.b16 %v4813
          %v5127 = vunpack.c.h.b16 %v4813
          %v5128 = vunpack.c.l.b16 %v4814
          %v5129 = vunpack.c.h.b16 %v4814
          %v5130 = vunpack.c.l.b16 %v4815
          %v5131 = vunpack.c.h.b16 %v4815
          %v5132 = vunpack.c.l.b16 %v4816
          %v5133 = vunpack.c.h.b16 %v4816
          %v5134 = vunpack.c.l.b16 %v4817
          %v5135 = vunpack.c.h.b16 %v4817
          %v5136 = vunpack.c.l.b16 %v4818
          %v5137 = vunpack.c.h.b16 %v4818
          %v5138 = vunpack.c.l.b16 %v4819
          %v5139 = vunpack.c.h.b16 %v4819
          %v5140 = vunpack.c.l.b16 %v4820
          %v5141 = vunpack.c.h.b16 %v4820
          %v5142 = vunpack.c.l.b16 %v4821
          %v5143 = vunpack.c.h.b16 %v4821
          %v5144 = vunpack.c.l.b16 %v4822
          %v5145 = vunpack.c.h.b16 %v4822
          %v5146 = vunpack.c.l.b16 %v4823
          %v5147 = vunpack.c.h.b16 %v4823
          %v5148 = vunpack.c.l.b16 %v4824
          %v5149 = vunpack.c.h.b16 %v4824
          %v5150 = vunpack.c.l.b16 %v4825
          %v5151 = vunpack.c.h.b16 %v4825
          %v5152 = vunpack.c.l.b16 %v4826
          %v5153 = vunpack.c.h.b16 %v4826
          %v5154 = vunpack.c.l.b16 %v4827
          %v5155 = vunpack.c.h.b16 %v4827
          %v5156 = vunpack.c.l.b16 %v4828
          %v5157 = vunpack.c.h.b16 %v4828
          %v5158 = vunpack.c.l.b16 %v4829
          %v5159 = vunpack.c.h.b16 %v4829
          %v5160 = vunpack.c.l.b16 %v4830
          %v5161 = vunpack.c.h.b16 %v4830
          %v5162 = vunpack.c.l.b16 %v4831
          %v5163 = vunpack.c.h.b16 %v4831
          %v5164 = vunpack.c.l.b16 %v4832
          %v5165 = vunpack.c.h.b16 %v4832
          %v5166 = vunpack.c.l.b16 %v4833
          %v5167 = vunpack.c.h.b16 %v4833
          %v5168 = vunpack.c.l.b16 %v4834
          %v5169 = vunpack.c.h.b16 %v4834
          %v5170 = vunpack.c.l.b16 %v4835
          %v5171 = vunpack.c.h.b16 %v4835
          %v5172 = vunpack.c.l.b16 %v4836
          %v5173 = vunpack.c.h.b16 %v4836
          %v5174 = vunpack.c.l.b16 %v4837
          %v5175 = vunpack.c.h.b16 %v4837
          %v5176 = vunpack.c.l.b16 %v4838
          %v5177 = vunpack.c.h.b16 %v4838
          %v5178 = vunpack.c.l.b16 %v4839
          %v5179 = vunpack.c.h.b16 %v4839
          %v5180 = vunpack.c.l.b16 %v4840
          %v5181 = vunpack.c.h.b16 %v4840
          %v5182 = vunpack.c.l.b16 %v4841
          %v5183 = vunpack.c.h.b16 %v4841
          %v5184 = vunpack.c.l.b16 %v4842
          %v5185 = vunpack.c.h.b16 %v4842
          %v5186 = vunpack.c.l.b16 %v4843
          %v5187 = vunpack.c.h.b16 %v4843
          %v5188 = vunpack.c.l.b16 %v4844
          %v5189 = vunpack.c.h.b16 %v4844
          %v5190 = vunpack.c.l.b16 %v4845
          %v5191 = vunpack.c.h.b16 %v4845
          %v5192 = vunpack.c.l.b16 %v4846
          %v5193 = vunpack.c.h.b16 %v4846
          %v5194 = vunpack.c.l.b16 %v4847
          %v5195 = vunpack.c.h.b16 %v4847
          %v5196 = vunpack.c.l.b16 %v4848
          %v5197 = vunpack.c.h.b16 %v4848
          %v5198 = vunpack.c.l.b16 %v4849
          %v5199 = vunpack.c.h.b16 %v4849
          %v5200 = vunpack.c.l.b16 %v4850
          %v5201 = vunpack.c.h.b16 %v4850
          %v5202 = vunpack.c.l.b16 %v4851
          %v5203 = vunpack.c.h.b16 %v4851
          %v5204 = vunpack.c.l.b16 %v4852
          %v5205 = vunpack.c.h.b16 %v4852
          %v5206 = vunpack.c.l.b16 %v4853
          %v5207 = vunpack.c.h.b16 %v4853
          %v5208 = vunpack.c.l.b16 %v4854
          %v5209 = vunpack.c.h.b16 %v4854
          %v5210 = vunpack.c.l.b16 %v4855
          %v5211 = vunpack.c.h.b16 %v4855
          %v5212 = vunpack.c.l.b16 %v4856
          %v5213 = vunpack.c.h.b16 %v4856
          %v5214 = vunpack.c.l.b16 %v4857
          %v5215 = vunpack.c.h.b16 %v4857
          %v5216 = vunpack.c.l.b16 %v4858
          %v5217 = vunpack.c.h.b16 %v4858
          %v5218 = vunpack.c.l.b16 %v4859
          %v5219 = vunpack.c.h.b16 %v4859
          %v5220 = vunpack.c.l.b16 %v4860
          %v5221 = vunpack.c.h.b16 %v4860
          %v5222 = vunpack.c.l.b16 %v4861
          %v5223 = vunpack.c.h.b16 %v4861
          %v5224 = vunpack.c.l.b16 %v4862
          %v5225 = vunpack.c.h.b16 %v4862
          %v5226 = vunpack.c.l.b16 %v4863
          %v5227 = vunpack.c.h.b16 %v4863
          %v5228 = vunpack.c.l.b16 %v4864
          %v5229 = vunpack.c.h.b16 %v4864
          %v5230 = vunpack.c.l.b16 %v4865
          %v5231 = vunpack.c.h.b16 %v4865
          %v5232 = vunpack.c.l.b16 %v4866
          %v5233 = vunpack.c.h.b16 %v4866
          %v5234 = vunpack.c.l.b16 %v4867
          %v5235 = vunpack.c.h.b16 %v4867
          %v5236 = vunpack.c.l.b16 %v4868
          %v5237 = vunpack.c.h.b16 %v4868
          %v5238 = vunpack.c.l.b16 %v4869
          %v5239 = vunpack.c.h.b16 %v4869
          %v5240 = vunpack.c.l.b16 %v4870
          %v5241 = vunpack.c.h.b16 %v4870
          %v5242 = vunpack.c.l.b16 %v4871
          %v5243 = vunpack.c.h.b16 %v4871
          %v5244 = vunpack.c.l.b16 %v4872
          %v5245 = vunpack.c.h.b16 %v4872
          %v5246 = vunpack.c.l.b16 %v4873
          %v5247 = vunpack.c.h.b16 %v4873
          %v5248 = vunpack.c.l.b16 %v4874
          %v5249 = vunpack.c.h.b16 %v4874
          %v5250 = vunpack.c.l.b16 %v4875
          %v5251 = vunpack.c.h.b16 %v4875
          %v5252 = vunpack.c.l.b16 %v4876
          %v5253 = vunpack.c.h.b16 %v4876
          %v5254 = vunpack.c.l.b16 %v4877
          %v5255 = vunpack.c.h.b16 %v4877
          %v5256 = vunpack.c.l.b16 %v4878
          %v5257 = vunpack.c.h.b16 %v4878
          %v5258 = vunpack.c.l.b16 %v4879
          %v5259 = vunpack.c.h.b16 %v4879
          %v5260 = vunpack.c.l.b16 %v4880
          %v5261 = vunpack.c.h.b16 %v4880
          %v5262 = vunpack.c.l.b16 %v4881
          %v5263 = vunpack.c.h.b16 %v4881
          %v5264 = vunpack.c.l.b16 %v4882
          %v5265 = vunpack.c.h.b16 %v4882
          %v5266 = vunpack.c.l.b16 %v4883
          %v5267 = vunpack.c.h.b16 %v4883
          %v5268 = vpack.c.b16 %v5012, %v5012
          %v5269 = vpack.c.b16 %v5013, %v5013
          %v5270 = vpack.c.b16 %v5014, %v5014
          %v5271 = vpack.c.b16 %v5015, %v5015
          %v5272 = vpack.c.b16 %v5016, %v5016
          %v5273 = vpack.c.b16 %v5017, %v5017
          %v5274 = vpack.c.b16 %v5018, %v5018
          %v5275 = vpack.c.b16 %v5019, %v5019
          %v5276 = vpack.c.b16 %v5020, %v5020
          %v5277 = vpack.c.b16 %v5021, %v5021
          %v5278 = vpack.c.b16 %v5022, %v5022
          %v5279 = vpack.c.b16 %v5023, %v5023
          %v5280 = vpack.c.b16 %v5024, %v5024
          %v5281 = vpack.c.b16 %v5025, %v5025
          %v5282 = vpack.c.b16 %v5026, %v5026
          %v5283 = vpack.c.b16 %v5027, %v5027
          %v5284 = vpack.c.b16 %v5028, %v5028
          %v5285 = vpack.c.b16 %v5029, %v5029
          %v5286 = vpack.c.b16 %v5030, %v5030
          %v5287 = vpack.c.b16 %v5031, %v5031
          %v5288 = vpack.c.b16 %v5032, %v5032
          %v5289 = vpack.c.b16 %v5033, %v5033
          %v5290 = vpack.c.b16 %v5034, %v5034
          %v5291 = vpack.c.b16 %v5035, %v5035
          %v5292 = vpack.c.b16 %v5036, %v5036
          %v5293 = vpack.c.b16 %v5037, %v5037
          %v5294 = vpack.c.b16 %v5038, %v5038
          %v5295 = vpack.c.b16 %v5039, %v5039
          %v5296 = vpack.c.b16 %v5040, %v5040
          %v5297 = vpack.c.b16 %v5041, %v5041
          %v5298 = vpack.c.b16 %v5042, %v5042
          %v5299 = vpack.c.b16 %v5043, %v5043
          %v5300 = vpack.c.b16 %v5044, %v5044
          %v5301 = vpack.c.b16 %v5045, %v5045
          %v5302 = vpack.c.b16 %v5046, %v5046
          %v5303 = vpack.c.b16 %v5047, %v5047
          %v5304 = vpack.c.b16 %v5048, %v5048
          %v5305 = vpack.c.b16 %v5049, %v5049
          %v5306 = vpack.c.b16 %v5050, %v5050
          %v5307 = vpack.c.b16 %v5051, %v5051
          %v5308 = vpack.c.b16 %v5052, %v5052
          %v5309 = vpack.c.b16 %v5053, %v5053
          %v5310 = vpack.c.b16 %v5054, %v5054
          %v5311 = vpack.c.b16 %v5055, %v5055
          %v5312 = vpack.c.b16 %v5056, %v5056
          %v5313 = vpack.c.b16 %v5057, %v5057
          %v5314 = vpack.c.b16 %v5058, %v5058
          %v5315 = vpack.c.b16 %v5059, %v5059
          %v5316 = vpack.c.b16 %v5060, %v5060
          %v5317 = vpack.c.b16 %v5061, %v5061
          %v5318 = vpack.c.b16 %v5062, %v5062
          %v5319 = vpack.c.b16 %v5063, %v5063
          %v5320 = vpack.c.b16 %v5064, %v5064
          %v5321 = vpack.c.b16 %v5065, %v5065
          %v5322 = vpack.c.b16 %v5066, %v5066
          %v5323 = vpack.c.b16 %v5067, %v5067
          %v5324 = vpack.c.b16 %v5068, %v5068
          %v5325 = vpack.c.b16 %v5069, %v5069
          %v5326 = vpack.c.b16 %v5070, %v5070
          %v5327 = vpack.c.b16 %v5071, %v5071
          %v5328 = vpack.c.b16 %v5072, %v5072
          %v5329 = vpack.c.b16 %v5073, %v5073
          %v5330 = vpack.c.b16 %v5074, %v5074
          %v5331 = vpack.c.b16 %v5075, %v5075
          %v5332 = vpack.c.b16 %v5076, %v5076
          %v5333 = vpack.c.b16 %v5077, %v5077
          %v5334 = vpack.c.b16 %v5078, %v5078
          %v5335 = vpack.c.b16 %v5079, %v5079
          %v5336 = vpack.c.b16 %v5080, %v5080
          %v5337 = vpack.c.b16 %v5081, %v5081
          %v5338 = vpack.c.b16 %v5082, %v5082
          %v5339 = vpack.c.b16 %v5083, %v5083
          %v5340 = vpack.c.b16 %v5084, %v5084
          %v5341 = vpack.c.b16 %v5085, %v5085
          %v5342 = vpack.c.b16 %v5086, %v5086
          %v5343 = vpack.c.b16 %v5087, %v5087
          %v5344 = vpack.c.b16 %v5088, %v5088
          %v5345 = vpack.c.b16 %v5089, %v5089
          %v5346 = vpack.c.b16 %v5090, %v5090
          %v5347 = vpack.c.b16 %v5091, %v5091
          %v5348 = vpack.c.b16 %v5092, %v5092
          %v5349 = vpack.c.b16 %v5093, %v5093
          %v5350 = vpack.c.b16 %v5094, %v5094
          %v5351 = vpack.c.b16 %v5095, %v5095
          %v5352 = vpack.c.b16 %v5096, %v5096
          %v5353 = vpack.c.b16 %v5097, %v5097
          %v5354 = vpack.c.b16 %v5098, %v5098
          %v5355 = vpack.c.b16 %v5099, %v5099
          %v5356 = vpack.c.b16 %v5100, %v5100
          %v5357 = vpack.c.b16 %v5101, %v5101
          %v5358 = vpack.c.b16 %v5102, %v5102
          %v5359 = vpack.c.b16 %v5103, %v5103
          %v5360 = vpack.c.b16 %v5104, %v5104
          %v5361 = vpack.c.b16 %v5105, %v5105
          %v5362 = vpack.c.b16 %v5106, %v5106
          %v5363 = vpack.c.b16 %v5107, %v5107
          %v5364 = vpack.c.b16 %v5108, %v5108
          %v5365 = vpack.c.b16 %v5109, %v5109
          %v5366 = vpack.c.b16 %v5110, %v5110
          %v5367 = vpack.c.b16 %v5111, %v5111
          %v5368 = vpack.c.b16 %v5112, %v5112
          %v5369 = vpack.c.b16 %v5113, %v5113
          %v5370 = vpack.c.b16 %v5114, %v5114
          %v5371 = vpack.c.b16 %v5115, %v5115
          %v5372 = vpack.c.b16 %v5116, %v5116
          %v5373 = vpack.c.b16 %v5117, %v5117
          %v5374 = vpack.c.b16 %v5118, %v5118
          %v5375 = vpack.c.b16 %v5119, %v5119
          %v5376 = vpack.c.b16 %v5120, %v5120
          %v5377 = vpack.c.b16 %v5121, %v5121
          %v5378 = vpack.c.b16 %v5122, %v5122
          %v5379 = vpack.c.b16 %v5123, %v5123
          %v5380 = vpack.c.b16 %v5124, %v5124
          %v5381 = vpack.c.b16 %v5125, %v5125
          %v5382 = vpack.c.b16 %v5126, %v5126
          %v5383 = vpack.c.b16 %v5127, %v5127
          %v5384 = vpack.c.b16 %v5128, %v5128
          %v5385 = vpack.c.b16 %v5129, %v5129
          %v5386 = vpack.c.b16 %v5130, %v5130
          %v5387 = vpack.c.b16 %v5131, %v5131
          %v5388 = vpack.c.b16 %v5132, %v5132
          %v5389 = vpack.c.b16 %v5133, %v5133
          %v5390 = vpack.c.b16 %v5134, %v5134
          %v5391 = vpack.c.b16 %v5135, %v5135
          %v5392 = vpack.c.b16 %v5136, %v5136
          %v5393 = vpack.c.b16 %v5137, %v5137
          %v5394 = vpack.c.b16 %v5138, %v5138
          %v5395 = vpack.c.b16 %v5139, %v5139
          %v5396 = vpack.c.b16 %v5140, %v5140
          %v5397 = vpack.c.b16 %v5141, %v5141
          %v5398 = vpack.c.b16 %v5142, %v5142
          %v5399 = vpack.c.b16 %v5143, %v5143
          %v5400 = vpack.c.b16 %v5144, %v5144
          %v5401 = vpack.c.b16 %v5145, %v5145
          %v5402 = vpack.c.b16 %v5146, %v5146
          %v5403 = vpack.c.b16 %v5147, %v5147
          %v5404 = vpack.c.b16 %v5148, %v5148
          %v5405 = vpack.c.b16 %v5149, %v5149
          %v5406 = vpack.c.b16 %v5150, %v5150
          %v5407 = vpack.c.b16 %v5151, %v5151
          %v5408 = vpack.c.b16 %v5152, %v5152
          %v5409 = vpack.c.b16 %v5153, %v5153
          %v5410 = vpack.c.b16 %v5154, %v5154
          %v5411 = vpack.c.b16 %v5155, %v5155
          %v5412 = vpack.c.b16 %v5156, %v5156
          %v5413 = vpack.c.b16 %v5157, %v5157
          %v5414 = vpack.c.b16 %v5158, %v5158
          %v5415 = vpack.c.b16 %v5159, %v5159
          %v5416 = vpack.c.b16 %v5160, %v5160
          %v5417 = vpack.c.b16 %v5161, %v5161
          %v5418 = vpack.c.b16 %v5162, %v5162
          %v5419 = vpack.c.b16 %v5163, %v5163
          %v5420 = vpack.c.b16 %v5164, %v5164
          %v5421 = vpack.c.b16 %v5165, %v5165
          %v5422 = vpack.c.b16 %v5166, %v5166
          %v5423 = vpack.c.b16 %v5167, %v5167
          %v5424 = vpack.c.b16 %v5168, %v5168
          %v5425 = vpack.c.b16 %v5169, %v5169
          %v5426 = vpack.c.b16 %v5170, %v5170
          %v5427 = vpack.c.b16 %v5171, %v5171
          %v5428 = vpack.c.b16 %v5172, %v5172
          %v5429 = vpack.c.b16 %v5173, %v5173
          %v5430 = vpack.c.b16 %v5174, %v5174
          %v5431 = vpack.c.b16 %v5175, %v5175
          %v5432 = vpack.c.b16 %v5176, %v5176
          %v5433 = vpack.c.b16 %v5177, %v5177
          %v5434 = vpack.c.b16 %v5178, %v5178
          %v5435 = vpack.c.b16 %v5179, %v5179
          %v5436 = vpack.c.b16 %v5180, %v5180
          %v5437 = vpack.c.b16 %v5181, %v5181
          %v5438 = vpack.c.b16 %v5182, %v5182
          %v5439 = vpack.c.b16 %v5183, %v5183
          %v5440 = vpack.c.b16 %v5184, %v5184
          %v5441 = vpack.c.b16 %v5185, %v5185
          %v5442 = vpack.c.b16 %v5186, %v5186
          %v5443 = vpack.c.b16 %v5187, %v5187
          %v5444 = vpack.c.b16 %v5188, %v5188
          %v5445 = vpack.c.b16 %v5189, %v5189
          %v5446 = vpack.c.b16 %v5190, %v5190
          %v5447 = vpack.c.b16 %v5191, %v5191
          %v5448 = vpack.c.b16 %v5192, %v5192
          %v5449 = vpack.c.b16 %v5193, %v5193
          %v5450 = vpack.c.b16 %v5194, %v5194
          %v5451 = vpack.c.b16 %v5195, %v5195
          %v5452 = vpack.c.b16 %v5196, %v5196
          %v5453 = vpack.c.b16 %v5197, %v5197
          %v5454 = vpack.c.b16 %v5198, %v5198
          %v5455 = vpack.c.b16 %v5199, %v5199
          %v5456 = vpack.c.b16 %v5200, %v5200
          %v5457 = vpack.c.b16 %v5201, %v5201
          %v5458 = vpack.c.b16 %v5202, %v5202
          %v5459 = vpack.c.b16 %v5203, %v5203
          %v5460 = vpack.c.b16 %v5204, %v5204
          %v5461 = vpack.c.b16 %v5205, %v5205
          %v5462 = vpack.c.b16 %v5206, %v5206
          %v5463 = vpack.c.b16 %v5207, %v5207
          %v5464 = vpack.c.b16 %v5208, %v5208
          %v5465 = vpack.c.b16 %v5209, %v5209
          %v5466 = vpack.c.b16 %v5210, %v5210
          %v5467 = vpack.c.b16 %v5211, %v5211
          %v5468 = vpack.c.b16 %v5212, %v5212
          %v5469 = vpack.c.b16 %v5213, %v5213
          %v5470 = vpack.c.b16 %v5214, %v5214
          %v5471 = vpack.c.b16 %v5215, %v5215
          %v5472 = vpack.c.b16 %v5216, %v5216
          %v5473 = vpack.c.b16 %v5217, %v5217
          %v5474 = vpack.c.b16 %v5218, %v5218
          %v5475 = vpack.c.b16 %v5219, %v5219
          %v5476 = vpack.c.b16 %v5220, %v5220
          %v5477 = vpack.c.b16 %v5221, %v5221
          %v5478 = vpack.c.b16 %v5222, %v5222
          %v5479 = vpack.c.b16 %v5223, %v5223
          %v5480 = vpack.c.b16 %v5224, %v5224
          %v5481 = vpack.c.b16 %v5225, %v5225
          %v5482 = vpack.c.b16 %v5226, %v5226
          %v5483 = vpack.c.b16 %v5227, %v5227
          %v5484 = vpack.c.b16 %v5228, %v5228
          %v5485 = vpack.c.b16 %v5229, %v5229
          %v5486 = vpack.c.b16 %v5230, %v5230
          %v5487 = vpack.c.b16 %v5231, %v5231
          %v5488 = vpack.c.b16 %v5232, %v5232
          %v5489 = vpack.c.b16 %v5233, %v5233
          %v5490 = vpack.c.b16 %v5234, %v5234
          %v5491 = vpack.c.b16 %v5235, %v5235
          %v5492 = vpack.c.b16 %v5236, %v5236
          %v5493 = vpack.c.b16 %v5237, %v5237
          %v5494 = vpack.c.b16 %v5238, %v5238
          %v5495 = vpack.c.b16 %v5239, %v5239
          %v5496 = vpack.c.b16 %v5240, %v5240
          %v5497 = vpack.c.b16 %v5241, %v5241
          %v5498 = vpack.c.b16 %v5242, %v5242
          %v5499 = vpack.c.b16 %v5243, %v5243
          %v5500 = vpack.c.b16 %v5244, %v5244
          %v5501 = vpack.c.b16 %v5245, %v5245
          %v5502 = vpack.c.b16 %v5246, %v5246
          %v5503 = vpack.c.b16 %v5247, %v5247
          %v5504 = vpack.c.b16 %v5248, %v5248
          %v5505 = vpack.c.b16 %v5249, %v5249
          %v5506 = vpack.c.b16 %v5250, %v5250
          %v5507 = vpack.c.b16 %v5251, %v5251
          %v5508 = vpack.c.b16 %v5252, %v5252
          %v5509 = vpack.c.b16 %v5253, %v5253
          %v5510 = vpack.c.b16 %v5254, %v5254
          %v5511 = vpack.c.b16 %v5255, %v5255
          %v5512 = vpack.c.b16 %v5256, %v5256
          %v5513 = vpack.c.b16 %v5257, %v5257
          %v5514 = vpack.c.b16 %v5258, %v5258
          %v5515 = vpack.c.b16 %v5259, %v5259
          %v5516 = vpack.c.b16 %v5260, %v5260
          %v5517 = vpack.c.b16 %v5261, %v5261
          %v5518 = vpack.c.b16 %v5262, %v5262
          %v5519 = vpack.c.b16 %v5263, %v5263
          %v5520 = vpack.c.b16 %v5264, %v5264
          %v5521 = vpack.c.b16 %v5265, %v5265
          %v5522 = vpack.c.b16 %v5266, %v5266
          %v5523 = vpack.c.b16 %v5267, %v5267
          %5780 = vst [vmem:[%s257] sm:$0xf] %v5268
          %5781 = vst [vmem:[%s257 + $0x4] sm:$0xf] %v5269
          %5782 = vst [vmem:[%s257 + $0x8] sm:$0xf] %v5270
          %5783 = vst [vmem:[%s257 + $0xc] sm:$0xf] %v5271
          %5784 = vst [vmem:[%s257 + $0x10] sm:$0xf] %v5272
          %5785 = vst [vmem:[%s257 + $0x14] sm:$0xf] %v5273
          %5786 = vst [vmem:[%s257 + $0x18] sm:$0xf] %v5274
          %5787 = vst [vmem:[%s257 + $0x1c] sm:$0xf] %v5275
          %5788 = vst [vmem:[%s257 + $0x20] sm:$0xf] %v5276
          %5789 = vst [vmem:[%s257 + $0x24] sm:$0xf] %v5277
          %5790 = vst [vmem:[%s257 + $0x28] sm:$0xf] %v5278
          %5791 = vst [vmem:[%s257 + $0x2c] sm:$0xf] %v5279
          %5792 = vst [vmem:[%s257 + $0x30] sm:$0xf] %v5280
          %5793 = vst [vmem:[%s257 + $0x34] sm:$0xf] %v5281
          %5794 = vst [vmem:[%s257 + $0x38] sm:$0xf] %v5282
          %5795 = vst [vmem:[%s257 + $0x3c] sm:$0xf] %v5283
          %5796 = vst [vmem:[%s257 + $0x40] sm:$0xf] %v5284
          %5797 = vst [vmem:[%s257 + $0x44] sm:$0xf] %v5285
          %5798 = vst [vmem:[%s257 + $0x48] sm:$0xf] %v5286
          %5799 = vst [vmem:[%s257 + $0x4c] sm:$0xf] %v5287
          %5800 = vst [vmem:[%s257 + $0x50] sm:$0xf] %v5288
          %5801 = vst [vmem:[%s257 + $0x54] sm:$0xf] %v5289
          %5802 = vst [vmem:[%s257 + $0x58] sm:$0xf] %v5290
          %5803 = vst [vmem:[%s257 + $0x5c] sm:$0xf] %v5291
          %5804 = vst [vmem:[%s257 + $0x60] sm:$0xf] %v5292
          %5805 = vst [vmem:[%s257 + $0x64] sm:$0xf] %v5293
          %5806 = vst [vmem:[%s257 + $0x68] sm:$0xf] %v5294
          %5807 = vst [vmem:[%s257 + $0x6c] sm:$0xf] %v5295
          %5808 = vst [vmem:[%s257 + $0x70] sm:$0xf] %v5296
          %5809 = vst [vmem:[%s257 + $0x74] sm:$0xf] %v5297
          %5810 = vst [vmem:[%s257 + $0x78] sm:$0xf] %v5298
          %5811 = vst [vmem:[%s257 + $0x7c] sm:$0xf] %v5299
          %5812 = vst [vmem:[%s257 + $0x80] sm:$0xf] %v5300
          %5813 = vst [vmem:[%s257 + $0x84] sm:$0xf] %v5301
          %5814 = vst [vmem:[%s257 + $0x88] sm:$0xf] %v5302
          %5815 = vst [vmem:[%s257 + $0x8c] sm:$0xf] %v5303
          %5816 = vst [vmem:[%s257 + $0x90] sm:$0xf] %v5304
          %5817 = vst [vmem:[%s257 + $0x94] sm:$0xf] %v5305
          %5818 = vst [vmem:[%s257 + $0x98] sm:$0xf] %v5306
          %5819 = vst [vmem:[%s257 + $0x9c] sm:$0xf] %v5307
          %5820 = vst [vmem:[%s257 + $0xa0] sm:$0xf] %v5308
          %5821 = vst [vmem:[%s257 + $0xa4] sm:$0xf] %v5309
          %5822 = vst [vmem:[%s257 + $0xa8] sm:$0xf] %v5310
          %5823 = vst [vmem:[%s257 + $0xac] sm:$0xf] %v5311
          %5824 = vst [vmem:[%s257 + $0xb0] sm:$0xf] %v5312
          %5825 = vst [vmem:[%s257 + $0xb4] sm:$0xf] %v5313
          %5826 = vst [vmem:[%s257 + $0xb8] sm:$0xf] %v5314
          %5827 = vst [vmem:[%s257 + $0xbc] sm:$0xf] %v5315
          %5828 = vst [vmem:[%s257 + $0xc0] sm:$0xf] %v5316
          %5829 = vst [vmem:[%s257 + $0xc4] sm:$0xf] %v5317
          %5830 = vst [vmem:[%s257 + $0xc8] sm:$0xf] %v5318
          %5831 = vst [vmem:[%s257 + $0xcc] sm:$0xf] %v5319
          %5832 = vst [vmem:[%s257 + $0xd0] sm:$0xf] %v5320
          %5833 = vst [vmem:[%s257 + $0xd4] sm:$0xf] %v5321
          %5834 = vst [vmem:[%s257 + $0xd8] sm:$0xf] %v5322
          %5835 = vst [vmem:[%s257 + $0xdc] sm:$0xf] %v5323
          %5836 = vst [vmem:[%s257 + $0xe0] sm:$0xf] %v5324
          %5837 = vst [vmem:[%s257 + $0xe4] sm:$0xf] %v5325
          %5838 = vst [vmem:[%s257 + $0xe8] sm:$0xf] %v5326
          %5839 = vst [vmem:[%s257 + $0xec] sm:$0xf] %v5327
          %5840 = vst [vmem:[%s257 + $0xf0] sm:$0xf] %v5328
          %5841 = vst [vmem:[%s257 + $0xf4] sm:$0xf] %v5329
          %5842 = vst [vmem:[%s257 + $0xf8] sm:$0xf] %v5330
          %5843 = vst [vmem:[%s257 + $0xfc] sm:$0xf] %v5331
          %5844 = vst [vmem:[%s257 + $0x100] sm:$0xf] %v5332
          %5845 = vst [vmem:[%s257 + $0x104] sm:$0xf] %v5333
          %5846 = vst [vmem:[%s257 + $0x108] sm:$0xf] %v5334
          %5847 = vst [vmem:[%s257 + $0x10c] sm:$0xf] %v5335
          %5848 = vst [vmem:[%s257 + $0x110] sm:$0xf] %v5336
          %5849 = vst [vmem:[%s257 + $0x114] sm:$0xf] %v5337
          %5850 = vst [vmem:[%s257 + $0x118] sm:$0xf] %v5338
          %5851 = vst [vmem:[%s257 + $0x11c] sm:$0xf] %v5339
          %5852 = vst [vmem:[%s257 + $0x120] sm:$0xf] %v5340
          %5853 = vst [vmem:[%s257 + $0x124] sm:$0xf] %v5341
          %5854 = vst [vmem:[%s257 + $0x128] sm:$0xf] %v5342
          %5855 = vst [vmem:[%s257 + $0x12c] sm:$0xf] %v5343
          %5856 = vst [vmem:[%s257 + $0x130] sm:$0xf] %v5344
          %5857 = vst [vmem:[%s257 + $0x134] sm:$0xf] %v5345
          %5858 = vst [vmem:[%s257 + $0x138] sm:$0xf] %v5346
          %5859 = vst [vmem:[%s257 + $0x13c] sm:$0xf] %v5347
          %5860 = vst [vmem:[%s257 + $0x140] sm:$0xf] %v5348
          %5861 = vst [vmem:[%s257 + $0x144] sm:$0xf] %v5349
          %5862 = vst [vmem:[%s257 + $0x148] sm:$0xf] %v5350
          %5863 = vst [vmem:[%s257 + $0x14c] sm:$0xf] %v5351
          %5864 = vst [vmem:[%s257 + $0x150] sm:$0xf] %v5352
          %5865 = vst [vmem:[%s257 + $0x154] sm:$0xf] %v5353
          %5866 = vst [vmem:[%s257 + $0x158] sm:$0xf] %v5354
          %5867 = vst [vmem:[%s257 + $0x15c] sm:$0xf] %v5355
          %5868 = vst [vmem:[%s257 + $0x160] sm:$0xf] %v5356
          %5869 = vst [vmem:[%s257 + $0x164] sm:$0xf] %v5357
          %5870 = vst [vmem:[%s257 + $0x168] sm:$0xf] %v5358
          %5871 = vst [vmem:[%s257 + $0x16c] sm:$0xf] %v5359
          %5872 = vst [vmem:[%s257 + $0x170] sm:$0xf] %v5360
          %5873 = vst [vmem:[%s257 + $0x174] sm:$0xf] %v5361
          %5874 = vst [vmem:[%s257 + $0x178] sm:$0xf] %v5362
          %5875 = vst [vmem:[%s257 + $0x17c] sm:$0xf] %v5363
          %5876 = vst [vmem:[%s257 + $0x180] sm:$0xf] %v5364
          %5877 = vst [vmem:[%s257 + $0x184] sm:$0xf] %v5365
          %5878 = vst [vmem:[%s257 + $0x188] sm:$0xf] %v5366
          %5879 = vst [vmem:[%s257 + $0x18c] sm:$0xf] %v5367
          %5880 = vst [vmem:[%s257 + $0x190] sm:$0xf] %v5368
          %5881 = vst [vmem:[%s257 + $0x194] sm:$0xf] %v5369
          %5882 = vst [vmem:[%s257 + $0x198] sm:$0xf] %v5370
          %5883 = vst [vmem:[%s257 + $0x19c] sm:$0xf] %v5371
          %5884 = vst [vmem:[%s257 + $0x1a0] sm:$0xf] %v5372
          %5885 = vst [vmem:[%s257 + $0x1a4] sm:$0xf] %v5373
          %5886 = vst [vmem:[%s257 + $0x1a8] sm:$0xf] %v5374
          %5887 = vst [vmem:[%s257 + $0x1ac] sm:$0xf] %v5375
          %5888 = vst [vmem:[%s257 + $0x1b0] sm:$0xf] %v5376
          %5889 = vst [vmem:[%s257 + $0x1b4] sm:$0xf] %v5377
          %5890 = vst [vmem:[%s257 + $0x1b8] sm:$0xf] %v5378
          %5891 = vst [vmem:[%s257 + $0x1bc] sm:$0xf] %v5379
          %5892 = vst [vmem:[%s257 + $0x1c0] sm:$0xf] %v5380
          %5893 = vst [vmem:[%s257 + $0x1c4] sm:$0xf] %v5381
          %5894 = vst [vmem:[%s257 + $0x1c8] sm:$0xf] %v5382
          %5895 = vst [vmem:[%s257 + $0x1cc] sm:$0xf] %v5383
          %5896 = vst [vmem:[%s257 + $0x1d0] sm:$0xf] %v5384
          %5897 = vst [vmem:[%s257 + $0x1d4] sm:$0xf] %v5385
          %5898 = vst [vmem:[%s257 + $0x1d8] sm:$0xf] %v5386
          %5899 = vst [vmem:[%s257 + $0x1dc] sm:$0xf] %v5387
          %5900 = vst [vmem:[%s257 + $0x1e0] sm:$0xf] %v5388
          %5901 = vst [vmem:[%s257 + $0x1e4] sm:$0xf] %v5389
          %5902 = vst [vmem:[%s257 + $0x1e8] sm:$0xf] %v5390
          %5903 = vst [vmem:[%s257 + $0x1ec] sm:$0xf] %v5391
          %5904 = vst [vmem:[%s257 + $0x1f0] sm:$0xf] %v5392
          %5905 = vst [vmem:[%s257 + $0x1f4] sm:$0xf] %v5393
          %5906 = vst [vmem:[%s257 + $0x1f8] sm:$0xf] %v5394
          %5907 = vst [vmem:[%s257 + $0x1fc] sm:$0xf] %v5395
          %5908 = vst [vmem:[%s257 + $0x200] sm:$0xf] %v5396
          %5909 = vst [vmem:[%s257 + $0x204] sm:$0xf] %v5397
          %5910 = vst [vmem:[%s257 + $0x208] sm:$0xf] %v5398
          %5911 = vst [vmem:[%s257 + $0x20c] sm:$0xf] %v5399
          %5912 = vst [vmem:[%s257 + $0x210] sm:$0xf] %v5400
          %5913 = vst [vmem:[%s257 + $0x214] sm:$0xf] %v5401
          %5914 = vst [vmem:[%s257 + $0x218] sm:$0xf] %v5402
          %5915 = vst [vmem:[%s257 + $0x21c] sm:$0xf] %v5403
          %5916 = vst [vmem:[%s257 + $0x220] sm:$0xf] %v5404
          %5917 = vst [vmem:[%s257 + $0x224] sm:$0xf] %v5405
          %5918 = vst [vmem:[%s257 + $0x228] sm:$0xf] %v5406
          %5919 = vst [vmem:[%s257 + $0x22c] sm:$0xf] %v5407
          %5920 = vst [vmem:[%s257 + $0x230] sm:$0xf] %v5408
          %5921 = vst [vmem:[%s257 + $0x234] sm:$0xf] %v5409
          %5922 = vst [vmem:[%s257 + $0x238] sm:$0xf] %v5410
          %5923 = vst [vmem:[%s257 + $0x23c] sm:$0xf] %v5411
          %5924 = vst [vmem:[%s257 + $0x240] sm:$0xf] %v5412
          %5925 = vst [vmem:[%s257 + $0x244] sm:$0xf] %v5413
          %5926 = vst [vmem:[%s257 + $0x248] sm:$0xf] %v5414
          %5927 = vst [vmem:[%s257 + $0x24c] sm:$0xf] %v5415
          %5928 = vst [vmem:[%s257 + $0x250] sm:$0xf] %v5416
          %5929 = vst [vmem:[%s257 + $0x254] sm:$0xf] %v5417
          %5930 = vst [vmem:[%s257 + $0x258] sm:$0xf] %v5418
          %5931 = vst [vmem:[%s257 + $0x25c] sm:$0xf] %v5419
          %5932 = vst [vmem:[%s257 + $0x260] sm:$0xf] %v5420
          %5933 = vst [vmem:[%s257 + $0x264] sm:$0xf] %v5421
          %5934 = vst [vmem:[%s257 + $0x268] sm:$0xf] %v5422
          %5935 = vst [vmem:[%s257 + $0x26c] sm:$0xf] %v5423
          %5936 = vst [vmem:[%s257 + $0x270] sm:$0xf] %v5424
          %5937 = vst [vmem:[%s257 + $0x274] sm:$0xf] %v5425
          %5938 = vst [vmem:[%s257 + $0x278] sm:$0xf] %v5426
          %5939 = vst [vmem:[%s257 + $0x27c] sm:$0xf] %v5427
          %5940 = vst [vmem:[%s257 + $0x280] sm:$0xf] %v5428
          %5941 = vst [vmem:[%s257 + $0x284] sm:$0xf] %v5429
          %5942 = vst [vmem:[%s257 + $0x288] sm:$0xf] %v5430
          %5943 = vst [vmem:[%s257 + $0x28c] sm:$0xf] %v5431
          %5944 = vst [vmem:[%s257 + $0x290] sm:$0xf] %v5432
          %5945 = vst [vmem:[%s257 + $0x294] sm:$0xf] %v5433
          %5946 = vst [vmem:[%s257 + $0x298] sm:$0xf] %v5434
          %5947 = vst [vmem:[%s257 + $0x29c] sm:$0xf] %v5435
          %5948 = vst [vmem:[%s257 + $0x2a0] sm:$0xf] %v5436
          %5949 = vst [vmem:[%s257 + $0x2a4] sm:$0xf] %v5437
          %5950 = vst [vmem:[%s257 + $0x2a8] sm:$0xf] %v5438
          %5951 = vst [vmem:[%s257 + $0x2ac] sm:$0xf] %v5439
          %5952 = vst [vmem:[%s257 + $0x2b0] sm:$0xf] %v5440
          %5953 = vst [vmem:[%s257 + $0x2b4] sm:$0xf] %v5441
          %5954 = vst [vmem:[%s257 + $0x2b8] sm:$0xf] %v5442
          %5955 = vst [vmem:[%s257 + $0x2bc] sm:$0xf] %v5443
          %5956 = vst [vmem:[%s257 + $0x2c0] sm:$0xf] %v5444
          %5957 = vst [vmem:[%s257 + $0x2c4] sm:$0xf] %v5445
          %5958 = vst [vmem:[%s257 + $0x2c8] sm:$0xf] %v5446
          %5959 = vst [vmem:[%s257 + $0x2cc] sm:$0xf] %v5447
          %5960 = vst [vmem:[%s257 + $0x2d0] sm:$0xf] %v5448
          %5961 = vst [vmem:[%s257 + $0x2d4] sm:$0xf] %v5449
          %5962 = vst [vmem:[%s257 + $0x2d8] sm:$0xf] %v5450
          %5963 = vst [vmem:[%s257 + $0x2dc] sm:$0xf] %v5451
          %5964 = vst [vmem:[%s257 + $0x2e0] sm:$0xf] %v5452
          %5965 = vst [vmem:[%s257 + $0x2e4] sm:$0xf] %v5453
          %5966 = vst [vmem:[%s257 + $0x2e8] sm:$0xf] %v5454
          %5967 = vst [vmem:[%s257 + $0x2ec] sm:$0xf] %v5455
          %5968 = vst [vmem:[%s257 + $0x2f0] sm:$0xf] %v5456
          %5969 = vst [vmem:[%s257 + $0x2f4] sm:$0xf] %v5457
          %5970 = vst [vmem:[%s257 + $0x2f8] sm:$0xf] %v5458
          %5971 = vst [vmem:[%s257 + $0x2fc] sm:$0xf] %v5459
          %5972 = vst [vmem:[%s257 + $0x300] sm:$0xf] %v5460
          %5973 = vst [vmem:[%s257 + $0x304] sm:$0xf] %v5461
          %5974 = vst [vmem:[%s257 + $0x308] sm:$0xf] %v5462
          %5975 = vst [vmem:[%s257 + $0x30c] sm:$0xf] %v5463
          %5976 = vst [vmem:[%s257 + $0x310] sm:$0xf] %v5464
          %5977 = vst [vmem:[%s257 + $0x314] sm:$0xf] %v5465
          %5978 = vst [vmem:[%s257 + $0x318] sm:$0xf] %v5466
          %5979 = vst [vmem:[%s257 + $0x31c] sm:$0xf] %v5467
          %5980 = vst [vmem:[%s257 + $0x320] sm:$0xf] %v5468
          %5981 = vst [vmem:[%s257 + $0x324] sm:$0xf] %v5469
          %5982 = vst [vmem:[%s257 + $0x328] sm:$0xf] %v5470
          %5983 = vst [vmem:[%s257 + $0x32c] sm:$0xf] %v5471
          %5984 = vst [vmem:[%s257 + $0x330] sm:$0xf] %v5472
          %5985 = vst [vmem:[%s257 + $0x334] sm:$0xf] %v5473
          %5986 = vst [vmem:[%s257 + $0x338] sm:$0xf] %v5474
          %5987 = vst [vmem:[%s257 + $0x33c] sm:$0xf] %v5475
          %5988 = vst [vmem:[%s257 + $0x340] sm:$0xf] %v5476
          %5989 = vst [vmem:[%s257 + $0x344] sm:$0xf] %v5477
          %5990 = vst [vmem:[%s257 + $0x348] sm:$0xf] %v5478
          %5991 = vst [vmem:[%s257 + $0x34c] sm:$0xf] %v5479
          %5992 = vst [vmem:[%s257 + $0x350] sm:$0xf] %v5480
          %5993 = vst [vmem:[%s257 + $0x354] sm:$0xf] %v5481
          %5994 = vst [vmem:[%s257 + $0x358] sm:$0xf] %v5482
          %5995 = vst [vmem:[%s257 + $0x35c] sm:$0xf] %v5483
          %5996 = vst [vmem:[%s257 + $0x360] sm:$0xf] %v5484
          %5997 = vst [vmem:[%s257 + $0x364] sm:$0xf] %v5485
          %5998 = vst [vmem:[%s257 + $0x368] sm:$0xf] %v5486
          %5999 = vst [vmem:[%s257 + $0x36c] sm:$0xf] %v5487
          %6000 = vst [vmem:[%s257 + $0x370] sm:$0xf] %v5488
          %6001 = vst [vmem:[%s257 + $0x374] sm:$0xf] %v5489
          %6002 = vst [vmem:[%s257 + $0x378] sm:$0xf] %v5490
          %6003 = vst [vmem:[%s257 + $0x37c] sm:$0xf] %v5491
          %6004 = vst [vmem:[%s257 + $0x380] sm:$0xf] %v5492
          %6005 = vst [vmem:[%s257 + $0x384] sm:$0xf] %v5493
          %6006 = vst [vmem:[%s257 + $0x388] sm:$0xf] %v5494
          %6007 = vst [vmem:[%s257 + $0x38c] sm:$0xf] %v5495
          %6008 = vst [vmem:[%s257 + $0x390] sm:$0xf] %v5496
          %6009 = vst [vmem:[%s257 + $0x394] sm:$0xf] %v5497
          %6010 = vst [vmem:[%s257 + $0x398] sm:$0xf] %v5498
          %6011 = vst [vmem:[%s257 + $0x39c] sm:$0xf] %v5499
          %6012 = vst [vmem:[%s257 + $0x3a0] sm:$0xf] %v5500
          %6013 = vst [vmem:[%s257 + $0x3a4] sm:$0xf] %v5501
          %6014 = vst [vmem:[%s257 + $0x3a8] sm:$0xf] %v5502
          %6015 = vst [vmem:[%s257 + $0x3ac] sm:$0xf] %v5503
          %6016 = vst [vmem:[%s257 + $0x3b0] sm:$0xf] %v5504
          %6017 = vst [vmem:[%s257 + $0x3b4] sm:$0xf] %v5505
          %6018 = vst [vmem:[%s257 + $0x3b8] sm:$0xf] %v5506
          %6019 = vst [vmem:[%s257 + $0x3bc] sm:$0xf] %v5507
          %6020 = vst [vmem:[%s257 + $0x3c0] sm:$0xf] %v5508
          %6021 = vst [vmem:[%s257 + $0x3c4] sm:$0xf] %v5509
          %6022 = vst [vmem:[%s257 + $0x3c8] sm:$0xf] %v5510
          %6023 = vst [vmem:[%s257 + $0x3cc] sm:$0xf] %v5511
          %6024 = vst [vmem:[%s257 + $0x3d0] sm:$0xf] %v5512
          %6025 = vst [vmem:[%s257 + $0x3d4] sm:$0xf] %v5513
          %6026 = vst [vmem:[%s257 + $0x3d8] sm:$0xf] %v5514
          %6027 = vst [vmem:[%s257 + $0x3dc] sm:$0xf] %v5515
          %6028 = vst [vmem:[%s257 + $0x3e0] sm:$0xf] %v5516
          %6029 = vst [vmem:[%s257 + $0x3e4] sm:$0xf] %v5517
          %6030 = vst [vmem:[%s257 + $0x3e8] sm:$0xf] %v5518
          %6031 = vst [vmem:[%s257 + $0x3ec] sm:$0xf] %v5519
          %6032 = vst [vmem:[%s257 + $0x3f0] sm:$0xf] %v5520
          %6033 = vst [vmem:[%s257 + $0x3f4] sm:$0xf] %v5521
          %6034 = vst [vmem:[%s257 + $0x3f8] sm:$0xf] %v5522
          %6035 = vst [vmem:[%s257 + $0x3fc] sm:$0xf] %v5523
        $region44: #{conv2d_nhwc.1} parent=31 // pred_fallthru
          _
        %s6036 = sand.u32 %s141, 1
        %s6037 = scalar_lea.sflag [#allocation4], %s6036
        %s6038 = sand.u32 %s141, 1
        %s6039 = smul.addr %s6038, 1024
        %s6040 = scalar_lea.vmem [#allocation3], %s6039
        // Predicated region
        $region45: #{conv2d_nhwc.1} parent=31 // pred_check
          %p6041 = pneg %p151
        $region46: #{conv2d_nhwc.1} parent=31 // pred_check_branch
          %6043 = sbr.rel (%p6041) target = $region48
        $region47: #{conv2d_nhwc.1} parent=31 // pred_region
          %s6044 = smul.u32 256, %s24
          %s6046 = ssub.s32 16384, 16384
          %6047 = vsyncadd %s6037, %s6046
          %s6048 = sadd.s32 %s25, %s6044
          %s6049 = smul.addr %s23, 512
          %s6050 = sadd.s32 %s6048, %s6049
          %s6051 = smul.addr %s6050, 64
          %s6052 = scalar_lea.hbm %s3, %s6051
          %s6053 = sshll.u32 %s6040, 4
          %s6054 = int_to_ptr.vmem [resolvable:$true] %s6053
          %6059 = dma.vmem_to_hbm [thread:$0]  %s6054, 16384, %s6052, %s6037, 64, 64, 4
        $region48: #{conv2d_nhwc.1} parent=31 // pred_fallthru
          _
      $region32: #{conv2d_nhwc.1} parent=5 // pred_fallthru
        _
      %p6060 = scmp.le.s32.totalorder 2, %s12
      // Predicated region
      $region49: #{conv2d_nhwc.1} parent=5 // pred_check
        %p6061 = pneg %p6060
      $region50: #{conv2d_nhwc.1} parent=5 // pred_check_branch
        %6063 = sbr.rel (%p6061) target = $region52
      $region51: #{conv2d_nhwc.1} parent=5 // pred_region
        %s6064 = ssub.s32 %s12, 2
        // Predicated region
        $region53: #{conv2d_nhwc.1} parent=51 // pred_check
          %p6065 = pneg %p157
        $region54: #{conv2d_nhwc.1} parent=51 // pred_check_branch
          %6067 = sbr.rel (%p6065) target = $region56
        $region55: #{conv2d_nhwc.1} parent=51 // pred_region
          %s6068 = sand.u32 %s142, 1
          %s6069 = scalar_lea.sflag [#allocation4], %s6068
          %s6070 = sand.u32 %s142, 1
          %s6071 = smul.addr %s6070, 1024
          %s6072 = scalar_lea.vmem [#allocation3], %s6071
          %6073 = dma.done %s6069, 16384
        $region56: #{conv2d_nhwc.1} parent=51 // pred_fallthru
          _
      $region52: #{conv2d_nhwc.1} parent=5 // pred_fallthru
        _
    $region6: #{conv2d_nhwc.1} parent=1 // loop_footer
      %s16 = sadd.s32 1, %s12
    $region7: #{conv2d_nhwc.1} parent=1 // loop_footer_branch
      %11 = sbr.rel target = $region3
    $region8: #{conv2d_nhwc.1} parent=1 // loop_exit
      _
    %6074 = vsyncpa [#allocation4], 1
    %s6075 = scalar_lea.sflag [#allocation4], 1
    %6076 = vsyncpa %s6075, 1

</llo_original>
